<compile_context>
chip_gen: v5e
topology: v5e:2x2
jax: 0.10.0
libtpu: 0.0.40
codegen_flags: <defaults>
</compile_context>

<pallas_src>
import functools

import jax
import jax.numpy as jnp
from jax.experimental import pallas as pl
from jax.experimental.pallas import tpu as pltpu


# ----------------------------------------------------------------------------
# Fused Pallas kernel: one discriminator branch per grid step
# ----------------------------------------------------------------------------
def _branch_kernel(x_ref, w1_ref, s1_ref, b1_ref, w2_ref, s2_ref, b2_ref,
                   wfc_ref, bfc_ref, nw_ref, o_ref):
    """One branch (grid index 0 = global/gt, 1 = local/masked).

    Hot path: three MXU GEMMs (two folded convs + dense block) with fused
    scale / bias / LeakyReLU epilogues; the 32-wide neck partial is a f32 VPU
    multiply + lane reduction (no MXU push for a 1-lane output).
    """
    def lrelu(v):
        return jnp.where(v > 0, v, 0.2 * v)

    x = x_ref[0]                                               # (B, C*H*W) bf16

    # conv1 as a folded GEMM: int8 weights -> bf16 on the fly, scale on f32 acc
    h = jnp.dot(x, w1_ref[0].astype(jnp.bfloat16),
                preferred_element_type=jnp.float32)
    h = lrelu(h * s1_ref[0] + b1_ref[0]).astype(jnp.bfloat16)  # (B, 512)

    # conv2 as a folded GEMM
    h = jnp.dot(h, w2_ref[0].astype(jnp.bfloat16),
                preferred_element_type=jnp.float32)
    h = lrelu(h * s2_ref[0] + b2_ref[0]).astype(jnp.bfloat16)  # (B, 256)

    # dense block (bf16 weights, f32 accumulate)
    h = jnp.dot(h, wfc_ref[0], preferred_element_type=jnp.float32) + bfc_ref[0]
    h = lrelu(h)                                               # (B, 32) f32

    # neck partial for this branch: f32 VPU multiply + lane-sum.  The wrapper
    # adds the two branch partials + neck bias (+ sigmoid).
    o_ref[0] = jnp.sum(h * nw_ref[0], axis=-1, keepdims=True)  # (B, 1)


# ----------------------------------------------------------------------------
# One-time weight preprocessing (NOT part of the jitted per-step path)
# ----------------------------------------------------------------------------
def _conv_to_gemm(weight, H, W, stride=2, pad=1):
    """Fold Conv2d(k=3, s=2, p=1) into a dense GEMM matrix.

    weight: [OC, C, KH, KW] (PyTorch layout).  Returns (M, OH, OW) with
    M [C*H*W, OC*OH*OW] (f32) such that for an NCHW-flattened image x,
    x @ M equals the NCHW-flattened conv output (zero padding included).
    """
    OC, C, KH, KW = weight.shape
    OH = (H + 2 * pad - KH) // stride + 1
    OW = (W + 2 * pad - KW) // stride + 1
    h = jnp.arange(H); oh = jnp.arange(OH); i = jnp.arange(KH)
    w = jnp.arange(W); ow = jnp.arange(OW); j = jnp.arange(KW)
    # R[i, oh, h] = 1 iff h == stride*oh + i - pad   (out-of-range -> zero pad)
    R = (h[None, None, :] ==
         (stride * oh[None, :, None] + i[:, None, None] - pad)).astype(weight.dtype)
    Cm = (w[None, None, :] ==
          (stride * ow[None, :, None] + j[:, None, None] - pad)).astype(weight.dtype)
    M = jnp.einsum('kcij,iph,jqw->chwkpq', weight, R, Cm)
    return M.reshape(C * H * W, OC * OH * OW), OH, OW


def _quantize_int8(m):
    """Symmetric per-tensor int8 quantization; returns (q_int8, scale_f32)."""
    s = jnp.maximum(jnp.max(jnp.abs(m)), 1e-8) / 127.0
    q = jnp.clip(jnp.round(m / s), -127, 127).astype(jnp.int8)
    return q, s.astype(jnp.float32)


def prepare_params(params, H=16, W=16):
    """Fold, quantize and stack the discriminator weights.

    Call ONCE at init / whenever parameters change and reuse the result for
    every forward call (this was previously re-run inside the jitted step).
    Branch weights are stacked on a leading axis of 2 so the kernel's
    grid=(2,) axis can select them (and v7x can run one branch per core).
    """
    assert params["neck_w"].shape[1] == 1, "neck assumed to be Linear(2*dfc -> 1)"

    def branch(p):
        m1, OH1, OW1 = _conv_to_gemm(params[f"{p}_conv1_w"], H, W)
        b1 = jnp.repeat(params[f"{p}_conv1_b"], OH1 * OW1).reshape(1, -1)
        m2, OH2, OW2 = _conv_to_gemm(params[f"{p}_conv2_w"], OH1, OW1)
        b2 = jnp.repeat(params[f"{p}_conv2_b"], OH2 * OW2).reshape(1, -1)
        w1q, s1 = _quantize_int8(m1)
        w2q, s2 = _quantize_int8(m2)
        return dict(
            w1q=w1q, s1=s1.reshape(1, 1), b1=b1.astype(jnp.float32),
            w2q=w2q, s2=s2.reshape(1, 1), b2=b2.astype(jnp.float32),
            wfc=params[f"{p}_fc_w"].astype(jnp.bfloat16),
            bfc=params[f"{p}_fc_b"].reshape(1, -1).astype(jnp.float32))

    g, l = branch("g"), branch("l")
    prep = {k: jnp.stack([g[k], l[k]]) for k in g}

    dfc = params["g_fc_w"].shape[1]
    nw = params["neck_w"].astype(jnp.float32)                   # [2*dfc, 1]
    prep["nw"] = jnp.stack([nw[:dfc, 0].reshape(1, dfc),        # global rows
                            nw[dfc:, 0].reshape(1, dfc)])       # local rows
    prep["nb"] = params["neck_b"].reshape(1, -1).astype(jnp.float32)
    return prep


# ----------------------------------------------------------------------------
# Discriminator forward (single pallas_call + tiny XLA epilogue)
# ----------------------------------------------------------------------------
@functools.partial(jax.jit, static_argnames=("sig",))
def discriminator_forward(prep, gt, masked, sig=True):
    B = gt.shape[0]
    # NCHW flatten, matching the folded conv matrices' row order.
    x = jnp.stack([gt.reshape(B, -1), masked.reshape(B, -1)]).astype(jnp.bfloat16)

    def spec(a):
        # per-branch block: size 1 on the branch axis, full extent elsewhere
        return pl.BlockSpec((1,) + a.shape[1:], lambda g: (g, 0, 0))

    operands = (x, prep["w1q"], prep["s1"], prep["b1"],
                prep["w2q"], prep["s2"], prep["b2"],
                prep["wfc"], prep["bfc"], prep["nw"])

    part = pl.pallas_call(
        _branch_kernel,
        out_shape=jax.ShapeDtypeStruct((2, B, 1), jnp.float32),
        grid=(2,),                                   # branch axis (global, local)
        in_specs=[spec(a) for a in operands],
        out_specs=pl.BlockSpec((1, B, 1), lambda g: (g, 0, 0)),
        compiler_params=pltpu.CompilerParams(
            dimension_semantics=("parallel",)),       # 2 TCs on v7x, loop elsewhere
    )(*operands)

    # neck epilogue: add the two branch partials + bias, optional sigmoid.
    y = part[0] + part[1] + prep["nb"]               # (B, 1) f32
    return jax.nn.sigmoid(y) if sig else y


# ----------------------------------------------------------------------------
# Pure-JAX f32 reference (for correctness check only)
# ----------------------------------------------------------------------------
def reference_forward(params, gt, masked, sig=True):
    def lrelu(x):
        return jnp.where(x > 0, x, 0.2 * x)

    def conv_block(x, w, b):
        y = jax.lax.conv_general_dilated(
            x, w, window_strides=(2, 2), padding=((1, 1), (1, 1)),
            dimension_numbers=("NCHW", "OIHW", "NCHW"))
        return lrelu(y + b[None, :, None, None])

    def branch(x, p):
        x = conv_block(x, params[f"{p}_conv1_w"], params[f"{p}_conv1_b"])
        x = conv_block(x, params[f"{p}_conv2_w"], params[f"{p}_conv2_b"])
        x = x.reshape(x.shape[0], -1)
        return lrelu(x @ params[f"{p}_fc_w"] + params[f"{p}_fc_b"])

    x1 = branch(gt, "g")
    x2 = branch(masked, "l")
    y = jnp.concatenate([x1, x2], axis=1) @ params["neck_w"] + params["neck_b"]
    return jax.nn.sigmoid(y) if sig else y


# ----------------------------------------------------------------------------
# Deterministic synthetic parameters (dense weights stored [in, out])
# ----------------------------------------------------------------------------
def make_params(key):
    ks = jax.random.split(key, 14)
    s = 0.05

    def conv_w(k, oc, ic):
        return s * jax.random.normal(k, (oc, ic, 3, 3), jnp.float32)

    def lin_w(k, i, o):
        return s * jax.random.normal(k, (i, o), jnp.float32)

    def bias(k, n):
        return s * jax.random.normal(k, (n,), jnp.float32)

    return {
        # global branch: 4 -> 8 -> 16 channels, 16x16 -> 8x8 -> 4x4
        "g_conv1_w": conv_w(ks[0], 8, 4),   "g_conv1_b": bias(ks[1], 8),
        "g_conv2_w": conv_w(ks[2], 16, 8),  "g_conv2_b": bias(ks[3], 16),
        # local branch: identical topology
        "l_conv1_w": conv_w(ks[4], 8, 4),   "l_conv1_b": bias(ks[5], 8),
        "l_conv2_w": conv_w(ks[6], 16, 8),  "l_conv2_b": bias(ks[7], 16),
        # dense branches: 16*4*4 = 256 -> 32
        "g_fc_w": lin_w(ks[8], 256, 32),    "g_fc_b": bias(ks[9], 32),
        "l_fc_w": lin_w(ks[10], 256, 32),   "l_fc_b": bias(ks[11], 32),
        # neck: 64 -> 1
        "neck_w": lin_w(ks[12], 64, 1),     "neck_b": bias(ks[13], 1),
    }


if __name__ == "__main__":
    key = jax.random.PRNGKey(0)
    k_gt, k_mask, k_par = jax.random.split(key, 3)

    # layout: NCHW inputs, batch=2, channels=4, spatial=16x16
    gt = jax.random.normal(k_gt, (2, 4, 16, 16), jnp.float32)
    masked = jax.random.normal(k_mask, (2, 4, 16, 16), jnp.float32)
    params = make_params(k_par)

    # one-time folding / quantization (outside the jitted per-step path)
    prep = prepare_params(params)

    out = jax.block_until_ready(discriminator_forward(prep, gt, masked, sig=True))
    logits = jax.block_until_ready(discriminator_forward(prep, gt, masked, sig=False))

    ref_sig = reference_forward(params, gt, masked, sig=True)
    ref_log = reference_forward(params, gt, masked, sig=False)

    assert out.shape == (2, 1)
    assert bool(jnp.all((out >= 0.0) & (out <= 1.0)))
    assert bool(jnp.allclose(out, ref_sig, atol=2e-2)), (out, ref_sig)
    assert bool(jnp.allclose(logits, ref_log, atol=2e-2)), (logits, ref_log)
    print("KERNEL_OK")
</pallas_src>

<mosaic_0001>
module attributes {stable_mosaic.version = 11 : i64} {
  func.func @_branch_kernel(%arg0: i32, %arg1: memref<1x2x1024xbf16, #tpu.memory_space<vmem>>, %arg2: memref<1x1024x512xi8, #tpu.memory_space<vmem>>, %arg3: memref<1x1x1xf32, #tpu.memory_space<vmem>>, %arg4: memref<1x1x512xf32, #tpu.memory_space<vmem>>, %arg5: memref<1x512x256xi8, #tpu.memory_space<vmem>>, %arg6: memref<1x1x1xf32, #tpu.memory_space<vmem>>, %arg7: memref<1x1x256xf32, #tpu.memory_space<vmem>>, %arg8: memref<1x256x32xbf16, #tpu.memory_space<vmem>>, %arg9: memref<1x1x32xf32, #tpu.memory_space<vmem>>, %arg10: memref<1x1x32xf32, #tpu.memory_space<vmem>>, %arg11: memref<1x2x1xf32, #tpu.memory_space<vmem>>) attributes {dimension_semantics = [#tpu.dimension_semantics<parallel>], iteration_bounds = array<i64: 2>, scalar_prefetch = 0 : i64, scratch_operands = 0 : i64, tpu.core_type = #tpu.core_type<tc>, window_params = [{transform_indices = @transform_0, window_bounds = array<i64: 1, 2, 1024>}, {transform_indices = @transform_1, window_bounds = array<i64: 1, 1024, 512>}, {transform_indices = @transform_2, window_bounds = array<i64: 1, 1, 1>}, {transform_indices = @transform_3, window_bounds = array<i64: 1, 1, 512>}, {transform_indices = @transform_4, window_bounds = array<i64: 1, 512, 256>}, {transform_indices = @transform_5, window_bounds = array<i64: 1, 1, 1>}, {transform_indices = @transform_6, window_bounds = array<i64: 1, 1, 256>}, {transform_indices = @transform_7, window_bounds = array<i64: 1, 256, 32>}, {transform_indices = @transform_8, window_bounds = array<i64: 1, 1, 32>}, {transform_indices = @transform_9, window_bounds = array<i64: 1, 1, 32>}, {transform_indices = @transform_10, window_bounds = array<i64: 1, 2, 1>}]} {
    %c0 = arith.constant 0 : index
    %c0_0 = arith.constant 0 : index
    %c0_1 = arith.constant 0 : index
    %0 = vector.load %arg1[%c0, %c0_0, %c0_1] : memref<1x2x1024xbf16, #tpu.memory_space<vmem>>, vector<1x2x1024xbf16>
    %1 = vector.shape_cast %0 : vector<1x2x1024xbf16> to vector<2x1024xbf16>
    %c0_2 = arith.constant 0 : index
    %c0_3 = arith.constant 0 : index
    %c0_4 = arith.constant 0 : index
    %2 = vector.load %arg2[%c0_2, %c0_3, %c0_4] : memref<1x1024x512xi8, #tpu.memory_space<vmem>>, vector<1x1024x512xi8>
    %3 = vector.shape_cast %2 : vector<1x1024x512xi8> to vector<1024x512xi8>
    %4 = arith.sitofp %3 : vector<1024x512xi8> to vector<1024x512xbf16>
    %cst = arith.constant dense<0.000000e+00> : vector<2x512xf32>
    %5 = tpu.matmul %1, %4, %cst {dimension_numbers = #tpu.dot_dimension_numbers<[1], [0], [0], [1], [0, 0, 1, 1], [], []>} : vector<2x1024xbf16>, vector<1024x512xbf16>, vector<2x512xf32> -> vector<2x512xf32>
    %c0_5 = arith.constant 0 : index
    %c0_6 = arith.constant 0 : index
    %c0_7 = arith.constant 0 : index
    %6 = vector.load %arg3[%c0_5, %c0_6, %c0_7] : memref<1x1x1xf32, #tpu.memory_space<vmem>>, vector<1x1x1xf32>
    %7 = vector.shape_cast %6 : vector<1x1x1xf32> to vector<1x1xf32>
    %8 = vector.broadcast %7 : vector<1x1xf32> to vector<2x512xf32>
    %9 = arith.mulf %5, %8 : vector<2x512xf32>
    %c0_8 = arith.constant 0 : index
    %c0_9 = arith.constant 0 : index
    %c0_10 = arith.constant 0 : index
    %10 = vector.load %arg4[%c0_8, %c0_9, %c0_10] : memref<1x1x512xf32, #tpu.memory_space<vmem>>, vector<1x1x512xf32>
    %11 = vector.shape_cast %10 : vector<1x1x512xf32> to vector<1x512xf32>
    %12 = vector.broadcast %11 : vector<1x512xf32> to vector<2x512xf32>
    %13 = arith.addf %9, %12 : vector<2x512xf32>
    %cst_11 = arith.constant 0.000000e+00 : f32
    %14 = vector.broadcast %cst_11 : f32 to vector<2x512xf32>
    %15 = arith.cmpf ogt, %13, %14 : vector<2x512xf32>
    %cst_12 = arith.constant 2.000000e-01 : f32
    %16 = vector.broadcast %cst_12 : f32 to vector<2x512xf32>
    %17 = arith.mulf %16, %13 : vector<2x512xf32>
    %18 = arith.select %15, %13, %17 : vector<2x512xi1>, vector<2x512xf32>
    %19 = arith.truncf %18 : vector<2x512xf32> to vector<2x512xbf16>
    %c0_13 = arith.constant 0 : index
    %c0_14 = arith.constant 0 : index
    %c0_15 = arith.constant 0 : index
    %20 = vector.load %arg5[%c0_13, %c0_14, %c0_15] : memref<1x512x256xi8, #tpu.memory_space<vmem>>, vector<1x512x256xi8>
    %21 = vector.shape_cast %20 : vector<1x512x256xi8> to vector<512x256xi8>
    %22 = arith.sitofp %21 : vector<512x256xi8> to vector<512x256xbf16>
    %cst_16 = arith.constant dense<0.000000e+00> : vector<2x256xf32>
    %23 = tpu.matmul %19, %22, %cst_16 {dimension_numbers = #tpu.dot_dimension_numbers<[1], [0], [0], [1], [0, 0, 1, 1], [], []>} : vector<2x512xbf16>, vector<512x256xbf16>, vector<2x256xf32> -> vector<2x256xf32>
    %c0_17 = arith.constant 0 : index
    %c0_18 = arith.constant 0 : index
    %c0_19 = arith.constant 0 : index
    %24 = vector.load %arg6[%c0_17, %c0_18, %c0_19] : memref<1x1x1xf32, #tpu.memory_space<vmem>>, vector<1x1x1xf32>
    %25 = vector.shape_cast %24 : vector<1x1x1xf32> to vector<1x1xf32>
    %26 = vector.broadcast %25 : vector<1x1xf32> to vector<2x256xf32>
    %27 = arith.mulf %23, %26 : vector<2x256xf32>
    %c0_20 = arith.constant 0 : index
    %c0_21 = arith.constant 0 : index
    %c0_22 = arith.constant 0 : index
    %28 = vector.load %arg7[%c0_20, %c0_21, %c0_22] : memref<1x1x256xf32, #tpu.memory_space<vmem>>, vector<1x1x256xf32>
    %29 = vector.shape_cast %28 : vector<1x1x256xf32> to vector<1x256xf32>
    %30 = vector.broadcast %29 : vector<1x256xf32> to vector<2x256xf32>
    %31 = arith.addf %27, %30 : vector<2x256xf32>
    %cst_23 = arith.constant 0.000000e+00 : f32
    %32 = vector.broadcast %cst_23 : f32 to vector<2x256xf32>
    %33 = arith.cmpf ogt, %31, %32 : vector<2x256xf32>
    %cst_24 = arith.constant 2.000000e-01 : f32
    %34 = vector.broadcast %cst_24 : f32 to vector<2x256xf32>
    %35 = arith.mulf %34, %31 : vector<2x256xf32>
    %36 = arith.select %33, %31, %35 : vector<2x256xi1>, vector<2x256xf32>
    %37 = arith.truncf %36 : vector<2x256xf32> to vector<2x256xbf16>
    %c0_25 = arith.constant 0 : index
    %c0_26 = arith.constant 0 : index
    %c0_27 = arith.constant 0 : index
    %38 = vector.load %arg8[%c0_25, %c0_26, %c0_27] : memref<1x256x32xbf16, #tpu.memory_space<vmem>>, vector<1x256x32xbf16>
    %39 = vector.shape_cast %38 : vector<1x256x32xbf16> to vector<256x32xbf16>
    %cst_28 = arith.constant dense<0.000000e+00> : vector<2x32xf32>
    %40 = tpu.matmul %37, %39, %cst_28 {dimension_numbers = #tpu.dot_dimension_numbers<[1], [0], [0], [1], [0, 0, 1, 1], [], []>} : vector<2x256xbf16>, vector<256x32xbf16>, vector<2x32xf32> -> vector<2x32xf32>
    %c0_29 = arith.constant 0 : index
    %c0_30 = arith.constant 0 : index
    %c0_31 = arith.constant 0 : index
    %41 = vector.load %arg9[%c0_29, %c0_30, %c0_31] : memref<1x1x32xf32, #tpu.memory_space<vmem>>, vector<1x1x32xf32>
    %42 = vector.shape_cast %41 : vector<1x1x32xf32> to vector<1x32xf32>
    %43 = vector.broadcast %42 : vector<1x32xf32> to vector<2x32xf32>
    %44 = arith.addf %40, %43 : vector<2x32xf32>
    %cst_32 = arith.constant 0.000000e+00 : f32
    %45 = vector.broadcast %cst_32 : f32 to vector<2x32xf32>
    %46 = arith.cmpf ogt, %44, %45 : vector<2x32xf32>
    %cst_33 = arith.constant 2.000000e-01 : f32
    %47 = vector.broadcast %cst_33 : f32 to vector<2x32xf32>
    %48 = arith.mulf %47, %44 : vector<2x32xf32>
    %49 = arith.select %46, %44, %48 : vector<2x32xi1>, vector<2x32xf32>
    %c0_34 = arith.constant 0 : index
    %c0_35 = arith.constant 0 : index
    %c0_36 = arith.constant 0 : index
    %50 = vector.load %arg10[%c0_34, %c0_35, %c0_36] : memref<1x1x32xf32, #tpu.memory_space<vmem>>, vector<1x1x32xf32>
    %51 = vector.shape_cast %50 : vector<1x1x32xf32> to vector<1x32xf32>
    %52 = vector.broadcast %51 : vector<1x32xf32> to vector<2x32xf32>
    %53 = arith.mulf %49, %52 : vector<2x32xf32>
    %cst_37 = arith.constant dense<0.000000e+00> : vector<2xf32>
    %54 = vector.multi_reduction <add>, %53, %cst_37 [1] : vector<2x32xf32> to vector<2xf32>
    %55 = vector.shape_cast %54 : vector<2xf32> to vector<2x1xf32>
    %c0_38 = arith.constant 0 : index
    %c0_39 = arith.constant 0 : index
    %c0_40 = arith.constant 0 : index
    %56 = vector.load %arg11[%c0_38, %c0_39, %c0_40] : memref<1x2x1xf32, #tpu.memory_space<vmem>>, vector<1x2x1xf32>
    %57 = vector.shape_cast %56 : vector<1x2x1xf32> to vector<2x1xf32>
    %58 = vector.shape_cast %55 : vector<2x1xf32> to vector<1x2x1xf32>
    tpu.vector_store %arg11[%c0_38, %c0_39, %c0_40], %58 {strides = array<i32>} : memref<1x2x1xf32, #tpu.memory_space<vmem>>, vector<1x2x1xf32>,
    return
  }
  func.func @transform_0(%arg0: i32) -> (i32, i32, i32) {
    %c0_i32 = arith.constant 0 : i32
    %c0_i32_0 = arith.constant 0 : i32
    %c0_i32_1 = arith.constant 0 : i32
    return %arg0, %c0_i32, %c0_i32_0 : i32, i32, i32
  }
  func.func @transform_1(%arg0: i32) -> (i32, i32, i32) {
    %c0_i32 = arith.constant 0 : i32
    %c0_i32_0 = arith.constant 0 : i32
    %c0_i32_1 = arith.constant 0 : i32
    return %arg0, %c0_i32, %c0_i32_0 : i32, i32, i32
  }
  func.func @transform_2(%arg0: i32) -> (i32, i32, i32) {
    %c0_i32 = arith.constant 0 : i32
    %c0_i32_0 = arith.constant 0 : i32
    %c0_i32_1 = arith.constant 0 : i32
    return %arg0, %c0_i32, %c0_i32_0 : i32, i32, i32
  }
  func.func @transform_3(%arg0: i32) -> (i32, i32, i32) {
    %c0_i32 = arith.constant 0 : i32
    %c0_i32_0 = arith.constant 0 : i32
    %c0_i32_1 = arith.constant 0 : i32
    return %arg0, %c0_i32, %c0_i32_0 : i32, i32, i32
  }
  func.func @transform_4(%arg0: i32) -> (i32, i32, i32) {
    %c0_i32 = arith.constant 0 : i32
    %c0_i32_0 = arith.constant 0 : i32
    %c0_i32_1 = arith.constant 0 : i32
    return %arg0, %c0_i32, %c0_i32_0 : i32, i32, i32
  }
  func.func @transform_5(%arg0: i32) -> (i32, i32, i32) {
    %c0_i32 = arith.constant 0 : i32
    %c0_i32_0 = arith.constant 0 : i32
    %c0_i32_1 = arith.constant 0 : i32
    return %arg0, %c0_i32, %c0_i32_0 : i32, i32, i32
  }
  func.func @transform_6(%arg0: i32) -> (i32, i32, i32) {
    %c0_i32 = arith.constant 0 : i32
    %c0_i32_0 = arith.constant 0 : i32
    %c0_i32_1 = arith.constant 0 : i32
    return %arg0, %c0_i32, %c0_i32_0 : i32, i32, i32
  }
  func.func @transform_7(%arg0: i32) -> (i32, i32, i32) {
    %c0_i32 = arith.constant 0 : i32
    %c0_i32_0 = arith.constant 0 : i32
    %c0_i32_1 = arith.constant 0 : i32
    return %arg0, %c0_i32, %c0_i32_0 : i32, i32, i32
  }
  func.func @transform_8(%arg0: i32) -> (i32, i32, i32) {
    %c0_i32 = arith.constant 0 : i32
    %c0_i32_0 = arith.constant 0 : i32
    %c0_i32_1 = arith.constant 0 : i32
    return %arg0, %c0_i32, %c0_i32_0 : i32, i32, i32
  }
  func.func @transform_9(%arg0: i32) -> (i32, i32, i32) {
    %c0_i32 = arith.constant 0 : i32
    %c0_i32_0 = arith.constant 0 : i32
    %c0_i32_1 = arith.constant 0 : i32
    return %arg0, %c0_i32, %c0_i32_0 : i32, i32, i32
  }
  func.func @transform_10(%arg0: i32) -> (i32, i32, i32) {
    %c0_i32 = arith.constant 0 : i32
    %c0_i32_0 = arith.constant 0 : i32
    %c0_i32_1 = arith.constant 0 : i32
    return %arg0, %c0_i32, %c0_i32_0 : i32, i32, i32
  }
}

</mosaic_0001>

<llo_original>
// kernel: discriminator_forward.1
$region0: #{discriminator_forward.1}
  #allocation0 [shape = 'u32[]', space=smem, size = 0x4, offset = 0x4, fixed_abs, tag = 'smem constant byte address 0x4 - core index']
  #allocation1 [shape = 'u32[72,128]{1,0:T(1,128)}', space=vmem, size = 0x9000, scoped, tag = 'internal scratch']
  %s0 = inlined_call_operand.vmem [shape: bf16[2,2,1024], index: 0, kind: input, shape index: {}]
  %s1 = inlined_call_operand.hbm [shape: s8[2,1024,512], index: 1, kind: input, shape index: {}]
  %s2 = inlined_call_operand.vmem [shape: f32[2,1,1], index: 2, kind: input, shape index: {}]
  %s3 = inlined_call_operand.vmem [shape: f32[2,1,512], index: 3, kind: input, shape index: {}]
  %s4 = inlined_call_operand.hbm [shape: s8[2,512,256], index: 4, kind: input, shape index: {}]
  %s5 = inlined_call_operand.vmem [shape: f32[2,1,1], index: 5, kind: input, shape index: {}]
  %s6 = inlined_call_operand.vmem [shape: f32[2,1,256], index: 6, kind: input, shape index: {}]
  %s7 = inlined_call_operand.vmem [shape: bf16[2,256,32], index: 7, kind: input, shape index: {}]
  %s8 = inlined_call_operand.vmem [shape: f32[2,1,32], index: 8, kind: input, shape index: {}]
  %s9 = inlined_call_operand.vmem [shape: f32[2,1,32], index: 9, kind: input, shape index: {}]
  %s10 = inlined_call_operand.vmem [shape: f32[2,2,1], index: 10, kind: output, shape index: {}]
  %s11 = sld [smem:[#allocation0]]
  $region81: #{discriminator_forward.1} parent=0
    _
  %s13 = ssub.s32 1, %s11
  %s14 = scalar_select 0, %s13, %s11
  $region1: #{discriminator_forward.1} parent=0
    #allocation2 [shape = 'u8[1048576]{0}', space=vmem, size = 0x100000, scoped, tag = 'input window, operand 1']
    #allocation3 [shape = 's32[2]{0}', space=sflag, size = 0x8, scoped, tag = 'scoped memory for discriminator_forward.1']
    #allocation4 [shape = 'u8[262144]{0}', space=vmem, size = 0x40000, scoped, tag = 'input window, operand 4']
    #allocation5 [shape = 's32[2]{0}', space=sflag, size = 0x8, scoped, tag = 'scoped memory for discriminator_forward.1']
    %15 = vsyncpa [#allocation3], 0
    %s16 = scalar_lea.sflag [#allocation3], 1
    %17 = vsyncpa %s16, 0
    %18 = vsyncpa [#allocation5], 0
    %s19 = scalar_lea.sflag [#allocation5], 1
    %20 = vsyncpa %s19, 0
    loop: start=0, step=1, limit=4
    $region2: #{discriminator_forward.1} parent=1 // loop_pre_header
      _
    $region3: #{discriminator_forward.1} parent=1 // loop_header
      %s22 = sphi 0, %s26
      %p23 = scmp.ge.s32.totalorder %s22, 4
      %s32 = sphi 0, %s34
      %s35 = sphi 0, %s32
      %s36 = sphi 0, %s35
      %s52 = sphi 0, %s36
      %s58 = sphi 0, %s60
      %s61 = sphi 0, %s58
      %s62 = sphi 0, %s61
      %s78 = sphi 0, %s62
      %s84 = sphi 0, %s86
      %s87 = sphi 0, %s84
      %s88 = sphi 0, %s87
      %s104 = sphi 0, %s88
      %s110 = sphi 0, %s112
      %s113 = sphi 0, %s110
      %s114 = sphi 0, %s113
      %s130 = sphi 0, %s114
      %s136 = sphi 0, %s138
      %s139 = sphi 0, %s136
      %s140 = sphi 0, %s139
      %s156 = sphi 0, %s140
      %s162 = sphi 0, %s164
      %s165 = sphi 0, %s162
      %s166 = sphi 0, %s165
      %s182 = sphi 0, %s166
      %s188 = sphi 0, %s190
      %s191 = sphi 0, %s188
      %s192 = sphi 0, %s191
      %s208 = sphi 0, %s192
      %s214 = sphi 0, %s216
      %s217 = sphi 0, %s214
      %s218 = sphi 0, %s217
      %s234 = sphi 0, %s218
      %s240 = sphi 0, %s242
      %s243 = sphi 0, %s240
      %s244 = sphi 0, %s243
      %s260 = sphi 0, %s244
      %s266 = sphi 0, %s268
      %s269 = sphi 0, %s266
      %s270 = sphi 0, %s269
      %s286 = sphi 0, %s270
      %s292 = sphi 0, %s294
      %s295 = sphi 0, %s292
      %s296 = sphi 0, %s295
      %s312 = sphi 0, %s296
    $region4: #{discriminator_forward.1} parent=1 // loop_header_branch
      %25 = sbr.rel (%p23) target = $region8
    $region5: #{discriminator_forward.1} parent=1 // loop_body
      %s27 = ssub.s32 %s22, 1
      %s28 = ssub.s32 %s22, 2
      %s29 = sadd.s32 %s22, 1
      %s30 = ssub.s32 %s22, %s29
      %p31 = scmp.eq.s32.totalorder %s30, 0
      %s33 = sadd.s32 %s32, 1
      %s34 = scalar_select %p31, %s32, %s33
      %p37 = pneg %p31
      %p38 = scmp.eq.s32.totalorder %s22, 1
      %p39 = por %p37, %p38
      %p40 = scmp.ne.s32.totalorder %s32, %s35
      %p41 = scmp.eq.s32.totalorder %s22, 0
      %p42 = por %p40, %p41
      %p43 = scmp.ne.s32.totalorder %s32, %s35
      %p44 = scmp.eq.s32.totalorder %s27, 1
      %p45 = por %p43, %p44
      %p46 = scmp.ne.s32.totalorder %s35, %s36
      %p47 = scmp.eq.s32.totalorder %s27, 0
      %p48 = por %p46, %p47
      %p49 = scmp.ne.s32.totalorder %s35, %s36
      %p50 = scmp.eq.s32.totalorder %s28, 1
      %p51 = por %p49, %p50
      %p53 = scmp.ne.s32.totalorder %s36, %s52
      %p54 = scmp.eq.s32.totalorder %s28, 0
      %p55 = por %p53, %p54
      %s56 = ssub.s32 %s22, %s29
      %p57 = scmp.eq.s32.totalorder %s56, 0
      %s59 = sadd.s32 %s58, 1
      %s60 = scalar_select %p57, %s58, %s59
      %p63 = pneg %p57
      %p64 = scmp.eq.s32.totalorder %s22, 1
      %p65 = por %p63, %p64
      %p66 = scmp.ne.s32.totalorder %s58, %s61
      %p67 = scmp.eq.s32.totalorder %s22, 0
      %p68 = por %p66, %p67
      %p69 = scmp.ne.s32.totalorder %s58, %s61
      %p70 = scmp.eq.s32.totalorder %s27, 1
      %p71 = por %p69, %p70
      %p72 = scmp.ne.s32.totalorder %s61, %s62
      %p73 = scmp.eq.s32.totalorder %s27, 0
      %p74 = por %p72, %p73
      %p75 = scmp.ne.s32.totalorder %s61, %s62
      %p76 = scmp.eq.s32.totalorder %s28, 1
      %p77 = por %p75, %p76
      %p79 = scmp.ne.s32.totalorder %s62, %s78
      %p80 = scmp.eq.s32.totalorder %s28, 0
      %p81 = por %p79, %p80
      %s82 = ssub.s32 %s22, %s29
      %p83 = scmp.eq.s32.totalorder %s82, 0
      %s85 = sadd.s32 %s84, 1
      %s86 = scalar_select %p83, %s84, %s85
      %p89 = pneg %p83
      %p90 = scmp.eq.s32.totalorder %s22, 1
      %p91 = por %p89, %p90
      %p92 = scmp.ne.s32.totalorder %s84, %s87
      %p93 = scmp.eq.s32.totalorder %s22, 0
      %p94 = por %p92, %p93
      %p95 = scmp.ne.s32.totalorder %s84, %s87
      %p96 = scmp.eq.s32.totalorder %s27, 1
      %p97 = por %p95, %p96
      %p98 = scmp.ne.s32.totalorder %s87, %s88
      %p99 = scmp.eq.s32.totalorder %s27, 0
      %p100 = por %p98, %p99
      %p101 = scmp.ne.s32.totalorder %s87, %s88
      %p102 = scmp.eq.s32.totalorder %s28, 1
      %p103 = por %p101, %p102
      %p105 = scmp.ne.s32.totalorder %s88, %s104
      %p106 = scmp.eq.s32.totalorder %s28, 0
      %p107 = por %p105, %p106
      %s108 = ssub.s32 %s22, %s29
      %p109 = scmp.eq.s32.totalorder %s108, 0
      %s111 = sadd.s32 %s110, 1
      %s112 = scalar_select %p109, %s110, %s111
      %p115 = pneg %p109
      %p116 = scmp.eq.s32.totalorder %s22, 1
      %p117 = por %p115, %p116
      %p118 = scmp.ne.s32.totalorder %s110, %s113
      %p119 = scmp.eq.s32.totalorder %s22, 0
      %p120 = por %p118, %p119
      %p121 = scmp.ne.s32.totalorder %s110, %s113
      %p122 = scmp.eq.s32.totalorder %s27, 1
      %p123 = por %p121, %p122
      %p124 = scmp.ne.s32.totalorder %s113, %s114
      %p125 = scmp.eq.s32.totalorder %s27, 0
      %p126 = por %p124, %p125
      %p127 = scmp.ne.s32.totalorder %s113, %s114
      %p128 = scmp.eq.s32.totalorder %s28, 1
      %p129 = por %p127, %p128
      %p131 = scmp.ne.s32.totalorder %s114, %s130
      %p132 = scmp.eq.s32.totalorder %s28, 0
      %p133 = por %p131, %p132
      %s134 = ssub.s32 %s22, %s29
      %p135 = scmp.eq.s32.totalorder %s134, 0
      %s137 = sadd.s32 %s136, 1
      %s138 = scalar_select %p135, %s136, %s137
      %p141 = pneg %p135
      %p142 = scmp.eq.s32.totalorder %s22, 1
      %p143 = por %p141, %p142
      %p144 = scmp.ne.s32.totalorder %s136, %s139
      %p145 = scmp.eq.s32.totalorder %s22, 0
      %p146 = por %p144, %p145
      %p147 = scmp.ne.s32.totalorder %s136, %s139
      %p148 = scmp.eq.s32.totalorder %s27, 1
      %p149 = por %p147, %p148
      %p150 = scmp.ne.s32.totalorder %s139, %s140
      %p151 = scmp.eq.s32.totalorder %s27, 0
      %p152 = por %p150, %p151
      %p153 = scmp.ne.s32.totalorder %s139, %s140
      %p154 = scmp.eq.s32.totalorder %s28, 1
      %p155 = por %p153, %p154
      %p157 = scmp.ne.s32.totalorder %s140, %s156
      %p158 = scmp.eq.s32.totalorder %s28, 0
      %p159 = por %p157, %p158
      %s160 = ssub.s32 %s22, %s29
      %p161 = scmp.eq.s32.totalorder %s160, 0
      %s163 = sadd.s32 %s162, 1
      %s164 = scalar_select %p161, %s162, %s163
      %p167 = pneg %p161
      %p168 = scmp.eq.s32.totalorder %s22, 1
      %p169 = por %p167, %p168
      %p170 = scmp.ne.s32.totalorder %s162, %s165
      %p171 = scmp.eq.s32.totalorder %s22, 0
      %p172 = por %p170, %p171
      %p173 = scmp.ne.s32.totalorder %s162, %s165
      %p174 = scmp.eq.s32.totalorder %s27, 1
      %p175 = por %p173, %p174
      %p176 = scmp.ne.s32.totalorder %s165, %s166
      %p177 = scmp.eq.s32.totalorder %s27, 0
      %p178 = por %p176, %p177
      %p179 = scmp.ne.s32.totalorder %s165, %s166
      %p180 = scmp.eq.s32.totalorder %s28, 1
      %p181 = por %p179, %p180
      %p183 = scmp.ne.s32.totalorder %s166, %s182
      %p184 = scmp.eq.s32.totalorder %s28, 0
      %p185 = por %p183, %p184
      %s186 = ssub.s32 %s22, %s29
      %p187 = scmp.eq.s32.totalorder %s186, 0
      %s189 = sadd.s32 %s188, 1
      %s190 = scalar_select %p187, %s188, %s189
      %p193 = pneg %p187
      %p194 = scmp.eq.s32.totalorder %s22, 1
      %p195 = por %p193, %p194
      %p196 = scmp.ne.s32.totalorder %s188, %s191
      %p197 = scmp.eq.s32.totalorder %s22, 0
      %p198 = por %p196, %p197
      %p199 = scmp.ne.s32.totalorder %s188, %s191
      %p200 = scmp.eq.s32.totalorder %s27, 1
      %p201 = por %p199, %p200
      %p202 = scmp.ne.s32.totalorder %s191, %s192
      %p203 = scmp.eq.s32.totalorder %s27, 0
      %p204 = por %p202, %p203
      %p205 = scmp.ne.s32.totalorder %s191, %s192
      %p206 = scmp.eq.s32.totalorder %s28, 1
      %p207 = por %p205, %p206
      %p209 = scmp.ne.s32.totalorder %s192, %s208
      %p210 = scmp.eq.s32.totalorder %s28, 0
      %p211 = por %p209, %p210
      %s212 = ssub.s32 %s22, %s29
      %p213 = scmp.eq.s32.totalorder %s212, 0
      %s215 = sadd.s32 %s214, 1
      %s216 = scalar_select %p213, %s214, %s215
      %p219 = pneg %p213
      %p220 = scmp.eq.s32.totalorder %s22, 1
      %p221 = por %p219, %p220
      %p222 = scmp.ne.s32.totalorder %s214, %s217
      %p223 = scmp.eq.s32.totalorder %s22, 0
      %p224 = por %p222, %p223
      %p225 = scmp.ne.s32.totalorder %s214, %s217
      %p226 = scmp.eq.s32.totalorder %s27, 1
      %p227 = por %p225, %p226
      %p228 = scmp.ne.s32.totalorder %s217, %s218
      %p229 = scmp.eq.s32.totalorder %s27, 0
      %p230 = por %p228, %p229
      %p231 = scmp.ne.s32.totalorder %s217, %s218
      %p232 = scmp.eq.s32.totalorder %s28, 1
      %p233 = por %p231, %p232
      %p235 = scmp.ne.s32.totalorder %s218, %s234
      %p236 = scmp.eq.s32.totalorder %s28, 0
      %p237 = por %p235, %p236
      %s238 = ssub.s32 %s22, %s29
      %p239 = scmp.eq.s32.totalorder %s238, 0
      %s241 = sadd.s32 %s240, 1
      %s242 = scalar_select %p239, %s240, %s241
      %p245 = pneg %p239
      %p246 = scmp.eq.s32.totalorder %s22, 1
      %p247 = por %p245, %p246
      %p248 = scmp.ne.s32.totalorder %s240, %s243
      %p249 = scmp.eq.s32.totalorder %s22, 0
      %p250 = por %p248, %p249
      %p251 = scmp.ne.s32.totalorder %s240, %s243
      %p252 = scmp.eq.s32.totalorder %s27, 1
      %p253 = por %p251, %p252
      %p254 = scmp.ne.s32.totalorder %s243, %s244
      %p255 = scmp.eq.s32.totalorder %s27, 0
      %p256 = por %p254, %p255
      %p257 = scmp.ne.s32.totalorder %s243, %s244
      %p258 = scmp.eq.s32.totalorder %s28, 1
      %p259 = por %p257, %p258
      %p261 = scmp.ne.s32.totalorder %s244, %s260
      %p262 = scmp.eq.s32.totalorder %s28, 0
      %p263 = por %p261, %p262
      %s264 = ssub.s32 %s22, %s29
      %p265 = scmp.eq.s32.totalorder %s264, 0
      %s267 = sadd.s32 %s266, 1
      %s268 = scalar_select %p265, %s266, %s267
      %p271 = pneg %p265
      %p272 = scmp.eq.s32.totalorder %s22, 1
      %p273 = por %p271, %p272
      %p274 = scmp.ne.s32.totalorder %s266, %s269
      %p275 = scmp.eq.s32.totalorder %s22, 0
      %p276 = por %p274, %p275
      %p277 = scmp.ne.s32.totalorder %s266, %s269
      %p278 = scmp.eq.s32.totalorder %s27, 1
      %p279 = por %p277, %p278
      %p280 = scmp.ne.s32.totalorder %s269, %s270
      %p281 = scmp.eq.s32.totalorder %s27, 0
      %p282 = por %p280, %p281
      %p283 = scmp.ne.s32.totalorder %s269, %s270
      %p284 = scmp.eq.s32.totalorder %s28, 1
      %p285 = por %p283, %p284
      %p287 = scmp.ne.s32.totalorder %s270, %s286
      %p288 = scmp.eq.s32.totalorder %s28, 0
      %p289 = por %p287, %p288
      %s290 = ssub.s32 %s22, %s29
      %p291 = scmp.eq.s32.totalorder %s290, 0
      %s293 = sadd.s32 %s292, 1
      %s294 = scalar_select %p291, %s292, %s293
      %p297 = pneg %p291
      %p298 = scmp.eq.s32.totalorder %s22, 1
      %p299 = por %p297, %p298
      %p300 = scmp.ne.s32.totalorder %s292, %s295
      %p301 = scmp.eq.s32.totalorder %s22, 0
      %p302 = por %p300, %p301
      %p303 = scmp.ne.s32.totalorder %s292, %s295
      %p304 = scmp.eq.s32.totalorder %s27, 1
      %p305 = por %p303, %p304
      %p306 = scmp.ne.s32.totalorder %s295, %s296
      %p307 = scmp.eq.s32.totalorder %s27, 0
      %p308 = por %p306, %p307
      %p309 = scmp.ne.s32.totalorder %s295, %s296
      %p310 = scmp.eq.s32.totalorder %s28, 1
      %p311 = por %p309, %p310
      %p313 = scmp.ne.s32.totalorder %s296, %s312
      %p314 = scmp.eq.s32.totalorder %s28, 0
      %p315 = por %p313, %p314
      %p316 = scmp.le.s32.totalorder 1, %s22
      %p317 = scmp.lt.s32.totalorder %s22, 3
      %p318 = pnand %p316, %p317
      %p319 = pneg %p318
      // Predicated region
      $region9: #{discriminator_forward.1} parent=5 // pred_check
        _
      $region10: #{discriminator_forward.1} parent=5 // pred_check_branch
        %321 = sbr.rel (%p318) target = $region12
      $region11: #{discriminator_forward.1} parent=5 // pred_region
        %s322 = ssub.s32 %s22, 1
      $region12: #{discriminator_forward.1} parent=5 // pred_fallthru
        _
      %p323 = scmp.lt.s32.totalorder %s22, 2
      // Predicated region
      $region13: #{discriminator_forward.1} parent=5 // pred_check
        %p324 = pneg %p323
      $region14: #{discriminator_forward.1} parent=5 // pred_check_branch
        %326 = sbr.rel (%p324) target = $region16
      $region15: #{discriminator_forward.1} parent=5 // pred_region
        // Predicated region
        $region17: #{discriminator_forward.1} parent=15 // pred_check
          %p327 = pneg %p42
        $region18: #{discriminator_forward.1} parent=15 // pred_check_branch
          %329 = sbr.rel (%p327) target = $region20
        $region19: #{discriminator_forward.1} parent=15 // pred_region
          %p330 = scmp.lt.s32.totalorder %s22, 1
          %s331 = scalar_select %p330, %s22, 1
          %s332 = smul.addr %s331, 8
          %s333 = scalar_lea.vmem %s0, %s332
        $region20: #{discriminator_forward.1} parent=15 // pred_fallthru
          _
        // Predicated region
        $region21: #{discriminator_forward.1} parent=15 // pred_check
          %p334 = pneg %p68
        $region22: #{discriminator_forward.1} parent=15 // pred_check_branch
          %336 = sbr.rel (%p334) target = $region24
        $region23: #{discriminator_forward.1} parent=15 // pred_region
          %s337 = sand.u32 %s58, 1
          %s338 = scalar_lea.sflag [#allocation3], %s337
          %s339 = sand.u32 %s58, 1
          %s340 = smul.addr %s339, 1024
          %s341 = scalar_lea.vmem [#allocation2], %s340
          %343 = vsyncadd %s338, 0
          %s344 = smul.addr %s22, 128
          %s345 = smul.addr %s344, 8
          %s346 = scalar_lea.hbm %s1, %s345
          %s347 = sshll.u32 %s346, 4
          %s348 = int_to_ptr.hbm [resolvable:$true] %s347
          %s349 = sshll.u32 %s341, 4
          %s350 = int_to_ptr.vmem [resolvable:$true] %s349
          %355 = dma.hbm_to_vmem [thread:$0]  %s348, 16384, %s350, %s338, 512, 512, 32
        $region24: #{discriminator_forward.1} parent=15 // pred_fallthru
          _
        // Predicated region
        $region25: #{discriminator_forward.1} parent=15 // pred_check
          %p356 = pneg %p94
        $region26: #{discriminator_forward.1} parent=15 // pred_check_branch
          %358 = sbr.rel (%p356) target = $region28
        $region27: #{discriminator_forward.1} parent=15 // pred_region
          %p359 = scmp.lt.s32.totalorder %s22, 1
          %s360 = scalar_select %p359, %s22, 1
          %s361 = scalar_lea.vmem %s2, %s360
        $region28: #{discriminator_forward.1} parent=15 // pred_fallthru
          _
        // Predicated region
        $region29: #{discriminator_forward.1} parent=15 // pred_check
          %p362 = pneg %p120
        $region30: #{discriminator_forward.1} parent=15 // pred_check_branch
          %364 = sbr.rel (%p362) target = $region32
        $region31: #{discriminator_forward.1} parent=15 // pred_region
          %p365 = scmp.lt.s32.totalorder %s22, 1
          %s366 = scalar_select %p365, %s22, 1
          %s367 = smul.addr %s366, 4
          %s368 = scalar_lea.vmem %s3, %s367
        $region32: #{discriminator_forward.1} parent=15 // pred_fallthru
          _
        // Predicated region
        $region33: #{discriminator_forward.1} parent=15 // pred_check
          %p369 = pneg %p146
        $region34: #{discriminator_forward.1} parent=15 // pred_check_branch
          %371 = sbr.rel (%p369) target = $region36
        $region35: #{discriminator_forward.1} parent=15 // pred_region
          %s372 = sand.u32 %s136, 1
          %s373 = scalar_lea.sflag [#allocation5], %s372
          %s374 = sand.u32 %s136, 1
          %s375 = smul.addr %s374, 256
          %s376 = scalar_lea.vmem [#allocation4], %s375
          %378 = vsyncadd %s373, 0
          %s379 = smul.addr %s22, 32
          %s380 = smul.addr %s379, 8
          %s381 = scalar_lea.hbm %s4, %s380
          %s382 = sshll.u32 %s381, 4
          %s383 = int_to_ptr.hbm [resolvable:$true] %s382
          %s384 = sshll.u32 %s376, 4
          %s385 = int_to_ptr.vmem [resolvable:$true] %s384
          %390 = dma.hbm_to_vmem [thread:$0]  %s383, 4096, %s385, %s373, 256, 256, 16
        $region36: #{discriminator_forward.1} parent=15 // pred_fallthru
          _
        // Predicated region
        $region37: #{discriminator_forward.1} parent=15 // pred_check
          %p391 = pneg %p172
        $region38: #{discriminator_forward.1} parent=15 // pred_check_branch
          %393 = sbr.rel (%p391) target = $region40
        $region39: #{discriminator_forward.1} parent=15 // pred_region
          %p394 = scmp.lt.s32.totalorder %s22, 1
          %s395 = scalar_select %p394, %s22, 1
          %s396 = scalar_lea.vmem %s5, %s395
        $region40: #{discriminator_forward.1} parent=15 // pred_fallthru
          _
        // Predicated region
        $region41: #{discriminator_forward.1} parent=15 // pred_check
          %p397 = pneg %p198
        $region42: #{discriminator_forward.1} parent=15 // pred_check_branch
          %399 = sbr.rel (%p397) target = $region44
        $region43: #{discriminator_forward.1} parent=15 // pred_region
          %p400 = scmp.lt.s32.totalorder %s22, 1
          %s401 = scalar_select %p400, %s22, 1
          %s402 = smul.addr %s401, 2
          %s403 = scalar_lea.vmem %s6, %s402
        $region44: #{discriminator_forward.1} parent=15 // pred_fallthru
          _
        // Predicated region
        $region45: #{discriminator_forward.1} parent=15 // pred_check
          %p404 = pneg %p224
        $region46: #{discriminator_forward.1} parent=15 // pred_check_branch
          %406 = sbr.rel (%p404) target = $region48
        $region47: #{discriminator_forward.1} parent=15 // pred_region
          %p407 = scmp.lt.s32.totalorder %s22, 1
          %s408 = scalar_select %p407, %s22, 1
          %s409 = smul.addr %s408, 32
          %s410 = smul.addr %s409, 4
          %s411 = scalar_lea.vmem %s7, %s410
        $region48: #{discriminator_forward.1} parent=15 // pred_fallthru
          _
        // Predicated region
        $region49: #{discriminator_forward.1} parent=15 // pred_check
          %p412 = pneg %p250
        $region50: #{discriminator_forward.1} parent=15 // pred_check_branch
          %414 = sbr.rel (%p412) target = $region52
        $region51: #{discriminator_forward.1} parent=15 // pred_region
          %p415 = scmp.lt.s32.totalorder %s22, 1
          %s416 = scalar_select %p415, %s22, 1
          %s417 = scalar_lea.vmem %s8, %s416
        $region52: #{discriminator_forward.1} parent=15 // pred_fallthru
          _
        // Predicated region
        $region53: #{discriminator_forward.1} parent=15 // pred_check
          %p418 = pneg %p276
        $region54: #{discriminator_forward.1} parent=15 // pred_check_branch
          %420 = sbr.rel (%p418) target = $region56
        $region55: #{discriminator_forward.1} parent=15 // pred_region
          %p421 = scmp.lt.s32.totalorder %s22, 1
          %s422 = scalar_select %p421, %s22, 1
          %s423 = scalar_lea.vmem %s9, %s422
        $region56: #{discriminator_forward.1} parent=15 // pred_fallthru
          _
      $region16: #{discriminator_forward.1} parent=5 // pred_fallthru
        _
      %p424 = scmp.le.s32.totalorder 1, %s22
      %p425 = scmp.lt.s32.totalorder %s22, 3
      %p426 = pnand %p424, %p425
      %p427 = pneg %p426
      // Predicated region
      $region57: #{discriminator_forward.1} parent=5 // pred_check
        _
      $region58: #{discriminator_forward.1} parent=5 // pred_check_branch
        %429 = sbr.rel (%p426) target = $region60
      $region59: #{discriminator_forward.1} parent=5 // pred_region
        %s430 = ssub.s32 %s22, 1
        %s431 = sand.u32 %s61, 1
        %s432 = scalar_lea.sflag [#allocation3], %s431
        %s433 = sand.u32 %s61, 1
        %s434 = smul.addr %s433, 1024
        %s435 = scalar_lea.vmem [#allocation2], %s434
        // Predicated region
        $region61: #{discriminator_forward.1} parent=59 // pred_check
          %p436 = pneg %p74
        $region62: #{discriminator_forward.1} parent=59 // pred_check_branch
          %438 = sbr.rel (%p436) target = $region64
        $region63: #{discriminator_forward.1} parent=59 // pred_region
          %440 = dma.done %s432, 16384
        $region64: #{discriminator_forward.1} parent=59 // pred_fallthru
          _
        %s441 = sand.u32 %s139, 1
        %s442 = scalar_lea.sflag [#allocation5], %s441
        %s443 = sand.u32 %s139, 1
        %s444 = smul.addr %s443, 256
        %s445 = scalar_lea.vmem [#allocation4], %s444
        // Predicated region
        $region65: #{discriminator_forward.1} parent=59 // pred_check
          %p446 = pneg %p152
        $region66: #{discriminator_forward.1} parent=59 // pred_check_branch
          %448 = sbr.rel (%p446) target = $region68
        $region67: #{discriminator_forward.1} parent=59 // pred_region
          %450 = dma.done %s442, 4096
        $region68: #{discriminator_forward.1} parent=59 // pred_fallthru
          _
        %p451 = scmp.lt.s32.totalorder %s27, 1
        %s452 = scalar_select %p451, %s27, 1
        %s453 = smul.addr %s452, 8
        %s454 = scalar_lea.vmem %s0, %s453
        %p455 = pneg %p48
        %p456 = pneg %p45
        %s457 = sand.u32 %s61, 1
        %s458 = scalar_lea.sflag [#allocation3], %s457
        %s459 = sand.u32 %s61, 1
        %s460 = smul.addr %s459, 1024
        %s461 = scalar_lea.vmem [#allocation2], %s460
        %p462 = pneg %p74
        %p463 = pneg %p71
        %p464 = scmp.lt.s32.totalorder %s27, 1
        %s465 = scalar_select %p464, %s27, 1
        %s466 = scalar_lea.vmem %s2, %s465
        %p467 = pneg %p100
        %p468 = pneg %p97
        %p469 = scmp.lt.s32.totalorder %s27, 1
        %s470 = scalar_select %p469, %s27, 1
        %s471 = smul.addr %s470, 4
        %s472 = scalar_lea.vmem %s3, %s471
        %p473 = pneg %p126
        %p474 = pneg %p123
        %s475 = sand.u32 %s139, 1
        %s476 = scalar_lea.sflag [#allocation5], %s475
        %s477 = sand.u32 %s139, 1
        %s478 = smul.addr %s477, 256
        %s479 = scalar_lea.vmem [#allocation4], %s478
        %p480 = pneg %p152
        %p481 = pneg %p149
        %p482 = scmp.lt.s32.totalorder %s27, 1
        %s483 = scalar_select %p482, %s27, 1
        %s484 = scalar_lea.vmem %s5, %s483
        %p485 = pneg %p178
        %p486 = pneg %p175
        %p487 = scmp.lt.s32.totalorder %s27, 1
        %s488 = scalar_select %p487, %s27, 1
        %s489 = smul.addr %s488, 2
        %s490 = scalar_lea.vmem %s6, %s489
        %p491 = pneg %p204
        %p492 = pneg %p201
        %p493 = scmp.lt.s32.totalorder %s27, 1
        %s494 = scalar_select %p493, %s27, 1
        %s495 = smul.addr %s494, 32
        %s496 = smul.addr %s495, 4
        %s497 = scalar_lea.vmem %s7, %s496
        %p498 = pneg %p230
        %p499 = pneg %p227
        %p500 = scmp.lt.s32.totalorder %s27, 1
        %s501 = scalar_select %p500, %s27, 1
        %s502 = scalar_lea.vmem %s8, %s501
        %p503 = pneg %p256
        %p504 = pneg %p253
        %p505 = scmp.lt.s32.totalorder %s27, 1
        %s506 = scalar_select %p505, %s27, 1
        %s507 = scalar_lea.vmem %s9, %s506
        %p508 = pneg %p282
        %p509 = pneg %p279
        %p510 = pneg %p308
        %p511 = pneg %p305
        %p512 = scmp.lt.s32.totalorder %s27, 1
        %s513 = scalar_select %p512, %s27, 1
        %s514 = smul.addr %s513, 2
        %s515 = scalar_lea.vmem %s10, %s514
        %p516 = scmp.lt.s32.totalorder %s27, 1
        %s517 = scalar_select %p516, %s27, 1
        %s518 = smul.addr %s517, 8
        %s519 = scalar_lea.vmem %s0, %s518
        %p520 = scmp.lt.s32.totalorder %s27, 1
        %s521 = scalar_select %p520, %s27, 1
        %s522 = scalar_lea.vmem %s2, %s521
        %p523 = scmp.lt.s32.totalorder %s27, 1
        %s524 = scalar_select %p523, %s27, 1
        %s525 = smul.addr %s524, 4
        %s526 = scalar_lea.vmem %s3, %s525
        %p527 = scmp.lt.s32.totalorder %s27, 1
        %s528 = scalar_select %p527, %s27, 1
        %s529 = scalar_lea.vmem %s5, %s528
        %p530 = scmp.lt.s32.totalorder %s27, 1
        %s531 = scalar_select %p530, %s27, 1
        %s532 = smul.addr %s531, 2
        %s533 = scalar_lea.vmem %s6, %s532
        %p534 = scmp.lt.s32.totalorder %s27, 1
        %s535 = scalar_select %p534, %s27, 1
        %s536 = smul.addr %s535, 32
        %s537 = smul.addr %s536, 4
        %s538 = scalar_lea.vmem %s7, %s537
        %p539 = scmp.lt.s32.totalorder %s27, 1
        %s540 = scalar_select %p539, %s27, 1
        %s541 = scalar_lea.vmem %s8, %s540
        %p542 = scmp.lt.s32.totalorder %s27, 1
        %s543 = scalar_select %p542, %s27, 1
        %s544 = scalar_lea.vmem %s9, %s543
        %p545 = scmp.lt.s32.totalorder %s27, 1
        %s546 = scalar_select %p545, %s27, 1
        %s547 = smul.addr %s546, 2
        %s548 = scalar_lea.vmem %s10, %s547
        %v549 = vld [vmem:[%s519] sm:$0xff]
        %v550 = vld [vmem:[%s435] sm:$0xff]
        %v551 = vld [vmem:[%s435 + $0x8] sm:$0xff]
        %v552 = vld [vmem:[%s435 + $0x10] sm:$0xff]
        %v553 = vld [vmem:[%s435 + $0x18] sm:$0xff]
        %v554 = vld [vmem:[%s435 + $0x20] sm:$0xff]
        %v555 = vld [vmem:[%s435 + $0x28] sm:$0xff]
        %v556 = vld [vmem:[%s435 + $0x30] sm:$0xff]
        %v557 = vld [vmem:[%s435 + $0x38] sm:$0xff]
        %v558 = vld [vmem:[%s435 + $0x40] sm:$0xff]
        %v559 = vld [vmem:[%s435 + $0x48] sm:$0xff]
        %v560 = vld [vmem:[%s435 + $0x50] sm:$0xff]
        %v561 = vld [vmem:[%s435 + $0x58] sm:$0xff]
        %v562 = vld [vmem:[%s435 + $0x60] sm:$0xff]
        %v563 = vld [vmem:[%s435 + $0x68] sm:$0xff]
        %v564 = vld [vmem:[%s435 + $0x70] sm:$0xff]
        %v565 = vld [vmem:[%s435 + $0x78] sm:$0xff]
        %v566 = vld [vmem:[%s435 + $0x80] sm:$0xff]
        %v567 = vld [vmem:[%s435 + $0x88] sm:$0xff]
        %v568 = vld [vmem:[%s435 + $0x90] sm:$0xff]
        %v569 = vld [vmem:[%s435 + $0x98] sm:$0xff]
        %v570 = vld [vmem:[%s435 + $0xa0] sm:$0xff]
        %v571 = vld [vmem:[%s435 + $0xa8] sm:$0xff]
        %v572 = vld [vmem:[%s435 + $0xb0] sm:$0xff]
        %v573 = vld [vmem:[%s435 + $0xb8] sm:$0xff]
        %v574 = vld [vmem:[%s435 + $0xc0] sm:$0xff]
        %v575 = vld [vmem:[%s435 + $0xc8] sm:$0xff]
        %v576 = vld [vmem:[%s435 + $0xd0] sm:$0xff]
        %v577 = vld [vmem:[%s435 + $0xd8] sm:$0xff]
        %v578 = vld [vmem:[%s435 + $0xe0] sm:$0xff]
        %v579 = vld [vmem:[%s435 + $0xe8] sm:$0xff]
        %v580 = vld [vmem:[%s435 + $0xf0] sm:$0xff]
        %v581 = vld [vmem:[%s435 + $0xf8] sm:$0xff]
        %v582 = vld [vmem:[%s435 + $0x100] sm:$0xff]
        %v583 = vld [vmem:[%s435 + $0x108] sm:$0xff]
        %v584 = vld [vmem:[%s435 + $0x110] sm:$0xff]
        %v585 = vld [vmem:[%s435 + $0x118] sm:$0xff]
        %v586 = vld [vmem:[%s435 + $0x120] sm:$0xff]
        %v587 = vld [vmem:[%s435 + $0x128] sm:$0xff]
        %v588 = vld [vmem:[%s435 + $0x130] sm:$0xff]
        %v589 = vld [vmem:[%s435 + $0x138] sm:$0xff]
        %v590 = vld [vmem:[%s435 + $0x140] sm:$0xff]
        %v591 = vld [vmem:[%s435 + $0x148] sm:$0xff]
        %v592 = vld [vmem:[%s435 + $0x150] sm:$0xff]
        %v593 = vld [vmem:[%s435 + $0x158] sm:$0xff]
        %v594 = vld [vmem:[%s435 + $0x160] sm:$0xff]
        %v595 = vld [vmem:[%s435 + $0x168] sm:$0xff]
        %v596 = vld [vmem:[%s435 + $0x170] sm:$0xff]
        %v597 = vld [vmem:[%s435 + $0x178] sm:$0xff]
        %v598 = vld [vmem:[%s435 + $0x180] sm:$0xff]
        %v599 = vld [vmem:[%s435 + $0x188] sm:$0xff]
        %v600 = vld [vmem:[%s435 + $0x190] sm:$0xff]
        %v601 = vld [vmem:[%s435 + $0x198] sm:$0xff]
        %v602 = vld [vmem:[%s435 + $0x1a0] sm:$0xff]
        %v603 = vld [vmem:[%s435 + $0x1a8] sm:$0xff]
        %v604 = vld [vmem:[%s435 + $0x1b0] sm:$0xff]
        %v605 = vld [vmem:[%s435 + $0x1b8] sm:$0xff]
        %v606 = vld [vmem:[%s435 + $0x1c0] sm:$0xff]
        %v607 = vld [vmem:[%s435 + $0x1c8] sm:$0xff]
        %v608 = vld [vmem:[%s435 + $0x1d0] sm:$0xff]
        %v609 = vld [vmem:[%s435 + $0x1d8] sm:$0xff]
        %v610 = vld [vmem:[%s435 + $0x1e0] sm:$0xff]
        %v611 = vld [vmem:[%s435 + $0x1e8] sm:$0xff]
        %v612 = vld [vmem:[%s435 + $0x1f0] sm:$0xff]
        %v613 = vld [vmem:[%s435 + $0x1f8] sm:$0xff]
        %v614 = vld [vmem:[%s435 + $0x200] sm:$0xff]
        %v615 = vld [vmem:[%s435 + $0x208] sm:$0xff]
        %v616 = vld [vmem:[%s435 + $0x210] sm:$0xff]
        %v617 = vld [vmem:[%s435 + $0x218] sm:$0xff]
        %v618 = vld [vmem:[%s435 + $0x220] sm:$0xff]
        %v619 = vld [vmem:[%s435 + $0x228] sm:$0xff]
        %v620 = vld [vmem:[%s435 + $0x230] sm:$0xff]
        %v621 = vld [vmem:[%s435 + $0x238] sm:$0xff]
        %v622 = vld [vmem:[%s435 + $0x240] sm:$0xff]
        %v623 = vld [vmem:[%s435 + $0x248] sm:$0xff]
        %v624 = vld [vmem:[%s435 + $0x250] sm:$0xff]
        %v625 = vld [vmem:[%s435 + $0x258] sm:$0xff]
        %v626 = vld [vmem:[%s435 + $0x260] sm:$0xff]
        %v627 = vld [vmem:[%s435 + $0x268] sm:$0xff]
        %v628 = vld [vmem:[%s435 + $0x270] sm:$0xff]
        %v629 = vld [vmem:[%s435 + $0x278] sm:$0xff]
        %v630 = vld [vmem:[%s435 + $0x280] sm:$0xff]
        %v631 = vld [vmem:[%s435 + $0x288] sm:$0xff]
        %v632 = vld [vmem:[%s435 + $0x290] sm:$0xff]
        %v633 = vld [vmem:[%s435 + $0x298] sm:$0xff]
        %v634 = vld [vmem:[%s435 + $0x2a0] sm:$0xff]
        %v635 = vld [vmem:[%s435 + $0x2a8] sm:$0xff]
        %v636 = vld [vmem:[%s435 + $0x2b0] sm:$0xff]
        %v637 = vld [vmem:[%s435 + $0x2b8] sm:$0xff]
        %v638 = vld [vmem:[%s435 + $0x2c0] sm:$0xff]
        %v639 = vld [vmem:[%s435 + $0x2c8] sm:$0xff]
        %v640 = vld [vmem:[%s435 + $0x2d0] sm:$0xff]
        %v641 = vld [vmem:[%s435 + $0x2d8] sm:$0xff]
        %v642 = vld [vmem:[%s435 + $0x2e0] sm:$0xff]
        %v643 = vld [vmem:[%s435 + $0x2e8] sm:$0xff]
        %v644 = vld [vmem:[%s435 + $0x2f0] sm:$0xff]
        %v645 = vld [vmem:[%s435 + $0x2f8] sm:$0xff]
        %v646 = vld [vmem:[%s435 + $0x300] sm:$0xff]
        %v647 = vld [vmem:[%s435 + $0x308] sm:$0xff]
        %v648 = vld [vmem:[%s435 + $0x310] sm:$0xff]
        %v649 = vld [vmem:[%s435 + $0x318] sm:$0xff]
        %v650 = vld [vmem:[%s435 + $0x320] sm:$0xff]
        %v651 = vld [vmem:[%s435 + $0x328] sm:$0xff]
        %v652 = vld [vmem:[%s435 + $0x330] sm:$0xff]
        %v653 = vld [vmem:[%s435 + $0x338] sm:$0xff]
        %v654 = vld [vmem:[%s435 + $0x340] sm:$0xff]
        %v655 = vld [vmem:[%s435 + $0x348] sm:$0xff]
        %v656 = vld [vmem:[%s435 + $0x350] sm:$0xff]
        %v657 = vld [vmem:[%s435 + $0x358] sm:$0xff]
        %v658 = vld [vmem:[%s435 + $0x360] sm:$0xff]
        %v659 = vld [vmem:[%s435 + $0x368] sm:$0xff]
        %v660 = vld [vmem:[%s435 + $0x370] sm:$0xff]
        %v661 = vld [vmem:[%s435 + $0x378] sm:$0xff]
        %v662 = vld [vmem:[%s435 + $0x380] sm:$0xff]
        %v663 = vld [vmem:[%s435 + $0x388] sm:$0xff]
        %v664 = vld [vmem:[%s435 + $0x390] sm:$0xff]
        %v665 = vld [vmem:[%s435 + $0x398] sm:$0xff]
        %v666 = vld [vmem:[%s435 + $0x3a0] sm:$0xff]
        %v667 = vld [vmem:[%s435 + $0x3a8] sm:$0xff]
        %v668 = vld [vmem:[%s435 + $0x3b0] sm:$0xff]
        %v669 = vld [vmem:[%s435 + $0x3b8] sm:$0xff]
        %v670 = vld [vmem:[%s435 + $0x3c0] sm:$0xff]
        %v671 = vld [vmem:[%s435 + $0x3c8] sm:$0xff]
        %v672 = vld [vmem:[%s435 + $0x3d0] sm:$0xff]
        %v673 = vld [vmem:[%s435 + $0x3d8] sm:$0xff]
        %v674 = vld [vmem:[%s435 + $0x3e0] sm:$0xff]
        %v675 = vld [vmem:[%s435 + $0x3e8] sm:$0xff]
        %v676 = vld [vmem:[%s435 + $0x3f0] sm:$0xff]
        %v677 = vld [vmem:[%s435 + $0x3f8] sm:$0xff]
        %v678 = vunpack.c.0.s8 %v550
        %v679 = vunpack.c.0.s8 %v551
        %v680 = vunpack.c.0.s8 %v552
        %v681 = vunpack.c.0.s8 %v553
        %v682 = vunpack.c.1.s8 %v550
        %v683 = vunpack.c.1.s8 %v551
        %v684 = vunpack.c.1.s8 %v552
        %v685 = vunpack.c.1.s8 %v553
        %v686 = vunpack.c.2.s8 %v550
        %v687 = vunpack.c.2.s8 %v551
        %v688 = vunpack.c.2.s8 %v552
        %v689 = vunpack.c.2.s8 %v553
        %v690 = vunpack.c.3.s8 %v550
        %v691 = vunpack.c.3.s8 %v551
        %v692 = vunpack.c.3.s8 %v552
        %v693 = vunpack.c.3.s8 %v553
        %v694 = vunpack.c.0.s8 %v554
        %v695 = vunpack.c.0.s8 %v555
        %v696 = vunpack.c.0.s8 %v556
        %v697 = vunpack.c.0.s8 %v557
        %v698 = vunpack.c.1.s8 %v554
        %v699 = vunpack.c.1.s8 %v555
        %v700 = vunpack.c.1.s8 %v556
        %v701 = vunpack.c.1.s8 %v557
        %v702 = vunpack.c.2.s8 %v554
        %v703 = vunpack.c.2.s8 %v555
        %v704 = vunpack.c.2.s8 %v556
        %v705 = vunpack.c.2.s8 %v557
        %v706 = vunpack.c.3.s8 %v554
        %v707 = vunpack.c.3.s8 %v555
        %v708 = vunpack.c.3.s8 %v556
        %v709 = vunpack.c.3.s8 %v557
        %v710 = vunpack.c.0.s8 %v558
        %v711 = vunpack.c.0.s8 %v559
        %v712 = vunpack.c.0.s8 %v560
        %v713 = vunpack.c.0.s8 %v561
        %v714 = vunpack.c.1.s8 %v558
        %v715 = vunpack.c.1.s8 %v559
        %v716 = vunpack.c.1.s8 %v560
        %v717 = vunpack.c.1.s8 %v561
        %v718 = vunpack.c.2.s8 %v558
        %v719 = vunpack.c.2.s8 %v559
        %v720 = vunpack.c.2.s8 %v560
        %v721 = vunpack.c.2.s8 %v561
        %v722 = vunpack.c.3.s8 %v558
        %v723 = vunpack.c.3.s8 %v559
        %v724 = vunpack.c.3.s8 %v560
        %v725 = vunpack.c.3.s8 %v561
        %v726 = vunpack.c.0.s8 %v562
        %v727 = vunpack.c.0.s8 %v563
        %v728 = vunpack.c.0.s8 %v564
        %v729 = vunpack.c.0.s8 %v565
        %v730 = vunpack.c.1.s8 %v562
        %v731 = vunpack.c.1.s8 %v563
        %v732 = vunpack.c.1.s8 %v564
        %v733 = vunpack.c.1.s8 %v565
        %v734 = vunpack.c.2.s8 %v562
        %v735 = vunpack.c.2.s8 %v563
        %v736 = vunpack.c.2.s8 %v564
        %v737 = vunpack.c.2.s8 %v565
        %v738 = vunpack.c.3.s8 %v562
        %v739 = vunpack.c.3.s8 %v563
        %v740 = vunpack.c.3.s8 %v564
        %v741 = vunpack.c.3.s8 %v565
        %v742 = vunpack.c.0.s8 %v566
        %v743 = vunpack.c.0.s8 %v567
        %v744 = vunpack.c.0.s8 %v568
        %v745 = vunpack.c.0.s8 %v569
        %v746 = vunpack.c.1.s8 %v566
        %v747 = vunpack.c.1.s8 %v567
        %v748 = vunpack.c.1.s8 %v568
        %v749 = vunpack.c.1.s8 %v569
        %v750 = vunpack.c.2.s8 %v566
        %v751 = vunpack.c.2.s8 %v567
        %v752 = vunpack.c.2.s8 %v568
        %v753 = vunpack.c.2.s8 %v569
        %v754 = vunpack.c.3.s8 %v566
        %v755 = vunpack.c.3.s8 %v567
        %v756 = vunpack.c.3.s8 %v568
        %v757 = vunpack.c.3.s8 %v569
        %v758 = vunpack.c.0.s8 %v570
        %v759 = vunpack.c.0.s8 %v571
        %v760 = vunpack.c.0.s8 %v572
        %v761 = vunpack.c.0.s8 %v573
        %v762 = vunpack.c.1.s8 %v570
        %v763 = vunpack.c.1.s8 %v571
        %v764 = vunpack.c.1.s8 %v572
        %v765 = vunpack.c.1.s8 %v573
        %v766 = vunpack.c.2.s8 %v570
        %v767 = vunpack.c.2.s8 %v571
        %v768 = vunpack.c.2.s8 %v572
        %v769 = vunpack.c.2.s8 %v573
        %v770 = vunpack.c.3.s8 %v570
        %v771 = vunpack.c.3.s8 %v571
        %v772 = vunpack.c.3.s8 %v572
        %v773 = vunpack.c.3.s8 %v573
        %v774 = vunpack.c.0.s8 %v574
        %v775 = vunpack.c.0.s8 %v575
        %v776 = vunpack.c.0.s8 %v576
        %v777 = vunpack.c.0.s8 %v577
        %v778 = vunpack.c.1.s8 %v574
        %v779 = vunpack.c.1.s8 %v575
        %v780 = vunpack.c.1.s8 %v576
        %v781 = vunpack.c.1.s8 %v577
        %v782 = vunpack.c.2.s8 %v574
        %v783 = vunpack.c.2.s8 %v575
        %v784 = vunpack.c.2.s8 %v576
        %v785 = vunpack.c.2.s8 %v577
        %v786 = vunpack.c.3.s8 %v574
        %v787 = vunpack.c.3.s8 %v575
        %v788 = vunpack.c.3.s8 %v576
        %v789 = vunpack.c.3.s8 %v577
        %v790 = vunpack.c.0.s8 %v578
        %v791 = vunpack.c.0.s8 %v579
        %v792 = vunpack.c.0.s8 %v580
        %v793 = vunpack.c.0.s8 %v581
        %v794 = vunpack.c.1.s8 %v578
        %v795 = vunpack.c.1.s8 %v579
        %v796 = vunpack.c.1.s8 %v580
        %v797 = vunpack.c.1.s8 %v581
        %v798 = vunpack.c.2.s8 %v578
        %v799 = vunpack.c.2.s8 %v579
        %v800 = vunpack.c.2.s8 %v580
        %v801 = vunpack.c.2.s8 %v581
        %v802 = vunpack.c.3.s8 %v578
        %v803 = vunpack.c.3.s8 %v579
        %v804 = vunpack.c.3.s8 %v580
        %v805 = vunpack.c.3.s8 %v581
        %v806 = vunpack.c.0.s8 %v582
        %v807 = vunpack.c.0.s8 %v583
        %v808 = vunpack.c.0.s8 %v584
        %v809 = vunpack.c.0.s8 %v585
        %v810 = vunpack.c.1.s8 %v582
        %v811 = vunpack.c.1.s8 %v583
        %v812 = vunpack.c.1.s8 %v584
        %v813 = vunpack.c.1.s8 %v585
        %v814 = vunpack.c.2.s8 %v582
        %v815 = vunpack.c.2.s8 %v583
        %v816 = vunpack.c.2.s8 %v584
        %v817 = vunpack.c.2.s8 %v585
        %v818 = vunpack.c.3.s8 %v582
        %v819 = vunpack.c.3.s8 %v583
        %v820 = vunpack.c.3.s8 %v584
        %v821 = vunpack.c.3.s8 %v585
        %v822 = vunpack.c.0.s8 %v586
        %v823 = vunpack.c.0.s8 %v587
        %v824 = vunpack.c.0.s8 %v588
        %v825 = vunpack.c.0.s8 %v589
        %v826 = vunpack.c.1.s8 %v586
        %v827 = vunpack.c.1.s8 %v587
        %v828 = vunpack.c.1.s8 %v588
        %v829 = vunpack.c.1.s8 %v589
        %v830 = vunpack.c.2.s8 %v586
        %v831 = vunpack.c.2.s8 %v587
        %v832 = vunpack.c.2.s8 %v588
        %v833 = vunpack.c.2.s8 %v589
        %v834 = vunpack.c.3.s8 %v586
        %v835 = vunpack.c.3.s8 %v587
        %v836 = vunpack.c.3.s8 %v588
        %v837 = vunpack.c.3.s8 %v589
        %v838 = vunpack.c.0.s8 %v590
        %v839 = vunpack.c.0.s8 %v591
        %v840 = vunpack.c.0.s8 %v592
        %v841 = vunpack.c.0.s8 %v593
        %v842 = vunpack.c.1.s8 %v590
        %v843 = vunpack.c.1.s8 %v591
        %v844 = vunpack.c.1.s8 %v592
        %v845 = vunpack.c.1.s8 %v593
        %v846 = vunpack.c.2.s8 %v590
        %v847 = vunpack.c.2.s8 %v591
        %v848 = vunpack.c.2.s8 %v592
        %v849 = vunpack.c.2.s8 %v593
        %v850 = vunpack.c.3.s8 %v590
        %v851 = vunpack.c.3.s8 %v591
        %v852 = vunpack.c.3.s8 %v592
        %v853 = vunpack.c.3.s8 %v593
        %v854 = vunpack.c.0.s8 %v594
        %v855 = vunpack.c.0.s8 %v595
        %v856 = vunpack.c.0.s8 %v596
        %v857 = vunpack.c.0.s8 %v597
        %v858 = vunpack.c.1.s8 %v594
        %v859 = vunpack.c.1.s8 %v595
        %v860 = vunpack.c.1.s8 %v596
        %v861 = vunpack.c.1.s8 %v597
        %v862 = vunpack.c.2.s8 %v594
        %v863 = vunpack.c.2.s8 %v595
        %v864 = vunpack.c.2.s8 %v596
        %v865 = vunpack.c.2.s8 %v597
        %v866 = vunpack.c.3.s8 %v594
        %v867 = vunpack.c.3.s8 %v595
        %v868 = vunpack.c.3.s8 %v596
        %v869 = vunpack.c.3.s8 %v597
        %v870 = vunpack.c.0.s8 %v598
        %v871 = vunpack.c.0.s8 %v599
        %v872 = vunpack.c.0.s8 %v600
        %v873 = vunpack.c.0.s8 %v601
        %v874 = vunpack.c.1.s8 %v598
        %v875 = vunpack.c.1.s8 %v599
        %v876 = vunpack.c.1.s8 %v600
        %v877 = vunpack.c.1.s8 %v601
        %v878 = vunpack.c.2.s8 %v598
        %v879 = vunpack.c.2.s8 %v599
        %v880 = vunpack.c.2.s8 %v600
        %v881 = vunpack.c.2.s8 %v601
        %v882 = vunpack.c.3.s8 %v598
        %v883 = vunpack.c.3.s8 %v599
        %v884 = vunpack.c.3.s8 %v600
        %v885 = vunpack.c.3.s8 %v601
        %v886 = vunpack.c.0.s8 %v602
        %v887 = vunpack.c.0.s8 %v603
        %v888 = vunpack.c.0.s8 %v604
        %v889 = vunpack.c.0.s8 %v605
        %v890 = vunpack.c.1.s8 %v602
        %v891 = vunpack.c.1.s8 %v603
        %v892 = vunpack.c.1.s8 %v604
        %v893 = vunpack.c.1.s8 %v605
        %v894 = vunpack.c.2.s8 %v602
        %v895 = vunpack.c.2.s8 %v603
        %v896 = vunpack.c.2.s8 %v604
        %v897 = vunpack.c.2.s8 %v605
        %v898 = vunpack.c.3.s8 %v602
        %v899 = vunpack.c.3.s8 %v603
        %v900 = vunpack.c.3.s8 %v604
        %v901 = vunpack.c.3.s8 %v605
        %v902 = vunpack.c.0.s8 %v606
        %v903 = vunpack.c.0.s8 %v607
        %v904 = vunpack.c.0.s8 %v608
        %v905 = vunpack.c.0.s8 %v609
        %v906 = vunpack.c.1.s8 %v606
        %v907 = vunpack.c.1.s8 %v607
        %v908 = vunpack.c.1.s8 %v608
        %v909 = vunpack.c.1.s8 %v609
        %v910 = vunpack.c.2.s8 %v606
        %v911 = vunpack.c.2.s8 %v607
        %v912 = vunpack.c.2.s8 %v608
        %v913 = vunpack.c.2.s8 %v609
        %v914 = vunpack.c.3.s8 %v606
        %v915 = vunpack.c.3.s8 %v607
        %v916 = vunpack.c.3.s8 %v608
        %v917 = vunpack.c.3.s8 %v609
        %v918 = vunpack.c.0.s8 %v610
        %v919 = vunpack.c.0.s8 %v611
        %v920 = vunpack.c.0.s8 %v612
        %v921 = vunpack.c.0.s8 %v613
        %v922 = vunpack.c.1.s8 %v610
        %v923 = vunpack.c.1.s8 %v611
        %v924 = vunpack.c.1.s8 %v612
        %v925 = vunpack.c.1.s8 %v613
        %v926 = vunpack.c.2.s8 %v610
        %v927 = vunpack.c.2.s8 %v611
        %v928 = vunpack.c.2.s8 %v612
        %v929 = vunpack.c.2.s8 %v613
        %v930 = vunpack.c.3.s8 %v610
        %v931 = vunpack.c.3.s8 %v611
        %v932 = vunpack.c.3.s8 %v612
        %v933 = vunpack.c.3.s8 %v613
        %v934 = vunpack.c.0.s8 %v614
        %v935 = vunpack.c.0.s8 %v615
        %v936 = vunpack.c.0.s8 %v616
        %v937 = vunpack.c.0.s8 %v617
        %v938 = vunpack.c.1.s8 %v614
        %v939 = vunpack.c.1.s8 %v615
        %v940 = vunpack.c.1.s8 %v616
        %v941 = vunpack.c.1.s8 %v617
        %v942 = vunpack.c.2.s8 %v614
        %v943 = vunpack.c.2.s8 %v615
        %v944 = vunpack.c.2.s8 %v616
        %v945 = vunpack.c.2.s8 %v617
        %v946 = vunpack.c.3.s8 %v614
        %v947 = vunpack.c.3.s8 %v615
        %v948 = vunpack.c.3.s8 %v616
        %v949 = vunpack.c.3.s8 %v617
        %v950 = vunpack.c.0.s8 %v618
        %v951 = vunpack.c.0.s8 %v619
        %v952 = vunpack.c.0.s8 %v620
        %v953 = vunpack.c.0.s8 %v621
        %v954 = vunpack.c.1.s8 %v618
        %v955 = vunpack.c.1.s8 %v619
        %v956 = vunpack.c.1.s8 %v620
        %v957 = vunpack.c.1.s8 %v621
        %v958 = vunpack.c.2.s8 %v618
        %v959 = vunpack.c.2.s8 %v619
        %v960 = vunpack.c.2.s8 %v620
        %v961 = vunpack.c.2.s8 %v621
        %v962 = vunpack.c.3.s8 %v618
        %v963 = vunpack.c.3.s8 %v619
        %v964 = vunpack.c.3.s8 %v620
        %v965 = vunpack.c.3.s8 %v621
        %v966 = vunpack.c.0.s8 %v622
        %v967 = vunpack.c.0.s8 %v623
        %v968 = vunpack.c.0.s8 %v624
        %v969 = vunpack.c.0.s8 %v625
        %v970 = vunpack.c.1.s8 %v622
        %v971 = vunpack.c.1.s8 %v623
        %v972 = vunpack.c.1.s8 %v624
        %v973 = vunpack.c.1.s8 %v625
        %v974 = vunpack.c.2.s8 %v622
        %v975 = vunpack.c.2.s8 %v623
        %v976 = vunpack.c.2.s8 %v624
        %v977 = vunpack.c.2.s8 %v625
        %v978 = vunpack.c.3.s8 %v622
        %v979 = vunpack.c.3.s8 %v623
        %v980 = vunpack.c.3.s8 %v624
        %v981 = vunpack.c.3.s8 %v625
        %v982 = vunpack.c.0.s8 %v626
        %v983 = vunpack.c.0.s8 %v627
        %v984 = vunpack.c.0.s8 %v628
        %v985 = vunpack.c.0.s8 %v629
        %v986 = vunpack.c.1.s8 %v626
        %v987 = vunpack.c.1.s8 %v627
        %v988 = vunpack.c.1.s8 %v628
        %v989 = vunpack.c.1.s8 %v629
        %v990 = vunpack.c.2.s8 %v626
        %v991 = vunpack.c.2.s8 %v627
        %v992 = vunpack.c.2.s8 %v628
        %v993 = vunpack.c.2.s8 %v629
        %v994 = vunpack.c.3.s8 %v626
        %v995 = vunpack.c.3.s8 %v627
        %v996 = vunpack.c.3.s8 %v628
        %v997 = vunpack.c.3.s8 %v629
        %v998 = vunpack.c.0.s8 %v630
        %v999 = vunpack.c.0.s8 %v631
        %v1000 = vunpack.c.0.s8 %v632
        %v1001 = vunpack.c.0.s8 %v633
        %v1002 = vunpack.c.1.s8 %v630
        %v1003 = vunpack.c.1.s8 %v631
        %v1004 = vunpack.c.1.s8 %v632
        %v1005 = vunpack.c.1.s8 %v633
        %v1006 = vunpack.c.2.s8 %v630
        %v1007 = vunpack.c.2.s8 %v631
        %v1008 = vunpack.c.2.s8 %v632
        %v1009 = vunpack.c.2.s8 %v633
        %v1010 = vunpack.c.3.s8 %v630
        %v1011 = vunpack.c.3.s8 %v631
        %v1012 = vunpack.c.3.s8 %v632
        %v1013 = vunpack.c.3.s8 %v633
        %v1014 = vunpack.c.0.s8 %v634
        %v1015 = vunpack.c.0.s8 %v635
        %v1016 = vunpack.c.0.s8 %v636
        %v1017 = vunpack.c.0.s8 %v637
        %v1018 = vunpack.c.1.s8 %v634
        %v1019 = vunpack.c.1.s8 %v635
        %v1020 = vunpack.c.1.s8 %v636
        %v1021 = vunpack.c.1.s8 %v637
        %v1022 = vunpack.c.2.s8 %v634
        %v1023 = vunpack.c.2.s8 %v635
        %v1024 = vunpack.c.2.s8 %v636
        %v1025 = vunpack.c.2.s8 %v637
        %v1026 = vunpack.c.3.s8 %v634
        %v1027 = vunpack.c.3.s8 %v635
        %v1028 = vunpack.c.3.s8 %v636
        %v1029 = vunpack.c.3.s8 %v637
        %v1030 = vunpack.c.0.s8 %v638
        %v1031 = vunpack.c.0.s8 %v639
        %v1032 = vunpack.c.0.s8 %v640
        %v1033 = vunpack.c.0.s8 %v641
        %v1034 = vunpack.c.1.s8 %v638
        %v1035 = vunpack.c.1.s8 %v639
        %v1036 = vunpack.c.1.s8 %v640
        %v1037 = vunpack.c.1.s8 %v641
        %v1038 = vunpack.c.2.s8 %v638
        %v1039 = vunpack.c.2.s8 %v639
        %v1040 = vunpack.c.2.s8 %v640
        %v1041 = vunpack.c.2.s8 %v641
        %v1042 = vunpack.c.3.s8 %v638
        %v1043 = vunpack.c.3.s8 %v639
        %v1044 = vunpack.c.3.s8 %v640
        %v1045 = vunpack.c.3.s8 %v641
        %v1046 = vunpack.c.0.s8 %v642
        %v1047 = vunpack.c.0.s8 %v643
        %v1048 = vunpack.c.0.s8 %v644
        %v1049 = vunpack.c.0.s8 %v645
        %v1050 = vunpack.c.1.s8 %v642
        %v1051 = vunpack.c.1.s8 %v643
        %v1052 = vunpack.c.1.s8 %v644
        %v1053 = vunpack.c.1.s8 %v645
        %v1054 = vunpack.c.2.s8 %v642
        %v1055 = vunpack.c.2.s8 %v643
        %v1056 = vunpack.c.2.s8 %v644
        %v1057 = vunpack.c.2.s8 %v645
        %v1058 = vunpack.c.3.s8 %v642
        %v1059 = vunpack.c.3.s8 %v643
        %v1060 = vunpack.c.3.s8 %v644
        %v1061 = vunpack.c.3.s8 %v645
        %v1062 = vunpack.c.0.s8 %v646
        %v1063 = vunpack.c.0.s8 %v647
        %v1064 = vunpack.c.0.s8 %v648
        %v1065 = vunpack.c.0.s8 %v649
        %v1066 = vunpack.c.1.s8 %v646
        %v1067 = vunpack.c.1.s8 %v647
        %v1068 = vunpack.c.1.s8 %v648
        %v1069 = vunpack.c.1.s8 %v649
        %v1070 = vunpack.c.2.s8 %v646
        %v1071 = vunpack.c.2.s8 %v647
        %v1072 = vunpack.c.2.s8 %v648
        %v1073 = vunpack.c.2.s8 %v649
        %v1074 = vunpack.c.3.s8 %v646
        %v1075 = vunpack.c.3.s8 %v647
        %v1076 = vunpack.c.3.s8 %v648
        %v1077 = vunpack.c.3.s8 %v649
        %v1078 = vunpack.c.0.s8 %v650
        %v1079 = vunpack.c.0.s8 %v651
        %v1080 = vunpack.c.0.s8 %v652
        %v1081 = vunpack.c.0.s8 %v653
        %v1082 = vunpack.c.1.s8 %v650
        %v1083 = vunpack.c.1.s8 %v651
        %v1084 = vunpack.c.1.s8 %v652
        %v1085 = vunpack.c.1.s8 %v653
        %v1086 = vunpack.c.2.s8 %v650
        %v1087 = vunpack.c.2.s8 %v651
        %v1088 = vunpack.c.2.s8 %v652
        %v1089 = vunpack.c.2.s8 %v653
        %v1090 = vunpack.c.3.s8 %v650
        %v1091 = vunpack.c.3.s8 %v651
        %v1092 = vunpack.c.3.s8 %v652
        %v1093 = vunpack.c.3.s8 %v653
        %v1094 = vunpack.c.0.s8 %v654
        %v1095 = vunpack.c.0.s8 %v655
        %v1096 = vunpack.c.0.s8 %v656
        %v1097 = vunpack.c.0.s8 %v657
        %v1098 = vunpack.c.1.s8 %v654
        %v1099 = vunpack.c.1.s8 %v655
        %v1100 = vunpack.c.1.s8 %v656
        %v1101 = vunpack.c.1.s8 %v657
        %v1102 = vunpack.c.2.s8 %v654
        %v1103 = vunpack.c.2.s8 %v655
        %v1104 = vunpack.c.2.s8 %v656
        %v1105 = vunpack.c.2.s8 %v657
        %v1106 = vunpack.c.3.s8 %v654
        %v1107 = vunpack.c.3.s8 %v655
        %v1108 = vunpack.c.3.s8 %v656
        %v1109 = vunpack.c.3.s8 %v657
        %v1110 = vunpack.c.0.s8 %v658
        %v1111 = vunpack.c.0.s8 %v659
        %v1112 = vunpack.c.0.s8 %v660
        %v1113 = vunpack.c.0.s8 %v661
        %v1114 = vunpack.c.1.s8 %v658
        %v1115 = vunpack.c.1.s8 %v659
        %v1116 = vunpack.c.1.s8 %v660
        %v1117 = vunpack.c.1.s8 %v661
        %v1118 = vunpack.c.2.s8 %v658
        %v1119 = vunpack.c.2.s8 %v659
        %v1120 = vunpack.c.2.s8 %v660
        %v1121 = vunpack.c.2.s8 %v661
        %v1122 = vunpack.c.3.s8 %v658
        %v1123 = vunpack.c.3.s8 %v659
        %v1124 = vunpack.c.3.s8 %v660
        %v1125 = vunpack.c.3.s8 %v661
        %v1126 = vunpack.c.0.s8 %v662
        %v1127 = vunpack.c.0.s8 %v663
        %v1128 = vunpack.c.0.s8 %v664
        %v1129 = vunpack.c.0.s8 %v665
        %v1130 = vunpack.c.1.s8 %v662
        %v1131 = vunpack.c.1.s8 %v663
        %v1132 = vunpack.c.1.s8 %v664
        %v1133 = vunpack.c.1.s8 %v665
        %v1134 = vunpack.c.2.s8 %v662
        %v1135 = vunpack.c.2.s8 %v663
        %v1136 = vunpack.c.2.s8 %v664
        %v1137 = vunpack.c.2.s8 %v665
        %v1138 = vunpack.c.3.s8 %v662
        %v1139 = vunpack.c.3.s8 %v663
        %v1140 = vunpack.c.3.s8 %v664
        %v1141 = vunpack.c.3.s8 %v665
        %v1142 = vunpack.c.0.s8 %v666
        %v1143 = vunpack.c.0.s8 %v667
        %v1144 = vunpack.c.0.s8 %v668
        %v1145 = vunpack.c.0.s8 %v669
        %v1146 = vunpack.c.1.s8 %v666
        %v1147 = vunpack.c.1.s8 %v667
        %v1148 = vunpack.c.1.s8 %v668
        %v1149 = vunpack.c.1.s8 %v669
        %v1150 = vunpack.c.2.s8 %v666
        %v1151 = vunpack.c.2.s8 %v667
        %v1152 = vunpack.c.2.s8 %v668
        %v1153 = vunpack.c.2.s8 %v669
        %v1154 = vunpack.c.3.s8 %v666
        %v1155 = vunpack.c.3.s8 %v667
        %v1156 = vunpack.c.3.s8 %v668
        %v1157 = vunpack.c.3.s8 %v669
        %v1158 = vunpack.c.0.s8 %v670
        %v1159 = vunpack.c.0.s8 %v671
        %v1160 = vunpack.c.0.s8 %v672
        %v1161 = vunpack.c.0.s8 %v673
        %v1162 = vunpack.c.1.s8 %v670
        %v1163 = vunpack.c.1.s8 %v671
        %v1164 = vunpack.c.1.s8 %v672
        %v1165 = vunpack.c.1.s8 %v673
        %v1166 = vunpack.c.2.s8 %v670
        %v1167 = vunpack.c.2.s8 %v671
        %v1168 = vunpack.c.2.s8 %v672
        %v1169 = vunpack.c.2.s8 %v673
        %v1170 = vunpack.c.3.s8 %v670
        %v1171 = vunpack.c.3.s8 %v671
        %v1172 = vunpack.c.3.s8 %v672
        %v1173 = vunpack.c.3.s8 %v673
        %v1174 = vunpack.c.0.s8 %v674
        %v1175 = vunpack.c.0.s8 %v675
        %v1176 = vunpack.c.0.s8 %v676
        %v1177 = vunpack.c.0.s8 %v677
        %v1178 = vunpack.c.1.s8 %v674
        %v1179 = vunpack.c.1.s8 %v675
        %v1180 = vunpack.c.1.s8 %v676
        %v1181 = vunpack.c.1.s8 %v677
        %v1182 = vunpack.c.2.s8 %v674
        %v1183 = vunpack.c.2.s8 %v675
        %v1184 = vunpack.c.2.s8 %v676
        %v1185 = vunpack.c.2.s8 %v677
        %v1186 = vunpack.c.3.s8 %v674
        %v1187 = vunpack.c.3.s8 %v675
        %v1188 = vunpack.c.3.s8 %v676
        %v1189 = vunpack.c.3.s8 %v677
        %v1190 = vcvt.s32.f32 %v678
        %v1191 = vcvt.s32.f32 %v679
        %v1192 = vcvt.s32.f32 %v680
        %v1193 = vcvt.s32.f32 %v681
        %v1194 = vcvt.s32.f32 %v682
        %v1195 = vcvt.s32.f32 %v683
        %v1196 = vcvt.s32.f32 %v684
        %v1197 = vcvt.s32.f32 %v685
        %v1198 = vcvt.s32.f32 %v686
        %v1199 = vcvt.s32.f32 %v687
        %v1200 = vcvt.s32.f32 %v688
        %v1201 = vcvt.s32.f32 %v689
        %v1202 = vcvt.s32.f32 %v690
        %v1203 = vcvt.s32.f32 %v691
        %v1204 = vcvt.s32.f32 %v692
        %v1205 = vcvt.s32.f32 %v693
        %v1206 = vcvt.s32.f32 %v694
        %v1207 = vcvt.s32.f32 %v695
        %v1208 = vcvt.s32.f32 %v696
        %v1209 = vcvt.s32.f32 %v697
        %v1210 = vcvt.s32.f32 %v698
        %v1211 = vcvt.s32.f32 %v699
        %v1212 = vcvt.s32.f32 %v700
        %v1213 = vcvt.s32.f32 %v701
        %v1214 = vcvt.s32.f32 %v702
        %v1215 = vcvt.s32.f32 %v703
        %v1216 = vcvt.s32.f32 %v704
        %v1217 = vcvt.s32.f32 %v705
        %v1218 = vcvt.s32.f32 %v706
        %v1219 = vcvt.s32.f32 %v707
        %v1220 = vcvt.s32.f32 %v708
        %v1221 = vcvt.s32.f32 %v709
        %v1222 = vcvt.s32.f32 %v710
        %v1223 = vcvt.s32.f32 %v711
        %v1224 = vcvt.s32.f32 %v712
        %v1225 = vcvt.s32.f32 %v713
        %v1226 = vcvt.s32.f32 %v714
        %v1227 = vcvt.s32.f32 %v715
        %v1228 = vcvt.s32.f32 %v716
        %v1229 = vcvt.s32.f32 %v717
        %v1230 = vcvt.s32.f32 %v718
        %v1231 = vcvt.s32.f32 %v719
        %v1232 = vcvt.s32.f32 %v720
        %v1233 = vcvt.s32.f32 %v721
        %v1234 = vcvt.s32.f32 %v722
        %v1235 = vcvt.s32.f32 %v723
        %v1236 = vcvt.s32.f32 %v724
        %v1237 = vcvt.s32.f32 %v725
        %v1238 = vcvt.s32.f32 %v726
        %v1239 = vcvt.s32.f32 %v727
        %v1240 = vcvt.s32.f32 %v728
        %v1241 = vcvt.s32.f32 %v729
        %v1242 = vcvt.s32.f32 %v730
        %v1243 = vcvt.s32.f32 %v731
        %v1244 = vcvt.s32.f32 %v732
        %v1245 = vcvt.s32.f32 %v733
        %v1246 = vcvt.s32.f32 %v734
        %v1247 = vcvt.s32.f32 %v735
        %v1248 = vcvt.s32.f32 %v736
        %v1249 = vcvt.s32.f32 %v737
        %v1250 = vcvt.s32.f32 %v738
        %v1251 = vcvt.s32.f32 %v739
        %v1252 = vcvt.s32.f32 %v740
        %v1253 = vcvt.s32.f32 %v741
        %v1254 = vcvt.s32.f32 %v742
        %v1255 = vcvt.s32.f32 %v743
        %v1256 = vcvt.s32.f32 %v744
        %v1257 = vcvt.s32.f32 %v745
        %v1258 = vcvt.s32.f32 %v746
        %v1259 = vcvt.s32.f32 %v747
        %v1260 = vcvt.s32.f32 %v748
        %v1261 = vcvt.s32.f32 %v749
        %v1262 = vcvt.s32.f32 %v750
        %v1263 = vcvt.s32.f32 %v751
        %v1264 = vcvt.s32.f32 %v752
        %v1265 = vcvt.s32.f32 %v753
        %v1266 = vcvt.s32.f32 %v754
        %v1267 = vcvt.s32.f32 %v755
        %v1268 = vcvt.s32.f32 %v756
        %v1269 = vcvt.s32.f32 %v757
        %v1270 = vcvt.s32.f32 %v758
        %v1271 = vcvt.s32.f32 %v759
        %v1272 = vcvt.s32.f32 %v760
        %v1273 = vcvt.s32.f32 %v761
        %v1274 = vcvt.s32.f32 %v762
        %v1275 = vcvt.s32.f32 %v763
        %v1276 = vcvt.s32.f32 %v764
        %v1277 = vcvt.s32.f32 %v765
        %v1278 = vcvt.s32.f32 %v766
        %v1279 = vcvt.s32.f32 %v767
        %v1280 = vcvt.s32.f32 %v768
        %v1281 = vcvt.s32.f32 %v769
        %v1282 = vcvt.s32.f32 %v770
        %v1283 = vcvt.s32.f32 %v771
        %v1284 = vcvt.s32.f32 %v772
        %v1285 = vcvt.s32.f32 %v773
        %v1286 = vcvt.s32.f32 %v774
        %v1287 = vcvt.s32.f32 %v775
        %v1288 = vcvt.s32.f32 %v776
        %v1289 = vcvt.s32.f32 %v777
        %v1290 = vcvt.s32.f32 %v778
        %v1291 = vcvt.s32.f32 %v779
        %v1292 = vcvt.s32.f32 %v780
        %v1293 = vcvt.s32.f32 %v781
        %v1294 = vcvt.s32.f32 %v782
        %v1295 = vcvt.s32.f32 %v783
        %v1296 = vcvt.s32.f32 %v784
        %v1297 = vcvt.s32.f32 %v785
        %v1298 = vcvt.s32.f32 %v786
        %v1299 = vcvt.s32.f32 %v787
        %v1300 = vcvt.s32.f32 %v788
        %v1301 = vcvt.s32.f32 %v789
        %v1302 = vcvt.s32.f32 %v790
        %v1303 = vcvt.s32.f32 %v791
        %v1304 = vcvt.s32.f32 %v792
        %v1305 = vcvt.s32.f32 %v793
        %v1306 = vcvt.s32.f32 %v794
        %v1307 = vcvt.s32.f32 %v795
        %v1308 = vcvt.s32.f32 %v796
        %v1309 = vcvt.s32.f32 %v797
        %v1310 = vcvt.s32.f32 %v798
        %v1311 = vcvt.s32.f32 %v799
        %v1312 = vcvt.s32.f32 %v800
        %v1313 = vcvt.s32.f32 %v801
        %v1314 = vcvt.s32.f32 %v802
        %v1315 = vcvt.s32.f32 %v803
        %v1316 = vcvt.s32.f32 %v804
        %v1317 = vcvt.s32.f32 %v805
        %v1318 = vcvt.s32.f32 %v806
        %v1319 = vcvt.s32.f32 %v807
        %v1320 = vcvt.s32.f32 %v808
        %v1321 = vcvt.s32.f32 %v809
        %v1322 = vcvt.s32.f32 %v810
        %v1323 = vcvt.s32.f32 %v811
        %v1324 = vcvt.s32.f32 %v812
        %v1325 = vcvt.s32.f32 %v813
        %v1326 = vcvt.s32.f32 %v814
        %v1327 = vcvt.s32.f32 %v815
        %v1328 = vcvt.s32.f32 %v816
        %v1329 = vcvt.s32.f32 %v817
        %v1330 = vcvt.s32.f32 %v818
        %v1331 = vcvt.s32.f32 %v819
        %v1332 = vcvt.s32.f32 %v820
        %v1333 = vcvt.s32.f32 %v821
        %v1334 = vcvt.s32.f32 %v822
        %v1335 = vcvt.s32.f32 %v823
        %v1336 = vcvt.s32.f32 %v824
        %v1337 = vcvt.s32.f32 %v825
        %v1338 = vcvt.s32.f32 %v826
        %v1339 = vcvt.s32.f32 %v827
        %v1340 = vcvt.s32.f32 %v828
        %v1341 = vcvt.s32.f32 %v829
        %v1342 = vcvt.s32.f32 %v830
        %v1343 = vcvt.s32.f32 %v831
        %v1344 = vcvt.s32.f32 %v832
        %v1345 = vcvt.s32.f32 %v833
        %v1346 = vcvt.s32.f32 %v834
        %v1347 = vcvt.s32.f32 %v835
        %v1348 = vcvt.s32.f32 %v836
        %v1349 = vcvt.s32.f32 %v837
        %v1350 = vcvt.s32.f32 %v838
        %v1351 = vcvt.s32.f32 %v839
        %v1352 = vcvt.s32.f32 %v840
        %v1353 = vcvt.s32.f32 %v841
        %v1354 = vcvt.s32.f32 %v842
        %v1355 = vcvt.s32.f32 %v843
        %v1356 = vcvt.s32.f32 %v844
        %v1357 = vcvt.s32.f32 %v845
        %v1358 = vcvt.s32.f32 %v846
        %v1359 = vcvt.s32.f32 %v847
        %v1360 = vcvt.s32.f32 %v848
        %v1361 = vcvt.s32.f32 %v849
        %v1362 = vcvt.s32.f32 %v850
        %v1363 = vcvt.s32.f32 %v851
        %v1364 = vcvt.s32.f32 %v852
        %v1365 = vcvt.s32.f32 %v853
        %v1366 = vcvt.s32.f32 %v854
        %v1367 = vcvt.s32.f32 %v855
        %v1368 = vcvt.s32.f32 %v856
        %v1369 = vcvt.s32.f32 %v857
        %v1370 = vcvt.s32.f32 %v858
        %v1371 = vcvt.s32.f32 %v859
        %v1372 = vcvt.s32.f32 %v860
        %v1373 = vcvt.s32.f32 %v861
        %v1374 = vcvt.s32.f32 %v862
        %v1375 = vcvt.s32.f32 %v863
        %v1376 = vcvt.s32.f32 %v864
        %v1377 = vcvt.s32.f32 %v865
        %v1378 = vcvt.s32.f32 %v866
        %v1379 = vcvt.s32.f32 %v867
        %v1380 = vcvt.s32.f32 %v868
        %v1381 = vcvt.s32.f32 %v869
        %v1382 = vcvt.s32.f32 %v870
        %v1383 = vcvt.s32.f32 %v871
        %v1384 = vcvt.s32.f32 %v872
        %v1385 = vcvt.s32.f32 %v873
        %v1386 = vcvt.s32.f32 %v874
        %v1387 = vcvt.s32.f32 %v875
        %v1388 = vcvt.s32.f32 %v876
        %v1389 = vcvt.s32.f32 %v877
        %v1390 = vcvt.s32.f32 %v878
        %v1391 = vcvt.s32.f32 %v879
        %v1392 = vcvt.s32.f32 %v880
        %v1393 = vcvt.s32.f32 %v881
        %v1394 = vcvt.s32.f32 %v882
        %v1395 = vcvt.s32.f32 %v883
        %v1396 = vcvt.s32.f32 %v884
        %v1397 = vcvt.s32.f32 %v885
        %v1398 = vcvt.s32.f32 %v886
        %v1399 = vcvt.s32.f32 %v887
        %v1400 = vcvt.s32.f32 %v888
        %v1401 = vcvt.s32.f32 %v889
        %v1402 = vcvt.s32.f32 %v890
        %v1403 = vcvt.s32.f32 %v891
        %v1404 = vcvt.s32.f32 %v892
        %v1405 = vcvt.s32.f32 %v893
        %v1406 = vcvt.s32.f32 %v894
        %v1407 = vcvt.s32.f32 %v895
        %v1408 = vcvt.s32.f32 %v896
        %v1409 = vcvt.s32.f32 %v897
        %v1410 = vcvt.s32.f32 %v898
        %v1411 = vcvt.s32.f32 %v899
        %v1412 = vcvt.s32.f32 %v900
        %v1413 = vcvt.s32.f32 %v901
        %v1414 = vcvt.s32.f32 %v902
        %v1415 = vcvt.s32.f32 %v903
        %v1416 = vcvt.s32.f32 %v904
        %v1417 = vcvt.s32.f32 %v905
        %v1418 = vcvt.s32.f32 %v906
        %v1419 = vcvt.s32.f32 %v907
        %v1420 = vcvt.s32.f32 %v908
        %v1421 = vcvt.s32.f32 %v909
        %v1422 = vcvt.s32.f32 %v910
        %v1423 = vcvt.s32.f32 %v911
        %v1424 = vcvt.s32.f32 %v912
        %v1425 = vcvt.s32.f32 %v913
        %v1426 = vcvt.s32.f32 %v914
        %v1427 = vcvt.s32.f32 %v915
        %v1428 = vcvt.s32.f32 %v916
        %v1429 = vcvt.s32.f32 %v917
        %v1430 = vcvt.s32.f32 %v918
        %v1431 = vcvt.s32.f32 %v919
        %v1432 = vcvt.s32.f32 %v920
        %v1433 = vcvt.s32.f32 %v921
        %v1434 = vcvt.s32.f32 %v922
        %v1435 = vcvt.s32.f32 %v923
        %v1436 = vcvt.s32.f32 %v924
        %v1437 = vcvt.s32.f32 %v925
        %v1438 = vcvt.s32.f32 %v926
        %v1439 = vcvt.s32.f32 %v927
        %v1440 = vcvt.s32.f32 %v928
        %v1441 = vcvt.s32.f32 %v929
        %v1442 = vcvt.s32.f32 %v930
        %v1443 = vcvt.s32.f32 %v931
        %v1444 = vcvt.s32.f32 %v932
        %v1445 = vcvt.s32.f32 %v933
        %v1446 = vcvt.s32.f32 %v934
        %v1447 = vcvt.s32.f32 %v935
        %v1448 = vcvt.s32.f32 %v936
        %v1449 = vcvt.s32.f32 %v937
        %v1450 = vcvt.s32.f32 %v938
        %v1451 = vcvt.s32.f32 %v939
        %v1452 = vcvt.s32.f32 %v940
        %v1453 = vcvt.s32.f32 %v941
        %v1454 = vcvt.s32.f32 %v942
        %v1455 = vcvt.s32.f32 %v943
        %v1456 = vcvt.s32.f32 %v944
        %v1457 = vcvt.s32.f32 %v945
        %v1458 = vcvt.s32.f32 %v946
        %v1459 = vcvt.s32.f32 %v947
        %v1460 = vcvt.s32.f32 %v948
        %v1461 = vcvt.s32.f32 %v949
        %v1462 = vcvt.s32.f32 %v950
        %v1463 = vcvt.s32.f32 %v951
        %v1464 = vcvt.s32.f32 %v952
        %v1465 = vcvt.s32.f32 %v953
        %v1466 = vcvt.s32.f32 %v954
        %v1467 = vcvt.s32.f32 %v955
        %v1468 = vcvt.s32.f32 %v956
        %v1469 = vcvt.s32.f32 %v957
        %v1470 = vcvt.s32.f32 %v958
        %v1471 = vcvt.s32.f32 %v959
        %v1472 = vcvt.s32.f32 %v960
        %v1473 = vcvt.s32.f32 %v961
        %v1474 = vcvt.s32.f32 %v962
        %v1475 = vcvt.s32.f32 %v963
        %v1476 = vcvt.s32.f32 %v964
        %v1477 = vcvt.s32.f32 %v965
        %v1478 = vcvt.s32.f32 %v966
        %v1479 = vcvt.s32.f32 %v967
        %v1480 = vcvt.s32.f32 %v968
        %v1481 = vcvt.s32.f32 %v969
        %v1482 = vcvt.s32.f32 %v970
        %v1483 = vcvt.s32.f32 %v971
        %v1484 = vcvt.s32.f32 %v972
        %v1485 = vcvt.s32.f32 %v973
        %v1486 = vcvt.s32.f32 %v974
        %v1487 = vcvt.s32.f32 %v975
        %v1488 = vcvt.s32.f32 %v976
        %v1489 = vcvt.s32.f32 %v977
        %v1490 = vcvt.s32.f32 %v978
        %v1491 = vcvt.s32.f32 %v979
        %v1492 = vcvt.s32.f32 %v980
        %v1493 = vcvt.s32.f32 %v981
        %v1494 = vcvt.s32.f32 %v982
        %v1495 = vcvt.s32.f32 %v983
        %v1496 = vcvt.s32.f32 %v984
        %v1497 = vcvt.s32.f32 %v985
        %v1498 = vcvt.s32.f32 %v986
        %v1499 = vcvt.s32.f32 %v987
        %v1500 = vcvt.s32.f32 %v988
        %v1501 = vcvt.s32.f32 %v989
        %v1502 = vcvt.s32.f32 %v990
        %v1503 = vcvt.s32.f32 %v991
        %v1504 = vcvt.s32.f32 %v992
        %v1505 = vcvt.s32.f32 %v993
        %v1506 = vcvt.s32.f32 %v994
        %v1507 = vcvt.s32.f32 %v995
        %v1508 = vcvt.s32.f32 %v996
        %v1509 = vcvt.s32.f32 %v997
        %v1510 = vcvt.s32.f32 %v998
        %v1511 = vcvt.s32.f32 %v999
        %v1512 = vcvt.s32.f32 %v1000
        %v1513 = vcvt.s32.f32 %v1001
        %v1514 = vcvt.s32.f32 %v1002
        %v1515 = vcvt.s32.f32 %v1003
        %v1516 = vcvt.s32.f32 %v1004
        %v1517 = vcvt.s32.f32 %v1005
        %v1518 = vcvt.s32.f32 %v1006
        %v1519 = vcvt.s32.f32 %v1007
        %v1520 = vcvt.s32.f32 %v1008
        %v1521 = vcvt.s32.f32 %v1009
        %v1522 = vcvt.s32.f32 %v1010
        %v1523 = vcvt.s32.f32 %v1011
        %v1524 = vcvt.s32.f32 %v1012
        %v1525 = vcvt.s32.f32 %v1013
        %v1526 = vcvt.s32.f32 %v1014
        %v1527 = vcvt.s32.f32 %v1015
        %v1528 = vcvt.s32.f32 %v1016
        %v1529 = vcvt.s32.f32 %v1017
        %v1530 = vcvt.s32.f32 %v1018
        %v1531 = vcvt.s32.f32 %v1019
        %v1532 = vcvt.s32.f32 %v1020
        %v1533 = vcvt.s32.f32 %v1021
        %v1534 = vcvt.s32.f32 %v1022
        %v1535 = vcvt.s32.f32 %v1023
        %v1536 = vcvt.s32.f32 %v1024
        %v1537 = vcvt.s32.f32 %v1025
        %v1538 = vcvt.s32.f32 %v1026
        %v1539 = vcvt.s32.f32 %v1027
        %v1540 = vcvt.s32.f32 %v1028
        %v1541 = vcvt.s32.f32 %v1029
        %v1542 = vcvt.s32.f32 %v1030
        %v1543 = vcvt.s32.f32 %v1031
        %v1544 = vcvt.s32.f32 %v1032
        %v1545 = vcvt.s32.f32 %v1033
        %v1546 = vcvt.s32.f32 %v1034
        %v1547 = vcvt.s32.f32 %v1035
        %v1548 = vcvt.s32.f32 %v1036
        %v1549 = vcvt.s32.f32 %v1037
        %v1550 = vcvt.s32.f32 %v1038
        %v1551 = vcvt.s32.f32 %v1039
        %v1552 = vcvt.s32.f32 %v1040
        %v1553 = vcvt.s32.f32 %v1041
        %v1554 = vcvt.s32.f32 %v1042
        %v1555 = vcvt.s32.f32 %v1043
        %v1556 = vcvt.s32.f32 %v1044
        %v1557 = vcvt.s32.f32 %v1045
        %v1558 = vcvt.s32.f32 %v1046
        %v1559 = vcvt.s32.f32 %v1047
        %v1560 = vcvt.s32.f32 %v1048
        %v1561 = vcvt.s32.f32 %v1049
        %v1562 = vcvt.s32.f32 %v1050
        %v1563 = vcvt.s32.f32 %v1051
        %v1564 = vcvt.s32.f32 %v1052
        %v1565 = vcvt.s32.f32 %v1053
        %v1566 = vcvt.s32.f32 %v1054
        %v1567 = vcvt.s32.f32 %v1055
        %v1568 = vcvt.s32.f32 %v1056
        %v1569 = vcvt.s32.f32 %v1057
        %v1570 = vcvt.s32.f32 %v1058
        %v1571 = vcvt.s32.f32 %v1059
        %v1572 = vcvt.s32.f32 %v1060
        %v1573 = vcvt.s32.f32 %v1061
        %v1574 = vcvt.s32.f32 %v1062
        %v1575 = vcvt.s32.f32 %v1063
        %v1576 = vcvt.s32.f32 %v1064
        %v1577 = vcvt.s32.f32 %v1065
        %v1578 = vcvt.s32.f32 %v1066
        %v1579 = vcvt.s32.f32 %v1067
        %v1580 = vcvt.s32.f32 %v1068
        %v1581 = vcvt.s32.f32 %v1069
        %v1582 = vcvt.s32.f32 %v1070
        %v1583 = vcvt.s32.f32 %v1071
        %v1584 = vcvt.s32.f32 %v1072
        %v1585 = vcvt.s32.f32 %v1073
        %v1586 = vcvt.s32.f32 %v1074
        %v1587 = vcvt.s32.f32 %v1075
        %v1588 = vcvt.s32.f32 %v1076
        %v1589 = vcvt.s32.f32 %v1077
        %v1590 = vcvt.s32.f32 %v1078
        %v1591 = vcvt.s32.f32 %v1079
        %v1592 = vcvt.s32.f32 %v1080
        %v1593 = vcvt.s32.f32 %v1081
        %v1594 = vcvt.s32.f32 %v1082
        %v1595 = vcvt.s32.f32 %v1083
        %v1596 = vcvt.s32.f32 %v1084
        %v1597 = vcvt.s32.f32 %v1085
        %v1598 = vcvt.s32.f32 %v1086
        %v1599 = vcvt.s32.f32 %v1087
        %v1600 = vcvt.s32.f32 %v1088
        %v1601 = vcvt.s32.f32 %v1089
        %v1602 = vcvt.s32.f32 %v1090
        %v1603 = vcvt.s32.f32 %v1091
        %v1604 = vcvt.s32.f32 %v1092
        %v1605 = vcvt.s32.f32 %v1093
        %v1606 = vcvt.s32.f32 %v1094
        %v1607 = vcvt.s32.f32 %v1095
        %v1608 = vcvt.s32.f32 %v1096
        %v1609 = vcvt.s32.f32 %v1097
        %v1610 = vcvt.s32.f32 %v1098
        %v1611 = vcvt.s32.f32 %v1099
        %v1612 = vcvt.s32.f32 %v1100
        %v1613 = vcvt.s32.f32 %v1101
        %v1614 = vcvt.s32.f32 %v1102
        %v1615 = vcvt.s32.f32 %v1103
        %v1616 = vcvt.s32.f32 %v1104
        %v1617 = vcvt.s32.f32 %v1105
        %v1618 = vcvt.s32.f32 %v1106
        %v1619 = vcvt.s32.f32 %v1107
        %v1620 = vcvt.s32.f32 %v1108
        %v1621 = vcvt.s32.f32 %v1109
        %v1622 = vcvt.s32.f32 %v1110
        %v1623 = vcvt.s32.f32 %v1111
        %v1624 = vcvt.s32.f32 %v1112
        %v1625 = vcvt.s32.f32 %v1113
        %v1626 = vcvt.s32.f32 %v1114
        %v1627 = vcvt.s32.f32 %v1115
        %v1628 = vcvt.s32.f32 %v1116
        %v1629 = vcvt.s32.f32 %v1117
        %v1630 = vcvt.s32.f32 %v1118
        %v1631 = vcvt.s32.f32 %v1119
        %v1632 = vcvt.s32.f32 %v1120
        %v1633 = vcvt.s32.f32 %v1121
        %v1634 = vcvt.s32.f32 %v1122
        %v1635 = vcvt.s32.f32 %v1123
        %v1636 = vcvt.s32.f32 %v1124
        %v1637 = vcvt.s32.f32 %v1125
        %v1638 = vcvt.s32.f32 %v1126
        %v1639 = vcvt.s32.f32 %v1127
        %v1640 = vcvt.s32.f32 %v1128
        %v1641 = vcvt.s32.f32 %v1129
        %v1642 = vcvt.s32.f32 %v1130
        %v1643 = vcvt.s32.f32 %v1131
        %v1644 = vcvt.s32.f32 %v1132
        %v1645 = vcvt.s32.f32 %v1133
        %v1646 = vcvt.s32.f32 %v1134
        %v1647 = vcvt.s32.f32 %v1135
        %v1648 = vcvt.s32.f32 %v1136
        %v1649 = vcvt.s32.f32 %v1137
        %v1650 = vcvt.s32.f32 %v1138
        %v1651 = vcvt.s32.f32 %v1139
        %v1652 = vcvt.s32.f32 %v1140
        %v1653 = vcvt.s32.f32 %v1141
        %v1654 = vcvt.s32.f32 %v1142
        %v1655 = vcvt.s32.f32 %v1143
        %v1656 = vcvt.s32.f32 %v1144
        %v1657 = vcvt.s32.f32 %v1145
        %v1658 = vcvt.s32.f32 %v1146
        %v1659 = vcvt.s32.f32 %v1147
        %v1660 = vcvt.s32.f32 %v1148
        %v1661 = vcvt.s32.f32 %v1149
        %v1662 = vcvt.s32.f32 %v1150
        %v1663 = vcvt.s32.f32 %v1151
        %v1664 = vcvt.s32.f32 %v1152
        %v1665 = vcvt.s32.f32 %v1153
        %v1666 = vcvt.s32.f32 %v1154
        %v1667 = vcvt.s32.f32 %v1155
        %v1668 = vcvt.s32.f32 %v1156
        %v1669 = vcvt.s32.f32 %v1157
        %v1670 = vcvt.s32.f32 %v1158
        %v1671 = vcvt.s32.f32 %v1159
        %v1672 = vcvt.s32.f32 %v1160
        %v1673 = vcvt.s32.f32 %v1161
        %v1674 = vcvt.s32.f32 %v1162
        %v1675 = vcvt.s32.f32 %v1163
        %v1676 = vcvt.s32.f32 %v1164
        %v1677 = vcvt.s32.f32 %v1165
        %v1678 = vcvt.s32.f32 %v1166
        %v1679 = vcvt.s32.f32 %v1167
        %v1680 = vcvt.s32.f32 %v1168
        %v1681 = vcvt.s32.f32 %v1169
        %v1682 = vcvt.s32.f32 %v1170
        %v1683 = vcvt.s32.f32 %v1171
        %v1684 = vcvt.s32.f32 %v1172
        %v1685 = vcvt.s32.f32 %v1173
        %v1686 = vcvt.s32.f32 %v1174
        %v1687 = vcvt.s32.f32 %v1175
        %v1688 = vcvt.s32.f32 %v1176
        %v1689 = vcvt.s32.f32 %v1177
        %v1690 = vcvt.s32.f32 %v1178
        %v1691 = vcvt.s32.f32 %v1179
        %v1692 = vcvt.s32.f32 %v1180
        %v1693 = vcvt.s32.f32 %v1181
        %v1694 = vcvt.s32.f32 %v1182
        %v1695 = vcvt.s32.f32 %v1183
        %v1696 = vcvt.s32.f32 %v1184
        %v1697 = vcvt.s32.f32 %v1185
        %v1698 = vcvt.s32.f32 %v1186
        %v1699 = vcvt.s32.f32 %v1187
        %v1700 = vcvt.s32.f32 %v1188
        %v1701 = vcvt.s32.f32 %v1189
        %v1702 = vpack.c.bf16 %v1194, %v1190
        %v1703 = vpack.c.bf16 %v1195, %v1191
        %v1704 = vpack.c.bf16 %v1196, %v1192
        %v1705 = vpack.c.bf16 %v1197, %v1193
        %v1706 = vpack.c.bf16 %v1202, %v1198
        %v1707 = vpack.c.bf16 %v1203, %v1199
        %v1708 = vpack.c.bf16 %v1204, %v1200
        %v1709 = vpack.c.bf16 %v1205, %v1201
        %v1710 = vpack.c.bf16 %v1210, %v1206
        %v1711 = vpack.c.bf16 %v1211, %v1207
        %v1712 = vpack.c.bf16 %v1212, %v1208
        %v1713 = vpack.c.bf16 %v1213, %v1209
        %v1714 = vpack.c.bf16 %v1218, %v1214
        %v1715 = vpack.c.bf16 %v1219, %v1215
        %v1716 = vpack.c.bf16 %v1220, %v1216
        %v1717 = vpack.c.bf16 %v1221, %v1217
        %v1718 = vpack.c.bf16 %v1226, %v1222
        %v1719 = vpack.c.bf16 %v1227, %v1223
        %v1720 = vpack.c.bf16 %v1228, %v1224
        %v1721 = vpack.c.bf16 %v1229, %v1225
        %v1722 = vpack.c.bf16 %v1234, %v1230
        %v1723 = vpack.c.bf16 %v1235, %v1231
        %v1724 = vpack.c.bf16 %v1236, %v1232
        %v1725 = vpack.c.bf16 %v1237, %v1233
        %v1726 = vpack.c.bf16 %v1242, %v1238
        %v1727 = vpack.c.bf16 %v1243, %v1239
        %v1728 = vpack.c.bf16 %v1244, %v1240
        %v1729 = vpack.c.bf16 %v1245, %v1241
        %v1730 = vpack.c.bf16 %v1250, %v1246
        %v1731 = vpack.c.bf16 %v1251, %v1247
        %v1732 = vpack.c.bf16 %v1252, %v1248
        %v1733 = vpack.c.bf16 %v1253, %v1249
        %v1734 = vpack.c.bf16 %v1258, %v1254
        %v1735 = vpack.c.bf16 %v1259, %v1255
        %v1736 = vpack.c.bf16 %v1260, %v1256
        %v1737 = vpack.c.bf16 %v1261, %v1257
        %v1738 = vpack.c.bf16 %v1266, %v1262
        %v1739 = vpack.c.bf16 %v1267, %v1263
        %v1740 = vpack.c.bf16 %v1268, %v1264
        %v1741 = vpack.c.bf16 %v1269, %v1265
        %v1742 = vpack.c.bf16 %v1274, %v1270
        %v1743 = vpack.c.bf16 %v1275, %v1271
        %v1744 = vpack.c.bf16 %v1276, %v1272
        %v1745 = vpack.c.bf16 %v1277, %v1273
        %v1746 = vpack.c.bf16 %v1282, %v1278
        %v1747 = vpack.c.bf16 %v1283, %v1279
        %v1748 = vpack.c.bf16 %v1284, %v1280
        %v1749 = vpack.c.bf16 %v1285, %v1281
        %v1750 = vpack.c.bf16 %v1290, %v1286
        %v1751 = vpack.c.bf16 %v1291, %v1287
        %v1752 = vpack.c.bf16 %v1292, %v1288
        %v1753 = vpack.c.bf16 %v1293, %v1289
        %v1754 = vpack.c.bf16 %v1298, %v1294
        %v1755 = vpack.c.bf16 %v1299, %v1295
        %v1756 = vpack.c.bf16 %v1300, %v1296
        %v1757 = vpack.c.bf16 %v1301, %v1297
        %v1758 = vpack.c.bf16 %v1306, %v1302
        %v1759 = vpack.c.bf16 %v1307, %v1303
        %v1760 = vpack.c.bf16 %v1308, %v1304
        %v1761 = vpack.c.bf16 %v1309, %v1305
        %v1762 = vpack.c.bf16 %v1314, %v1310
        %v1763 = vpack.c.bf16 %v1315, %v1311
        %v1764 = vpack.c.bf16 %v1316, %v1312
        %v1765 = vpack.c.bf16 %v1317, %v1313
        %v1766 = vpack.c.bf16 %v1322, %v1318
        %v1767 = vpack.c.bf16 %v1323, %v1319
        %v1768 = vpack.c.bf16 %v1324, %v1320
        %v1769 = vpack.c.bf16 %v1325, %v1321
        %v1770 = vpack.c.bf16 %v1330, %v1326
        %v1771 = vpack.c.bf16 %v1331, %v1327
        %v1772 = vpack.c.bf16 %v1332, %v1328
        %v1773 = vpack.c.bf16 %v1333, %v1329
        %v1774 = vpack.c.bf16 %v1338, %v1334
        %v1775 = vpack.c.bf16 %v1339, %v1335
        %v1776 = vpack.c.bf16 %v1340, %v1336
        %v1777 = vpack.c.bf16 %v1341, %v1337
        %v1778 = vpack.c.bf16 %v1346, %v1342
        %v1779 = vpack.c.bf16 %v1347, %v1343
        %v1780 = vpack.c.bf16 %v1348, %v1344
        %v1781 = vpack.c.bf16 %v1349, %v1345
        %v1782 = vpack.c.bf16 %v1354, %v1350
        %v1783 = vpack.c.bf16 %v1355, %v1351
        %v1784 = vpack.c.bf16 %v1356, %v1352
        %v1785 = vpack.c.bf16 %v1357, %v1353
        %v1786 = vpack.c.bf16 %v1362, %v1358
        %v1787 = vpack.c.bf16 %v1363, %v1359
        %v1788 = vpack.c.bf16 %v1364, %v1360
        %v1789 = vpack.c.bf16 %v1365, %v1361
        %v1790 = vpack.c.bf16 %v1370, %v1366
        %v1791 = vpack.c.bf16 %v1371, %v1367
        %v1792 = vpack.c.bf16 %v1372, %v1368
        %v1793 = vpack.c.bf16 %v1373, %v1369
        %v1794 = vpack.c.bf16 %v1378, %v1374
        %v1795 = vpack.c.bf16 %v1379, %v1375
        %v1796 = vpack.c.bf16 %v1380, %v1376
        %v1797 = vpack.c.bf16 %v1381, %v1377
        %v1798 = vpack.c.bf16 %v1386, %v1382
        %v1799 = vpack.c.bf16 %v1387, %v1383
        %v1800 = vpack.c.bf16 %v1388, %v1384
        %v1801 = vpack.c.bf16 %v1389, %v1385
        %v1802 = vpack.c.bf16 %v1394, %v1390
        %v1803 = vpack.c.bf16 %v1395, %v1391
        %v1804 = vpack.c.bf16 %v1396, %v1392
        %v1805 = vpack.c.bf16 %v1397, %v1393
        %v1806 = vpack.c.bf16 %v1402, %v1398
        %v1807 = vpack.c.bf16 %v1403, %v1399
        %v1808 = vpack.c.bf16 %v1404, %v1400
        %v1809 = vpack.c.bf16 %v1405, %v1401
        %v1810 = vpack.c.bf16 %v1410, %v1406
        %v1811 = vpack.c.bf16 %v1411, %v1407
        %v1812 = vpack.c.bf16 %v1412, %v1408
        %v1813 = vpack.c.bf16 %v1413, %v1409
        %v1814 = vpack.c.bf16 %v1418, %v1414
        %v1815 = vpack.c.bf16 %v1419, %v1415
        %v1816 = vpack.c.bf16 %v1420, %v1416
        %v1817 = vpack.c.bf16 %v1421, %v1417
        %v1818 = vpack.c.bf16 %v1426, %v1422
        %v1819 = vpack.c.bf16 %v1427, %v1423
        %v1820 = vpack.c.bf16 %v1428, %v1424
        %v1821 = vpack.c.bf16 %v1429, %v1425
        %v1822 = vpack.c.bf16 %v1434, %v1430
        %v1823 = vpack.c.bf16 %v1435, %v1431
        %v1824 = vpack.c.bf16 %v1436, %v1432
        %v1825 = vpack.c.bf16 %v1437, %v1433
        %v1826 = vpack.c.bf16 %v1442, %v1438
        %v1827 = vpack.c.bf16 %v1443, %v1439
        %v1828 = vpack.c.bf16 %v1444, %v1440
        %v1829 = vpack.c.bf16 %v1445, %v1441
        %v1830 = vpack.c.bf16 %v1450, %v1446
        %v1831 = vpack.c.bf16 %v1451, %v1447
        %v1832 = vpack.c.bf16 %v1452, %v1448
        %v1833 = vpack.c.bf16 %v1453, %v1449
        %v1834 = vpack.c.bf16 %v1458, %v1454
        %v1835 = vpack.c.bf16 %v1459, %v1455
        %v1836 = vpack.c.bf16 %v1460, %v1456
        %v1837 = vpack.c.bf16 %v1461, %v1457
        %v1838 = vpack.c.bf16 %v1466, %v1462
        %v1839 = vpack.c.bf16 %v1467, %v1463
        %v1840 = vpack.c.bf16 %v1468, %v1464
        %v1841 = vpack.c.bf16 %v1469, %v1465
        %v1842 = vpack.c.bf16 %v1474, %v1470
        %v1843 = vpack.c.bf16 %v1475, %v1471
        %v1844 = vpack.c.bf16 %v1476, %v1472
        %v1845 = vpack.c.bf16 %v1477, %v1473
        %v1846 = vpack.c.bf16 %v1482, %v1478
        %v1847 = vpack.c.bf16 %v1483, %v1479
        %v1848 = vpack.c.bf16 %v1484, %v1480
        %v1849 = vpack.c.bf16 %v1485, %v1481
        %v1850 = vpack.c.bf16 %v1490, %v1486
        %v1851 = vpack.c.bf16 %v1491, %v1487
        %v1852 = vpack.c.bf16 %v1492, %v1488
        %v1853 = vpack.c.bf16 %v1493, %v1489
        %v1854 = vpack.c.bf16 %v1498, %v1494
        %v1855 = vpack.c.bf16 %v1499, %v1495
        %v1856 = vpack.c.bf16 %v1500, %v1496
        %v1857 = vpack.c.bf16 %v1501, %v1497
        %v1858 = vpack.c.bf16 %v1506, %v1502
        %v1859 = vpack.c.bf16 %v1507, %v1503
        %v1860 = vpack.c.bf16 %v1508, %v1504
        %v1861 = vpack.c.bf16 %v1509, %v1505
        %v1862 = vpack.c.bf16 %v1514, %v1510
        %v1863 = vpack.c.bf16 %v1515, %v1511
        %v1864 = vpack.c.bf16 %v1516, %v1512
        %v1865 = vpack.c.bf16 %v1517, %v1513
        %v1866 = vpack.c.bf16 %v1522, %v1518
        %v1867 = vpack.c.bf16 %v1523, %v1519
        %v1868 = vpack.c.bf16 %v1524, %v1520
        %v1869 = vpack.c.bf16 %v1525, %v1521
        %v1870 = vpack.c.bf16 %v1530, %v1526
        %v1871 = vpack.c.bf16 %v1531, %v1527
        %v1872 = vpack.c.bf16 %v1532, %v1528
        %v1873 = vpack.c.bf16 %v1533, %v1529
        %v1874 = vpack.c.bf16 %v1538, %v1534
        %v1875 = vpack.c.bf16 %v1539, %v1535
        %v1876 = vpack.c.bf16 %v1540, %v1536
        %v1877 = vpack.c.bf16 %v1541, %v1537
        %v1878 = vpack.c.bf16 %v1546, %v1542
        %v1879 = vpack.c.bf16 %v1547, %v1543
        %v1880 = vpack.c.bf16 %v1548, %v1544
        %v1881 = vpack.c.bf16 %v1549, %v1545
        %v1882 = vpack.c.bf16 %v1554, %v1550
        %v1883 = vpack.c.bf16 %v1555, %v1551
        %v1884 = vpack.c.bf16 %v1556, %v1552
        %v1885 = vpack.c.bf16 %v1557, %v1553
        %v1886 = vpack.c.bf16 %v1562, %v1558
        %v1887 = vpack.c.bf16 %v1563, %v1559
        %v1888 = vpack.c.bf16 %v1564, %v1560
        %v1889 = vpack.c.bf16 %v1565, %v1561
        %v1890 = vpack.c.bf16 %v1570, %v1566
        %v1891 = vpack.c.bf16 %v1571, %v1567
        %v1892 = vpack.c.bf16 %v1572, %v1568
        %v1893 = vpack.c.bf16 %v1573, %v1569
        %v1894 = vpack.c.bf16 %v1578, %v1574
        %v1895 = vpack.c.bf16 %v1579, %v1575
        %v1896 = vpack.c.bf16 %v1580, %v1576
        %v1897 = vpack.c.bf16 %v1581, %v1577
        %v1898 = vpack.c.bf16 %v1586, %v1582
        %v1899 = vpack.c.bf16 %v1587, %v1583
        %v1900 = vpack.c.bf16 %v1588, %v1584
        %v1901 = vpack.c.bf16 %v1589, %v1585
        %v1902 = vpack.c.bf16 %v1594, %v1590
        %v1903 = vpack.c.bf16 %v1595, %v1591
        %v1904 = vpack.c.bf16 %v1596, %v1592
        %v1905 = vpack.c.bf16 %v1597, %v1593
        %v1906 = vpack.c.bf16 %v1602, %v1598
        %v1907 = vpack.c.bf16 %v1603, %v1599
        %v1908 = vpack.c.bf16 %v1604, %v1600
        %v1909 = vpack.c.bf16 %v1605, %v1601
        %v1910 = vpack.c.bf16 %v1610, %v1606
        %v1911 = vpack.c.bf16 %v1611, %v1607
        %v1912 = vpack.c.bf16 %v1612, %v1608
        %v1913 = vpack.c.bf16 %v1613, %v1609
        %v1914 = vpack.c.bf16 %v1618, %v1614
        %v1915 = vpack.c.bf16 %v1619, %v1615
        %v1916 = vpack.c.bf16 %v1620, %v1616
        %v1917 = vpack.c.bf16 %v1621, %v1617
        %v1918 = vpack.c.bf16 %v1626, %v1622
        %v1919 = vpack.c.bf16 %v1627, %v1623
        %v1920 = vpack.c.bf16 %v1628, %v1624
        %v1921 = vpack.c.bf16 %v1629, %v1625
        %v1922 = vpack.c.bf16 %v1634, %v1630
        %v1923 = vpack.c.bf16 %v1635, %v1631
        %v1924 = vpack.c.bf16 %v1636, %v1632
        %v1925 = vpack.c.bf16 %v1637, %v1633
        %v1926 = vpack.c.bf16 %v1642, %v1638
        %v1927 = vpack.c.bf16 %v1643, %v1639
        %v1928 = vpack.c.bf16 %v1644, %v1640
        %v1929 = vpack.c.bf16 %v1645, %v1641
        %v1930 = vpack.c.bf16 %v1650, %v1646
        %v1931 = vpack.c.bf16 %v1651, %v1647
        %v1932 = vpack.c.bf16 %v1652, %v1648
        %v1933 = vpack.c.bf16 %v1653, %v1649
        %v1934 = vpack.c.bf16 %v1658, %v1654
        %v1935 = vpack.c.bf16 %v1659, %v1655
        %v1936 = vpack.c.bf16 %v1660, %v1656
        %v1937 = vpack.c.bf16 %v1661, %v1657
        %v1938 = vpack.c.bf16 %v1666, %v1662
        %v1939 = vpack.c.bf16 %v1667, %v1663
        %v1940 = vpack.c.bf16 %v1668, %v1664
        %v1941 = vpack.c.bf16 %v1669, %v1665
        %v1942 = vpack.c.bf16 %v1674, %v1670
        %v1943 = vpack.c.bf16 %v1675, %v1671
        %v1944 = vpack.c.bf16 %v1676, %v1672
        %v1945 = vpack.c.bf16 %v1677, %v1673
        %v1946 = vpack.c.bf16 %v1682, %v1678
        %v1947 = vpack.c.bf16 %v1683, %v1679
        %v1948 = vpack.c.bf16 %v1684, %v1680
        %v1949 = vpack.c.bf16 %v1685, %v1681
        %v1950 = vpack.c.bf16 %v1690, %v1686
        %v1951 = vpack.c.bf16 %v1691, %v1687
        %v1952 = vpack.c.bf16 %v1692, %v1688
        %v1953 = vpack.c.bf16 %v1693, %v1689
        %v1954 = vpack.c.bf16 %v1698, %v1694
        %v1955 = vpack.c.bf16 %v1699, %v1695
        %v1956 = vpack.c.bf16 %v1700, %v1696
        %v1957 = vpack.c.bf16 %v1701, %v1697
        %1959 = vst [vmem:[#allocation1] ss:$9 sm:$0xff] %v549
        %v1960 = vld [vmem:[#allocation1] sm:$0xff]
        %v1961 = vld [vmem:[#allocation1 + $0x9] sm:$0xff]
        %v1962 = vld [vmem:[#allocation1 + $0x12] sm:$0xff]
        %v1963 = vld [vmem:[#allocation1 + $0x1b] sm:$0xff]
        %v1964 = vld [vmem:[#allocation1 + $0x24] sm:$0xff]
        %v1965 = vld [vmem:[#allocation1 + $0x2d] sm:$0xff]
        %v1966 = vld [vmem:[#allocation1 + $0x36] sm:$0xff]
        %v1967 = vld [vmem:[#allocation1 + $0x3f] sm:$0xff]
        %1976 = vmatpush.bf16.msra.mxu0 %v1730
        %1977 = vmatpush.bf16.msra.mxu0 %v1726
        %1978 = vmatpush.bf16.msra.mxu0 %v1722
        %1979 = vmatpush.bf16.msra.mxu0 %v1718
        %1980 = vmatpush.bf16.msra.mxu0 %v1714
        %1981 = vmatpush.bf16.msra.mxu0 %v1710
        %1982 = vmatpush.bf16.msra.mxu0 %v1706
        %1983 = vmatpush.bf16.msra.mxu0 %v1702
        %1984 = vmatmul.bf16.gmra.mxu0 %v1960
        %v1985 = vpop.f32.mrf.mxu0
        %v1986 = vadd.f32 0.0, %v1985
        %v1987 = vpop.f32.mrf.mxu0
        %1988 = vdwg.mxu0
        %1989 = vmatpush.bf16.msra.mxu0 %v1762
        %1990 = vmatpush.bf16.msra.mxu0 %v1758
        %1991 = vmatpush.bf16.msra.mxu0 %v1754
        %1992 = vmatpush.bf16.msra.mxu0 %v1750
        %1993 = vmatpush.bf16.msra.mxu0 %v1746
        %1994 = vmatpush.bf16.msra.mxu0 %v1742
        %1995 = vmatpush.bf16.msra.mxu0 %v1738
        %1996 = vmatpush.bf16.msra.mxu0 %v1734
        %1997 = vmatmul.bf16.gmra.mxu0 %v1961
        %v1998 = vpop.f32.mrf.mxu0
        %v1999 = vadd.f32 %v1986, %v1998
        %v2000 = vpop.f32.mrf.mxu0
        %2001 = vdwg.mxu0
        %2002 = vmatpush.bf16.msra.mxu0 %v1794
        %2003 = vmatpush.bf16.msra.mxu0 %v1790
        %2004 = vmatpush.bf16.msra.mxu0 %v1786
        %2005 = vmatpush.bf16.msra.mxu0 %v1782
        %2006 = vmatpush.bf16.msra.mxu0 %v1778
        %2007 = vmatpush.bf16.msra.mxu0 %v1774
        %2008 = vmatpush.bf16.msra.mxu0 %v1770
        %2009 = vmatpush.bf16.msra.mxu0 %v1766
        %2010 = vmatmul.bf16.gmra.mxu0 %v1962
        %v2011 = vpop.f32.mrf.mxu0
        %v2012 = vadd.f32 %v1999, %v2011
        %v2013 = vpop.f32.mrf.mxu0
        %2014 = vdwg.mxu0
        %2015 = vmatpush.bf16.msra.mxu0 %v1826
        %2016 = vmatpush.bf16.msra.mxu0 %v1822
        %2017 = vmatpush.bf16.msra.mxu0 %v1818
        %2018 = vmatpush.bf16.msra.mxu0 %v1814
        %2019 = vmatpush.bf16.msra.mxu0 %v1810
        %2020 = vmatpush.bf16.msra.mxu0 %v1806
        %2021 = vmatpush.bf16.msra.mxu0 %v1802
        %2022 = vmatpush.bf16.msra.mxu0 %v1798
        %2023 = vmatmul.bf16.gmra.mxu0 %v1963
        %v2024 = vpop.f32.mrf.mxu0
        %v2025 = vadd.f32 %v2012, %v2024
        %v2026 = vpop.f32.mrf.mxu0
        %2027 = vdwg.mxu0
        %2028 = vmatpush.bf16.msra.mxu0 %v1858
        %2029 = vmatpush.bf16.msra.mxu0 %v1854
        %2030 = vmatpush.bf16.msra.mxu0 %v1850
        %2031 = vmatpush.bf16.msra.mxu0 %v1846
        %2032 = vmatpush.bf16.msra.mxu0 %v1842
        %2033 = vmatpush.bf16.msra.mxu0 %v1838
        %2034 = vmatpush.bf16.msra.mxu0 %v1834
        %2035 = vmatpush.bf16.msra.mxu0 %v1830
        %2036 = vmatmul.bf16.gmra.mxu0 %v1964
        %v2037 = vpop.f32.mrf.mxu0
        %v2038 = vadd.f32 %v2025, %v2037
        %v2039 = vpop.f32.mrf.mxu0
        %2040 = vdwg.mxu0
        %2041 = vmatpush.bf16.msra.mxu0 %v1890
        %2042 = vmatpush.bf16.msra.mxu0 %v1886
        %2043 = vmatpush.bf16.msra.mxu0 %v1882
        %2044 = vmatpush.bf16.msra.mxu0 %v1878
        %2045 = vmatpush.bf16.msra.mxu0 %v1874
        %2046 = vmatpush.bf16.msra.mxu0 %v1870
        %2047 = vmatpush.bf16.msra.mxu0 %v1866
        %2048 = vmatpush.bf16.msra.mxu0 %v1862
        %2049 = vmatmul.bf16.gmra.mxu0 %v1965
        %v2050 = vpop.f32.mrf.mxu0
        %v2051 = vadd.f32 %v2038, %v2050
        %v2052 = vpop.f32.mrf.mxu0
        %2053 = vdwg.mxu0
        %2054 = vmatpush.bf16.msra.mxu0 %v1922
        %2055 = vmatpush.bf16.msra.mxu0 %v1918
        %2056 = vmatpush.bf16.msra.mxu0 %v1914
        %2057 = vmatpush.bf16.msra.mxu0 %v1910
        %2058 = vmatpush.bf16.msra.mxu0 %v1906
        %2059 = vmatpush.bf16.msra.mxu0 %v1902
        %2060 = vmatpush.bf16.msra.mxu0 %v1898
        %2061 = vmatpush.bf16.msra.mxu0 %v1894
        %2062 = vmatmul.bf16.gmra.mxu0 %v1966
        %v2063 = vpop.f32.mrf.mxu0
        %v2064 = vadd.f32 %v2051, %v2063
        %v2065 = vpop.f32.mrf.mxu0
        %2066 = vdwg.mxu0
        %2067 = vmatpush.bf16.msra.mxu0 %v1954
        %2068 = vmatpush.bf16.msra.mxu0 %v1950
        %2069 = vmatpush.bf16.msra.mxu0 %v1946
        %2070 = vmatpush.bf16.msra.mxu0 %v1942
        %2071 = vmatpush.bf16.msra.mxu0 %v1938
        %2072 = vmatpush.bf16.msra.mxu0 %v1934
        %2073 = vmatpush.bf16.msra.mxu0 %v1930
        %2074 = vmatpush.bf16.msra.mxu0 %v1926
        %2075 = vmatmul.bf16.gmra.mxu0 %v1967
        %v2076 = vpop.f32.mrf.mxu0
        %v2077 = vadd.f32 %v2064, %v2076
        %v2078 = vpop.f32.mrf.mxu0
        %2079 = vdwg.mxu0
        %2080 = vmatpush.bf16.msra.mxu0 %v1731
        %2081 = vmatpush.bf16.msra.mxu0 %v1727
        %2082 = vmatpush.bf16.msra.mxu0 %v1723
        %2083 = vmatpush.bf16.msra.mxu0 %v1719
        %2084 = vmatpush.bf16.msra.mxu0 %v1715
        %2085 = vmatpush.bf16.msra.mxu0 %v1711
        %2086 = vmatpush.bf16.msra.mxu0 %v1707
        %2087 = vmatpush.bf16.msra.mxu0 %v1703
        %2088 = vmatmul.bf16.gmra.mxu0 %v1960
        %v2089 = vpop.f32.mrf.mxu0
        %v2090 = vadd.f32 0.0, %v2089
        %v2091 = vpop.f32.mrf.mxu0
        %2092 = vdwg.mxu0
        %2093 = vmatpush.bf16.msra.mxu0 %v1763
        %2094 = vmatpush.bf16.msra.mxu0 %v1759
        %2095 = vmatpush.bf16.msra.mxu0 %v1755
        %2096 = vmatpush.bf16.msra.mxu0 %v1751
        %2097 = vmatpush.bf16.msra.mxu0 %v1747
        %2098 = vmatpush.bf16.msra.mxu0 %v1743
        %2099 = vmatpush.bf16.msra.mxu0 %v1739
        %2100 = vmatpush.bf16.msra.mxu0 %v1735
        %2101 = vmatmul.bf16.gmra.mxu0 %v1961
        %v2102 = vpop.f32.mrf.mxu0
        %v2103 = vadd.f32 %v2090, %v2102
        %v2104 = vpop.f32.mrf.mxu0
        %2105 = vdwg.mxu0
        %2106 = vmatpush.bf16.msra.mxu0 %v1795
        %2107 = vmatpush.bf16.msra.mxu0 %v1791
        %2108 = vmatpush.bf16.msra.mxu0 %v1787
        %2109 = vmatpush.bf16.msra.mxu0 %v1783
        %2110 = vmatpush.bf16.msra.mxu0 %v1779
        %2111 = vmatpush.bf16.msra.mxu0 %v1775
        %2112 = vmatpush.bf16.msra.mxu0 %v1771
        %2113 = vmatpush.bf16.msra.mxu0 %v1767
        %2114 = vmatmul.bf16.gmra.mxu0 %v1962
        %v2115 = vpop.f32.mrf.mxu0
        %v2116 = vadd.f32 %v2103, %v2115
        %v2117 = vpop.f32.mrf.mxu0
        %2118 = vdwg.mxu0
        %2119 = vmatpush.bf16.msra.mxu0 %v1827
        %2120 = vmatpush.bf16.msra.mxu0 %v1823
        %2121 = vmatpush.bf16.msra.mxu0 %v1819
        %2122 = vmatpush.bf16.msra.mxu0 %v1815
        %2123 = vmatpush.bf16.msra.mxu0 %v1811
        %2124 = vmatpush.bf16.msra.mxu0 %v1807
        %2125 = vmatpush.bf16.msra.mxu0 %v1803
        %2126 = vmatpush.bf16.msra.mxu0 %v1799
        %2127 = vmatmul.bf16.gmra.mxu0 %v1963
        %v2128 = vpop.f32.mrf.mxu0
        %v2129 = vadd.f32 %v2116, %v2128
        %v2130 = vpop.f32.mrf.mxu0
        %2131 = vdwg.mxu0
        %2132 = vmatpush.bf16.msra.mxu0 %v1859
        %2133 = vmatpush.bf16.msra.mxu0 %v1855
        %2134 = vmatpush.bf16.msra.mxu0 %v1851
        %2135 = vmatpush.bf16.msra.mxu0 %v1847
        %2136 = vmatpush.bf16.msra.mxu0 %v1843
        %2137 = vmatpush.bf16.msra.mxu0 %v1839
        %2138 = vmatpush.bf16.msra.mxu0 %v1835
        %2139 = vmatpush.bf16.msra.mxu0 %v1831
        %2140 = vmatmul.bf16.gmra.mxu0 %v1964
        %v2141 = vpop.f32.mrf.mxu0
        %v2142 = vadd.f32 %v2129, %v2141
        %v2143 = vpop.f32.mrf.mxu0
        %2144 = vdwg.mxu0
        %2145 = vmatpush.bf16.msra.mxu0 %v1891
        %2146 = vmatpush.bf16.msra.mxu0 %v1887
        %2147 = vmatpush.bf16.msra.mxu0 %v1883
        %2148 = vmatpush.bf16.msra.mxu0 %v1879
        %2149 = vmatpush.bf16.msra.mxu0 %v1875
        %2150 = vmatpush.bf16.msra.mxu0 %v1871
        %2151 = vmatpush.bf16.msra.mxu0 %v1867
        %2152 = vmatpush.bf16.msra.mxu0 %v1863
        %2153 = vmatmul.bf16.gmra.mxu0 %v1965
        %v2154 = vpop.f32.mrf.mxu0
        %v2155 = vadd.f32 %v2142, %v2154
        %v2156 = vpop.f32.mrf.mxu0
        %2157 = vdwg.mxu0
        %2158 = vmatpush.bf16.msra.mxu0 %v1923
        %2159 = vmatpush.bf16.msra.mxu0 %v1919
        %2160 = vmatpush.bf16.msra.mxu0 %v1915
        %2161 = vmatpush.bf16.msra.mxu0 %v1911
        %2162 = vmatpush.bf16.msra.mxu0 %v1907
        %2163 = vmatpush.bf16.msra.mxu0 %v1903
        %2164 = vmatpush.bf16.msra.mxu0 %v1899
        %2165 = vmatpush.bf16.msra.mxu0 %v1895
        %2166 = vmatmul.bf16.gmra.mxu0 %v1966
        %v2167 = vpop.f32.mrf.mxu0
        %v2168 = vadd.f32 %v2155, %v2167
        %v2169 = vpop.f32.mrf.mxu0
        %2170 = vdwg.mxu0
        %2171 = vmatpush.bf16.msra.mxu0 %v1955
        %2172 = vmatpush.bf16.msra.mxu0 %v1951
        %2173 = vmatpush.bf16.msra.mxu0 %v1947
        %2174 = vmatpush.bf16.msra.mxu0 %v1943
        %2175 = vmatpush.bf16.msra.mxu0 %v1939
        %2176 = vmatpush.bf16.msra.mxu0 %v1935
        %2177 = vmatpush.bf16.msra.mxu0 %v1931
        %2178 = vmatpush.bf16.msra.mxu0 %v1927
        %2179 = vmatmul.bf16.gmra.mxu0 %v1967
        %v2180 = vpop.f32.mrf.mxu0
        %v2181 = vadd.f32 %v2168, %v2180
        %v2182 = vpop.f32.mrf.mxu0
        %2183 = vdwg.mxu0
        %2184 = vmatpush.bf16.msra.mxu0 %v1732
        %2185 = vmatpush.bf16.msra.mxu0 %v1728
        %2186 = vmatpush.bf16.msra.mxu0 %v1724
        %2187 = vmatpush.bf16.msra.mxu0 %v1720
        %2188 = vmatpush.bf16.msra.mxu0 %v1716
        %2189 = vmatpush.bf16.msra.mxu0 %v1712
        %2190 = vmatpush.bf16.msra.mxu0 %v1708
        %2191 = vmatpush.bf16.msra.mxu0 %v1704
        %2192 = vmatmul.bf16.gmra.mxu0 %v1960
        %v2193 = vpop.f32.mrf.mxu0
        %v2194 = vadd.f32 0.0, %v2193
        %v2195 = vpop.f32.mrf.mxu0
        %2196 = vdwg.mxu0
        %2197 = vmatpush.bf16.msra.mxu0 %v1764
        %2198 = vmatpush.bf16.msra.mxu0 %v1760
        %2199 = vmatpush.bf16.msra.mxu0 %v1756
        %2200 = vmatpush.bf16.msra.mxu0 %v1752
        %2201 = vmatpush.bf16.msra.mxu0 %v1748
        %2202 = vmatpush.bf16.msra.mxu0 %v1744
        %2203 = vmatpush.bf16.msra.mxu0 %v1740
        %2204 = vmatpush.bf16.msra.mxu0 %v1736
        %2205 = vmatmul.bf16.gmra.mxu0 %v1961
        %v2206 = vpop.f32.mrf.mxu0
        %v2207 = vadd.f32 %v2194, %v2206
        %v2208 = vpop.f32.mrf.mxu0
        %2209 = vdwg.mxu0
        %2210 = vmatpush.bf16.msra.mxu0 %v1796
        %2211 = vmatpush.bf16.msra.mxu0 %v1792
        %2212 = vmatpush.bf16.msra.mxu0 %v1788
        %2213 = vmatpush.bf16.msra.mxu0 %v1784
        %2214 = vmatpush.bf16.msra.mxu0 %v1780
        %2215 = vmatpush.bf16.msra.mxu0 %v1776
        %2216 = vmatpush.bf16.msra.mxu0 %v1772
        %2217 = vmatpush.bf16.msra.mxu0 %v1768
        %2218 = vmatmul.bf16.gmra.mxu0 %v1962
        %v2219 = vpop.f32.mrf.mxu0
        %v2220 = vadd.f32 %v2207, %v2219
        %v2221 = vpop.f32.mrf.mxu0
        %2222 = vdwg.mxu0
        %2223 = vmatpush.bf16.msra.mxu0 %v1828
        %2224 = vmatpush.bf16.msra.mxu0 %v1824
        %2225 = vmatpush.bf16.msra.mxu0 %v1820
        %2226 = vmatpush.bf16.msra.mxu0 %v1816
        %2227 = vmatpush.bf16.msra.mxu0 %v1812
        %2228 = vmatpush.bf16.msra.mxu0 %v1808
        %2229 = vmatpush.bf16.msra.mxu0 %v1804
        %2230 = vmatpush.bf16.msra.mxu0 %v1800
        %2231 = vmatmul.bf16.gmra.mxu0 %v1963
        %v2232 = vpop.f32.mrf.mxu0
        %v2233 = vadd.f32 %v2220, %v2232
        %v2234 = vpop.f32.mrf.mxu0
        %2235 = vdwg.mxu0
        %2236 = vmatpush.bf16.msra.mxu0 %v1860
        %2237 = vmatpush.bf16.msra.mxu0 %v1856
        %2238 = vmatpush.bf16.msra.mxu0 %v1852
        %2239 = vmatpush.bf16.msra.mxu0 %v1848
        %2240 = vmatpush.bf16.msra.mxu0 %v1844
        %2241 = vmatpush.bf16.msra.mxu0 %v1840
        %2242 = vmatpush.bf16.msra.mxu0 %v1836
        %2243 = vmatpush.bf16.msra.mxu0 %v1832
        %2244 = vmatmul.bf16.gmra.mxu0 %v1964
        %v2245 = vpop.f32.mrf.mxu0
        %v2246 = vadd.f32 %v2233, %v2245
        %v2247 = vpop.f32.mrf.mxu0
        %2248 = vdwg.mxu0
        %2249 = vmatpush.bf16.msra.mxu0 %v1892
        %2250 = vmatpush.bf16.msra.mxu0 %v1888
        %2251 = vmatpush.bf16.msra.mxu0 %v1884
        %2252 = vmatpush.bf16.msra.mxu0 %v1880
        %2253 = vmatpush.bf16.msra.mxu0 %v1876
        %2254 = vmatpush.bf16.msra.mxu0 %v1872
        %2255 = vmatpush.bf16.msra.mxu0 %v1868
        %2256 = vmatpush.bf16.msra.mxu0 %v1864
        %2257 = vmatmul.bf16.gmra.mxu0 %v1965
        %v2258 = vpop.f32.mrf.mxu0
        %v2259 = vadd.f32 %v2246, %v2258
        %v2260 = vpop.f32.mrf.mxu0
        %2261 = vdwg.mxu0
        %2262 = vmatpush.bf16.msra.mxu0 %v1924
        %2263 = vmatpush.bf16.msra.mxu0 %v1920
        %2264 = vmatpush.bf16.msra.mxu0 %v1916
        %2265 = vmatpush.bf16.msra.mxu0 %v1912
        %2266 = vmatpush.bf16.msra.mxu0 %v1908
        %2267 = vmatpush.bf16.msra.mxu0 %v1904
        %2268 = vmatpush.bf16.msra.mxu0 %v1900
        %2269 = vmatpush.bf16.msra.mxu0 %v1896
        %2270 = vmatmul.bf16.gmra.mxu0 %v1966
        %v2271 = vpop.f32.mrf.mxu0
        %v2272 = vadd.f32 %v2259, %v2271
        %v2273 = vpop.f32.mrf.mxu0
        %2274 = vdwg.mxu0
        %2275 = vmatpush.bf16.msra.mxu0 %v1956
        %2276 = vmatpush.bf16.msra.mxu0 %v1952
        %2277 = vmatpush.bf16.msra.mxu0 %v1948
        %2278 = vmatpush.bf16.msra.mxu0 %v1944
        %2279 = vmatpush.bf16.msra.mxu0 %v1940
        %2280 = vmatpush.bf16.msra.mxu0 %v1936
        %2281 = vmatpush.bf16.msra.mxu0 %v1932
        %2282 = vmatpush.bf16.msra.mxu0 %v1928
        %2283 = vmatmul.bf16.gmra.mxu0 %v1967
        %v2284 = vpop.f32.mrf.mxu0
        %v2285 = vadd.f32 %v2272, %v2284
        %v2286 = vpop.f32.mrf.mxu0
        %2287 = vdwg.mxu0
        %2288 = vmatpush.bf16.msra.mxu0 %v1733
        %2289 = vmatpush.bf16.msra.mxu0 %v1729
        %2290 = vmatpush.bf16.msra.mxu0 %v1725
        %2291 = vmatpush.bf16.msra.mxu0 %v1721
        %2292 = vmatpush.bf16.msra.mxu0 %v1717
        %2293 = vmatpush.bf16.msra.mxu0 %v1713
        %2294 = vmatpush.bf16.msra.mxu0 %v1709
        %2295 = vmatpush.bf16.msra.mxu0 %v1705
        %2296 = vmatmul.bf16.gmra.mxu0 %v1960
        %v2297 = vpop.f32.mrf.mxu0
        %v2298 = vadd.f32 0.0, %v2297
        %v2299 = vpop.f32.mrf.mxu0
        %2300 = vdwg.mxu0
        %2301 = vmatpush.bf16.msra.mxu0 %v1765
        %2302 = vmatpush.bf16.msra.mxu0 %v1761
        %2303 = vmatpush.bf16.msra.mxu0 %v1757
        %2304 = vmatpush.bf16.msra.mxu0 %v1753
        %2305 = vmatpush.bf16.msra.mxu0 %v1749
        %2306 = vmatpush.bf16.msra.mxu0 %v1745
        %2307 = vmatpush.bf16.msra.mxu0 %v1741
        %2308 = vmatpush.bf16.msra.mxu0 %v1737
        %2309 = vmatmul.bf16.gmra.mxu0 %v1961
        %v2310 = vpop.f32.mrf.mxu0
        %v2311 = vadd.f32 %v2298, %v2310
        %v2312 = vpop.f32.mrf.mxu0
        %2313 = vdwg.mxu0
        %2314 = vmatpush.bf16.msra.mxu0 %v1797
        %2315 = vmatpush.bf16.msra.mxu0 %v1793
        %2316 = vmatpush.bf16.msra.mxu0 %v1789
        %2317 = vmatpush.bf16.msra.mxu0 %v1785
        %2318 = vmatpush.bf16.msra.mxu0 %v1781
        %2319 = vmatpush.bf16.msra.mxu0 %v1777
        %2320 = vmatpush.bf16.msra.mxu0 %v1773
        %2321 = vmatpush.bf16.msra.mxu0 %v1769
        %2322 = vmatmul.bf16.gmra.mxu0 %v1962
        %v2323 = vpop.f32.mrf.mxu0
        %v2324 = vadd.f32 %v2311, %v2323
        %v2325 = vpop.f32.mrf.mxu0
        %2326 = vdwg.mxu0
        %2327 = vmatpush.bf16.msra.mxu0 %v1829
        %2328 = vmatpush.bf16.msra.mxu0 %v1825
        %2329 = vmatpush.bf16.msra.mxu0 %v1821
        %2330 = vmatpush.bf16.msra.mxu0 %v1817
        %2331 = vmatpush.bf16.msra.mxu0 %v1813
        %2332 = vmatpush.bf16.msra.mxu0 %v1809
        %2333 = vmatpush.bf16.msra.mxu0 %v1805
        %2334 = vmatpush.bf16.msra.mxu0 %v1801
        %2335 = vmatmul.bf16.gmra.mxu0 %v1963
        %v2336 = vpop.f32.mrf.mxu0
        %v2337 = vadd.f32 %v2324, %v2336
        %v2338 = vpop.f32.mrf.mxu0
        %2339 = vdwg.mxu0
        %2340 = vmatpush.bf16.msra.mxu0 %v1861
        %2341 = vmatpush.bf16.msra.mxu0 %v1857
        %2342 = vmatpush.bf16.msra.mxu0 %v1853
        %2343 = vmatpush.bf16.msra.mxu0 %v1849
        %2344 = vmatpush.bf16.msra.mxu0 %v1845
        %2345 = vmatpush.bf16.msra.mxu0 %v1841
        %2346 = vmatpush.bf16.msra.mxu0 %v1837
        %2347 = vmatpush.bf16.msra.mxu0 %v1833
        %2348 = vmatmul.bf16.gmra.mxu0 %v1964
        %v2349 = vpop.f32.mrf.mxu0
        %v2350 = vadd.f32 %v2337, %v2349
        %v2351 = vpop.f32.mrf.mxu0
        %2352 = vdwg.mxu0
        %2353 = vmatpush.bf16.msra.mxu0 %v1893
        %2354 = vmatpush.bf16.msra.mxu0 %v1889
        %2355 = vmatpush.bf16.msra.mxu0 %v1885
        %2356 = vmatpush.bf16.msra.mxu0 %v1881
        %2357 = vmatpush.bf16.msra.mxu0 %v1877
        %2358 = vmatpush.bf16.msra.mxu0 %v1873
        %2359 = vmatpush.bf16.msra.mxu0 %v1869
        %2360 = vmatpush.bf16.msra.mxu0 %v1865
        %2361 = vmatmul.bf16.gmra.mxu0 %v1965
        %v2362 = vpop.f32.mrf.mxu0
        %v2363 = vadd.f32 %v2350, %v2362
        %v2364 = vpop.f32.mrf.mxu0
        %2365 = vdwg.mxu0
        %2366 = vmatpush.bf16.msra.mxu0 %v1925
        %2367 = vmatpush.bf16.msra.mxu0 %v1921
        %2368 = vmatpush.bf16.msra.mxu0 %v1917
        %2369 = vmatpush.bf16.msra.mxu0 %v1913
        %2370 = vmatpush.bf16.msra.mxu0 %v1909
        %2371 = vmatpush.bf16.msra.mxu0 %v1905
        %2372 = vmatpush.bf16.msra.mxu0 %v1901
        %2373 = vmatpush.bf16.msra.mxu0 %v1897
        %2374 = vmatmul.bf16.gmra.mxu0 %v1966
        %v2375 = vpop.f32.mrf.mxu0
        %v2376 = vadd.f32 %v2363, %v2375
        %v2377 = vpop.f32.mrf.mxu0
        %2378 = vdwg.mxu0
        %2379 = vmatpush.bf16.msra.mxu0 %v1957
        %2380 = vmatpush.bf16.msra.mxu0 %v1953
        %2381 = vmatpush.bf16.msra.mxu0 %v1949
        %2382 = vmatpush.bf16.msra.mxu0 %v1945
        %2383 = vmatpush.bf16.msra.mxu0 %v1941
        %2384 = vmatpush.bf16.msra.mxu0 %v1937
        %2385 = vmatpush.bf16.msra.mxu0 %v1933
        %2386 = vmatpush.bf16.msra.mxu0 %v1929
        %2387 = vmatmul.bf16.gmra.mxu0 %v1967
        %v2388 = vpop.f32.mrf.mxu0
        %v2389 = vadd.f32 %v2376, %v2388
        %v2390 = vpop.f32.mrf.mxu0
        %2391 = vdwg.mxu0
        %v2392 = vld [vmem:[%s522] sm:$0x1]
        %v2394 = vperm.slane %v2392, 0
        %2395 = vset.pattern.permute.xlu0 0
        %2396 = vperm.xlu0 %2395, %v2394
        %v2397 = vpop.permute.xlu0 %2396
        %v2399 = vmul.f32 %v2077, %v2397
        %v2400 = vmul.f32 %v2181, %v2397
        %v2401 = vmul.f32 %v2285, %v2397
        %v2402 = vmul.f32 %v2389, %v2397
        %v2403 = vld [vmem:[%s526] sm:$0xf]
        %v2405 = vperm.slane %v2403, 0
        %v2406 = vperm.slane %v2403, 1
        %v2407 = vperm.slane %v2403, 2
        %v2408 = vperm.slane %v2403, 3
        %v2413 = vadd.f32 %v2399, %v2405
        %v2414 = vadd.f32 %v2400, %v2406
        %v2415 = vadd.f32 %v2401, %v2407
        %v2416 = vadd.f32 %v2402, %v2408
        %vm2417 = vcmp.gt.f32.partialorder %v2413, 0.0
        %vm2418 = vcmp.gt.f32.partialorder %v2414, 0.0
        %vm2419 = vcmp.gt.f32.partialorder %v2415, 0.0
        %vm2420 = vcmp.gt.f32.partialorder %v2416, 0.0
        %v2421 = vmul.f32 %v2413, 0.2
        %v2422 = vmul.f32 %v2414, 0.2
        %v2423 = vmul.f32 %v2415, 0.2
        %v2424 = vmul.f32 %v2416, 0.2
        %v2425 = vsel %vm2417, %v2413, %v2421
        %v2426 = vsel %vm2418, %v2414, %v2422
        %v2427 = vsel %vm2419, %v2415, %v2423
        %v2428 = vsel %vm2420, %v2416, %v2424
        %v2429 = vpack.c.bf16 %v2425, %v2425
        %v2430 = vpack.c.bf16 %v2426, %v2426
        %v2431 = vpack.c.bf16 %v2427, %v2427
        %v2432 = vpack.c.bf16 %v2428, %v2428
        %v2433 = vld [vmem:[%s445] sm:$0xff]
        %v2434 = vld [vmem:[%s445 + $0x8] sm:$0xff]
        %v2435 = vld [vmem:[%s445 + $0x10] sm:$0xff]
        %v2436 = vld [vmem:[%s445 + $0x18] sm:$0xff]
        %v2437 = vld [vmem:[%s445 + $0x20] sm:$0xff]
        %v2438 = vld [vmem:[%s445 + $0x28] sm:$0xff]
        %v2439 = vld [vmem:[%s445 + $0x30] sm:$0xff]
        %v2440 = vld [vmem:[%s445 + $0x38] sm:$0xff]
        %v2441 = vld [vmem:[%s445 + $0x40] sm:$0xff]
        %v2442 = vld [vmem:[%s445 + $0x48] sm:$0xff]
        %v2443 = vld [vmem:[%s445 + $0x50] sm:$0xff]
        %v2444 = vld [vmem:[%s445 + $0x58] sm:$0xff]
        %v2445 = vld [vmem:[%s445 + $0x60] sm:$0xff]
        %v2446 = vld [vmem:[%s445 + $0x68] sm:$0xff]
        %v2447 = vld [vmem:[%s445 + $0x70] sm:$0xff]
        %v2448 = vld [vmem:[%s445 + $0x78] sm:$0xff]
        %v2449 = vld [vmem:[%s445 + $0x80] sm:$0xff]
        %v2450 = vld [vmem:[%s445 + $0x88] sm:$0xff]
        %v2451 = vld [vmem:[%s445 + $0x90] sm:$0xff]
        %v2452 = vld [vmem:[%s445 + $0x98] sm:$0xff]
        %v2453 = vld [vmem:[%s445 + $0xa0] sm:$0xff]
        %v2454 = vld [vmem:[%s445 + $0xa8] sm:$0xff]
        %v2455 = vld [vmem:[%s445 + $0xb0] sm:$0xff]
        %v2456 = vld [vmem:[%s445 + $0xb8] sm:$0xff]
        %v2457 = vld [vmem:[%s445 + $0xc0] sm:$0xff]
        %v2458 = vld [vmem:[%s445 + $0xc8] sm:$0xff]
        %v2459 = vld [vmem:[%s445 + $0xd0] sm:$0xff]
        %v2460 = vld [vmem:[%s445 + $0xd8] sm:$0xff]
        %v2461 = vld [vmem:[%s445 + $0xe0] sm:$0xff]
        %v2462 = vld [vmem:[%s445 + $0xe8] sm:$0xff]
        %v2463 = vld [vmem:[%s445 + $0xf0] sm:$0xff]
        %v2464 = vld [vmem:[%s445 + $0xf8] sm:$0xff]
        %v2465 = vunpack.c.0.s8 %v2433
        %v2466 = vunpack.c.0.s8 %v2434
        %v2467 = vunpack.c.1.s8 %v2433
        %v2468 = vunpack.c.1.s8 %v2434
        %v2469 = vunpack.c.2.s8 %v2433
        %v2470 = vunpack.c.2.s8 %v2434
        %v2471 = vunpack.c.3.s8 %v2433
        %v2472 = vunpack.c.3.s8 %v2434
        %v2473 = vunpack.c.0.s8 %v2435
        %v2474 = vunpack.c.0.s8 %v2436
        %v2475 = vunpack.c.1.s8 %v2435
        %v2476 = vunpack.c.1.s8 %v2436
        %v2477 = vunpack.c.2.s8 %v2435
        %v2478 = vunpack.c.2.s8 %v2436
        %v2479 = vunpack.c.3.s8 %v2435
        %v2480 = vunpack.c.3.s8 %v2436
        %v2481 = vunpack.c.0.s8 %v2437
        %v2482 = vunpack.c.0.s8 %v2438
        %v2483 = vunpack.c.1.s8 %v2437
        %v2484 = vunpack.c.1.s8 %v2438
        %v2485 = vunpack.c.2.s8 %v2437
        %v2486 = vunpack.c.2.s8 %v2438
        %v2487 = vunpack.c.3.s8 %v2437
        %v2488 = vunpack.c.3.s8 %v2438
        %v2489 = vunpack.c.0.s8 %v2439
        %v2490 = vunpack.c.0.s8 %v2440
        %v2491 = vunpack.c.1.s8 %v2439
        %v2492 = vunpack.c.1.s8 %v2440
        %v2493 = vunpack.c.2.s8 %v2439
        %v2494 = vunpack.c.2.s8 %v2440
        %v2495 = vunpack.c.3.s8 %v2439
        %v2496 = vunpack.c.3.s8 %v2440
        %v2497 = vunpack.c.0.s8 %v2441
        %v2498 = vunpack.c.0.s8 %v2442
        %v2499 = vunpack.c.1.s8 %v2441
        %v2500 = vunpack.c.1.s8 %v2442
        %v2501 = vunpack.c.2.s8 %v2441
        %v2502 = vunpack.c.2.s8 %v2442
        %v2503 = vunpack.c.3.s8 %v2441
        %v2504 = vunpack.c.3.s8 %v2442
        %v2505 = vunpack.c.0.s8 %v2443
        %v2506 = vunpack.c.0.s8 %v2444
        %v2507 = vunpack.c.1.s8 %v2443
        %v2508 = vunpack.c.1.s8 %v2444
        %v2509 = vunpack.c.2.s8 %v2443
        %v2510 = vunpack.c.2.s8 %v2444
        %v2511 = vunpack.c.3.s8 %v2443
        %v2512 = vunpack.c.3.s8 %v2444
        %v2513 = vunpack.c.0.s8 %v2445
        %v2514 = vunpack.c.0.s8 %v2446
        %v2515 = vunpack.c.1.s8 %v2445
        %v2516 = vunpack.c.1.s8 %v2446
        %v2517 = vunpack.c.2.s8 %v2445
        %v2518 = vunpack.c.2.s8 %v2446
        %v2519 = vunpack.c.3.s8 %v2445
        %v2520 = vunpack.c.3.s8 %v2446
        %v2521 = vunpack.c.0.s8 %v2447
        %v2522 = vunpack.c.0.s8 %v2448
        %v2523 = vunpack.c.1.s8 %v2447
        %v2524 = vunpack.c.1.s8 %v2448
        %v2525 = vunpack.c.2.s8 %v2447
        %v2526 = vunpack.c.2.s8 %v2448
        %v2527 = vunpack.c.3.s8 %v2447
        %v2528 = vunpack.c.3.s8 %v2448
        %v2529 = vunpack.c.0.s8 %v2449
        %v2530 = vunpack.c.0.s8 %v2450
        %v2531 = vunpack.c.1.s8 %v2449
        %v2532 = vunpack.c.1.s8 %v2450
        %v2533 = vunpack.c.2.s8 %v2449
        %v2534 = vunpack.c.2.s8 %v2450
        %v2535 = vunpack.c.3.s8 %v2449
        %v2536 = vunpack.c.3.s8 %v2450
        %v2537 = vunpack.c.0.s8 %v2451
        %v2538 = vunpack.c.0.s8 %v2452
        %v2539 = vunpack.c.1.s8 %v2451
        %v2540 = vunpack.c.1.s8 %v2452
        %v2541 = vunpack.c.2.s8 %v2451
        %v2542 = vunpack.c.2.s8 %v2452
        %v2543 = vunpack.c.3.s8 %v2451
        %v2544 = vunpack.c.3.s8 %v2452
        %v2545 = vunpack.c.0.s8 %v2453
        %v2546 = vunpack.c.0.s8 %v2454
        %v2547 = vunpack.c.1.s8 %v2453
        %v2548 = vunpack.c.1.s8 %v2454
        %v2549 = vunpack.c.2.s8 %v2453
        %v2550 = vunpack.c.2.s8 %v2454
        %v2551 = vunpack.c.3.s8 %v2453
        %v2552 = vunpack.c.3.s8 %v2454
        %v2553 = vunpack.c.0.s8 %v2455
        %v2554 = vunpack.c.0.s8 %v2456
        %v2555 = vunpack.c.1.s8 %v2455
        %v2556 = vunpack.c.1.s8 %v2456
        %v2557 = vunpack.c.2.s8 %v2455
        %v2558 = vunpack.c.2.s8 %v2456
        %v2559 = vunpack.c.3.s8 %v2455
        %v2560 = vunpack.c.3.s8 %v2456
        %v2561 = vunpack.c.0.s8 %v2457
        %v2562 = vunpack.c.0.s8 %v2458
        %v2563 = vunpack.c.1.s8 %v2457
        %v2564 = vunpack.c.1.s8 %v2458
        %v2565 = vunpack.c.2.s8 %v2457
        %v2566 = vunpack.c.2.s8 %v2458
        %v2567 = vunpack.c.3.s8 %v2457
        %v2568 = vunpack.c.3.s8 %v2458
        %v2569 = vunpack.c.0.s8 %v2459
        %v2570 = vunpack.c.0.s8 %v2460
        %v2571 = vunpack.c.1.s8 %v2459
        %v2572 = vunpack.c.1.s8 %v2460
        %v2573 = vunpack.c.2.s8 %v2459
        %v2574 = vunpack.c.2.s8 %v2460
        %v2575 = vunpack.c.3.s8 %v2459
        %v2576 = vunpack.c.3.s8 %v2460
        %v2577 = vunpack.c.0.s8 %v2461
        %v2578 = vunpack.c.0.s8 %v2462
        %v2579 = vunpack.c.1.s8 %v2461
        %v2580 = vunpack.c.1.s8 %v2462
        %v2581 = vunpack.c.2.s8 %v2461
        %v2582 = vunpack.c.2.s8 %v2462
        %v2583 = vunpack.c.3.s8 %v2461
        %v2584 = vunpack.c.3.s8 %v2462
        %v2585 = vunpack.c.0.s8 %v2463
        %v2586 = vunpack.c.0.s8 %v2464
        %v2587 = vunpack.c.1.s8 %v2463
        %v2588 = vunpack.c.1.s8 %v2464
        %v2589 = vunpack.c.2.s8 %v2463
        %v2590 = vunpack.c.2.s8 %v2464
        %v2591 = vunpack.c.3.s8 %v2463
        %v2592 = vunpack.c.3.s8 %v2464
        %v2593 = vcvt.s32.f32 %v2465
        %v2594 = vcvt.s32.f32 %v2466
        %v2595 = vcvt.s32.f32 %v2467
        %v2596 = vcvt.s32.f32 %v2468
        %v2597 = vcvt.s32.f32 %v2469
        %v2598 = vcvt.s32.f32 %v2470
        %v2599 = vcvt.s32.f32 %v2471
        %v2600 = vcvt.s32.f32 %v2472
        %v2601 = vcvt.s32.f32 %v2473
        %v2602 = vcvt.s32.f32 %v2474
        %v2603 = vcvt.s32.f32 %v2475
        %v2604 = vcvt.s32.f32 %v2476
        %v2605 = vcvt.s32.f32 %v2477
        %v2606 = vcvt.s32.f32 %v2478
        %v2607 = vcvt.s32.f32 %v2479
        %v2608 = vcvt.s32.f32 %v2480
        %v2609 = vcvt.s32.f32 %v2481
        %v2610 = vcvt.s32.f32 %v2482
        %v2611 = vcvt.s32.f32 %v2483
        %v2612 = vcvt.s32.f32 %v2484
        %v2613 = vcvt.s32.f32 %v2485
        %v2614 = vcvt.s32.f32 %v2486
        %v2615 = vcvt.s32.f32 %v2487
        %v2616 = vcvt.s32.f32 %v2488
        %v2617 = vcvt.s32.f32 %v2489
        %v2618 = vcvt.s32.f32 %v2490
        %v2619 = vcvt.s32.f32 %v2491
        %v2620 = vcvt.s32.f32 %v2492
        %v2621 = vcvt.s32.f32 %v2493
        %v2622 = vcvt.s32.f32 %v2494
        %v2623 = vcvt.s32.f32 %v2495
        %v2624 = vcvt.s32.f32 %v2496
        %v2625 = vcvt.s32.f32 %v2497
        %v2626 = vcvt.s32.f32 %v2498
        %v2627 = vcvt.s32.f32 %v2499
        %v2628 = vcvt.s32.f32 %v2500
        %v2629 = vcvt.s32.f32 %v2501
        %v2630 = vcvt.s32.f32 %v2502
        %v2631 = vcvt.s32.f32 %v2503
        %v2632 = vcvt.s32.f32 %v2504
        %v2633 = vcvt.s32.f32 %v2505
        %v2634 = vcvt.s32.f32 %v2506
        %v2635 = vcvt.s32.f32 %v2507
        %v2636 = vcvt.s32.f32 %v2508
        %v2637 = vcvt.s32.f32 %v2509
        %v2638 = vcvt.s32.f32 %v2510
        %v2639 = vcvt.s32.f32 %v2511
        %v2640 = vcvt.s32.f32 %v2512
        %v2641 = vcvt.s32.f32 %v2513
        %v2642 = vcvt.s32.f32 %v2514
        %v2643 = vcvt.s32.f32 %v2515
        %v2644 = vcvt.s32.f32 %v2516
        %v2645 = vcvt.s32.f32 %v2517
        %v2646 = vcvt.s32.f32 %v2518
        %v2647 = vcvt.s32.f32 %v2519
        %v2648 = vcvt.s32.f32 %v2520
        %v2649 = vcvt.s32.f32 %v2521
        %v2650 = vcvt.s32.f32 %v2522
        %v2651 = vcvt.s32.f32 %v2523
        %v2652 = vcvt.s32.f32 %v2524
        %v2653 = vcvt.s32.f32 %v2525
        %v2654 = vcvt.s32.f32 %v2526
        %v2655 = vcvt.s32.f32 %v2527
        %v2656 = vcvt.s32.f32 %v2528
        %v2657 = vcvt.s32.f32 %v2529
        %v2658 = vcvt.s32.f32 %v2530
        %v2659 = vcvt.s32.f32 %v2531
        %v2660 = vcvt.s32.f32 %v2532
        %v2661 = vcvt.s32.f32 %v2533
        %v2662 = vcvt.s32.f32 %v2534
        %v2663 = vcvt.s32.f32 %v2535
        %v2664 = vcvt.s32.f32 %v2536
        %v2665 = vcvt.s32.f32 %v2537
        %v2666 = vcvt.s32.f32 %v2538
        %v2667 = vcvt.s32.f32 %v2539
        %v2668 = vcvt.s32.f32 %v2540
        %v2669 = vcvt.s32.f32 %v2541
        %v2670 = vcvt.s32.f32 %v2542
        %v2671 = vcvt.s32.f32 %v2543
        %v2672 = vcvt.s32.f32 %v2544
        %v2673 = vcvt.s32.f32 %v2545
        %v2674 = vcvt.s32.f32 %v2546
        %v2675 = vcvt.s32.f32 %v2547
        %v2676 = vcvt.s32.f32 %v2548
        %v2677 = vcvt.s32.f32 %v2549
        %v2678 = vcvt.s32.f32 %v2550
        %v2679 = vcvt.s32.f32 %v2551
        %v2680 = vcvt.s32.f32 %v2552
        %v2681 = vcvt.s32.f32 %v2553
        %v2682 = vcvt.s32.f32 %v2554
        %v2683 = vcvt.s32.f32 %v2555
        %v2684 = vcvt.s32.f32 %v2556
        %v2685 = vcvt.s32.f32 %v2557
        %v2686 = vcvt.s32.f32 %v2558
        %v2687 = vcvt.s32.f32 %v2559
        %v2688 = vcvt.s32.f32 %v2560
        %v2689 = vcvt.s32.f32 %v2561
        %v2690 = vcvt.s32.f32 %v2562
        %v2691 = vcvt.s32.f32 %v2563
        %v2692 = vcvt.s32.f32 %v2564
        %v2693 = vcvt.s32.f32 %v2565
        %v2694 = vcvt.s32.f32 %v2566
        %v2695 = vcvt.s32.f32 %v2567
        %v2696 = vcvt.s32.f32 %v2568
        %v2697 = vcvt.s32.f32 %v2569
        %v2698 = vcvt.s32.f32 %v2570
        %v2699 = vcvt.s32.f32 %v2571
        %v2700 = vcvt.s32.f32 %v2572
        %v2701 = vcvt.s32.f32 %v2573
        %v2702 = vcvt.s32.f32 %v2574
        %v2703 = vcvt.s32.f32 %v2575
        %v2704 = vcvt.s32.f32 %v2576
        %v2705 = vcvt.s32.f32 %v2577
        %v2706 = vcvt.s32.f32 %v2578
        %v2707 = vcvt.s32.f32 %v2579
        %v2708 = vcvt.s32.f32 %v2580
        %v2709 = vcvt.s32.f32 %v2581
        %v2710 = vcvt.s32.f32 %v2582
        %v2711 = vcvt.s32.f32 %v2583
        %v2712 = vcvt.s32.f32 %v2584
        %v2713 = vcvt.s32.f32 %v2585
        %v2714 = vcvt.s32.f32 %v2586
        %v2715 = vcvt.s32.f32 %v2587
        %v2716 = vcvt.s32.f32 %v2588
        %v2717 = vcvt.s32.f32 %v2589
        %v2718 = vcvt.s32.f32 %v2590
        %v2719 = vcvt.s32.f32 %v2591
        %v2720 = vcvt.s32.f32 %v2592
        %v2721 = vpack.c.bf16 %v2595, %v2593
        %v2722 = vpack.c.bf16 %v2596, %v2594
        %v2723 = vpack.c.bf16 %v2599, %v2597
        %v2724 = vpack.c.bf16 %v2600, %v2598
        %v2725 = vpack.c.bf16 %v2603, %v2601
        %v2726 = vpack.c.bf16 %v2604, %v2602
        %v2727 = vpack.c.bf16 %v2607, %v2605
        %v2728 = vpack.c.bf16 %v2608, %v2606
        %v2729 = vpack.c.bf16 %v2611, %v2609
        %v2730 = vpack.c.bf16 %v2612, %v2610
        %v2731 = vpack.c.bf16 %v2615, %v2613
        %v2732 = vpack.c.bf16 %v2616, %v2614
        %v2733 = vpack.c.bf16 %v2619, %v2617
        %v2734 = vpack.c.bf16 %v2620, %v2618
        %v2735 = vpack.c.bf16 %v2623, %v2621
        %v2736 = vpack.c.bf16 %v2624, %v2622
        %v2737 = vpack.c.bf16 %v2627, %v2625
        %v2738 = vpack.c.bf16 %v2628, %v2626
        %v2739 = vpack.c.bf16 %v2631, %v2629
        %v2740 = vpack.c.bf16 %v2632, %v2630
        %v2741 = vpack.c.bf16 %v2635, %v2633
        %v2742 = vpack.c.bf16 %v2636, %v2634
        %v2743 = vpack.c.bf16 %v2639, %v2637
        %v2744 = vpack.c.bf16 %v2640, %v2638
        %v2745 = vpack.c.bf16 %v2643, %v2641
        %v2746 = vpack.c.bf16 %v2644, %v2642
        %v2747 = vpack.c.bf16 %v2647, %v2645
        %v2748 = vpack.c.bf16 %v2648, %v2646
        %v2749 = vpack.c.bf16 %v2651, %v2649
        %v2750 = vpack.c.bf16 %v2652, %v2650
        %v2751 = vpack.c.bf16 %v2655, %v2653
        %v2752 = vpack.c.bf16 %v2656, %v2654
        %v2753 = vpack.c.bf16 %v2659, %v2657
        %v2754 = vpack.c.bf16 %v2660, %v2658
        %v2755 = vpack.c.bf16 %v2663, %v2661
        %v2756 = vpack.c.bf16 %v2664, %v2662
        %v2757 = vpack.c.bf16 %v2667, %v2665
        %v2758 = vpack.c.bf16 %v2668, %v2666
        %v2759 = vpack.c.bf16 %v2671, %v2669
        %v2760 = vpack.c.bf16 %v2672, %v2670
        %v2761 = vpack.c.bf16 %v2675, %v2673
        %v2762 = vpack.c.bf16 %v2676, %v2674
        %v2763 = vpack.c.bf16 %v2679, %v2677
        %v2764 = vpack.c.bf16 %v2680, %v2678
        %v2765 = vpack.c.bf16 %v2683, %v2681
        %v2766 = vpack.c.bf16 %v2684, %v2682
        %v2767 = vpack.c.bf16 %v2687, %v2685
        %v2768 = vpack.c.bf16 %v2688, %v2686
        %v2769 = vpack.c.bf16 %v2691, %v2689
        %v2770 = vpack.c.bf16 %v2692, %v2690
        %v2771 = vpack.c.bf16 %v2695, %v2693
        %v2772 = vpack.c.bf16 %v2696, %v2694
        %v2773 = vpack.c.bf16 %v2699, %v2697
        %v2774 = vpack.c.bf16 %v2700, %v2698
        %v2775 = vpack.c.bf16 %v2703, %v2701
        %v2776 = vpack.c.bf16 %v2704, %v2702
        %v2777 = vpack.c.bf16 %v2707, %v2705
        %v2778 = vpack.c.bf16 %v2708, %v2706
        %v2779 = vpack.c.bf16 %v2711, %v2709
        %v2780 = vpack.c.bf16 %v2712, %v2710
        %v2781 = vpack.c.bf16 %v2715, %v2713
        %v2782 = vpack.c.bf16 %v2716, %v2714
        %v2783 = vpack.c.bf16 %v2719, %v2717
        %v2784 = vpack.c.bf16 %v2720, %v2718
        %2785 = vmatpush.bf16.msra.mxu0 %v2735
        %2786 = vmatpush.bf16.msra.mxu0 %v2733
        %2787 = vmatpush.bf16.msra.mxu0 %v2731
        %2788 = vmatpush.bf16.msra.mxu0 %v2729
        %2789 = vmatpush.bf16.msra.mxu0 %v2727
        %2790 = vmatpush.bf16.msra.mxu0 %v2725
        %2791 = vmatpush.bf16.msra.mxu0 %v2723
        %2792 = vmatpush.bf16.msra.mxu0 %v2721
        %2793 = vmatmul.bf16.gmra.mxu0 %v2429
        %v2794 = vpop.f32.mrf.mxu0
        %v2795 = vadd.f32 0.0, %v2794
        %v2796 = vpop.f32.mrf.mxu0
        %2797 = vdwg.mxu0
        %2798 = vmatpush.bf16.msra.mxu0 %v2751
        %2799 = vmatpush.bf16.msra.mxu0 %v2749
        %2800 = vmatpush.bf16.msra.mxu0 %v2747
        %2801 = vmatpush.bf16.msra.mxu0 %v2745
        %2802 = vmatpush.bf16.msra.mxu0 %v2743
        %2803 = vmatpush.bf16.msra.mxu0 %v2741
        %2804 = vmatpush.bf16.msra.mxu0 %v2739
        %2805 = vmatpush.bf16.msra.mxu0 %v2737
        %2806 = vmatmul.bf16.gmra.mxu0 %v2430
        %v2807 = vpop.f32.mrf.mxu0
        %v2808 = vadd.f32 %v2795, %v2807
        %v2809 = vpop.f32.mrf.mxu0
        %2810 = vdwg.mxu0
        %2811 = vmatpush.bf16.msra.mxu0 %v2767
        %2812 = vmatpush.bf16.msra.mxu0 %v2765
        %2813 = vmatpush.bf16.msra.mxu0 %v2763
        %2814 = vmatpush.bf16.msra.mxu0 %v2761
        %2815 = vmatpush.bf16.msra.mxu0 %v2759
        %2816 = vmatpush.bf16.msra.mxu0 %v2757
        %2817 = vmatpush.bf16.msra.mxu0 %v2755
        %2818 = vmatpush.bf16.msra.mxu0 %v2753
        %2819 = vmatmul.bf16.gmra.mxu0 %v2431
        %v2820 = vpop.f32.mrf.mxu0
        %v2821 = vadd.f32 %v2808, %v2820
        %v2822 = vpop.f32.mrf.mxu0
        %2823 = vdwg.mxu0
        %2824 = vmatpush.bf16.msra.mxu0 %v2783
        %2825 = vmatpush.bf16.msra.mxu0 %v2781
        %2826 = vmatpush.bf16.msra.mxu0 %v2779
        %2827 = vmatpush.bf16.msra.mxu0 %v2777
        %2828 = vmatpush.bf16.msra.mxu0 %v2775
        %2829 = vmatpush.bf16.msra.mxu0 %v2773
        %2830 = vmatpush.bf16.msra.mxu0 %v2771
        %2831 = vmatpush.bf16.msra.mxu0 %v2769
        %2832 = vmatmul.bf16.gmra.mxu0 %v2432
        %v2833 = vpop.f32.mrf.mxu0
        %v2834 = vadd.f32 %v2821, %v2833
        %v2835 = vpop.f32.mrf.mxu0
        %2836 = vdwg.mxu0
        %2837 = vmatpush.bf16.msra.mxu0 %v2736
        %2838 = vmatpush.bf16.msra.mxu0 %v2734
        %2839 = vmatpush.bf16.msra.mxu0 %v2732
        %2840 = vmatpush.bf16.msra.mxu0 %v2730
        %2841 = vmatpush.bf16.msra.mxu0 %v2728
        %2842 = vmatpush.bf16.msra.mxu0 %v2726
        %2843 = vmatpush.bf16.msra.mxu0 %v2724
        %2844 = vmatpush.bf16.msra.mxu0 %v2722
        %2845 = vmatmul.bf16.gmra.mxu0 %v2429
        %v2846 = vpop.f32.mrf.mxu0
        %v2847 = vadd.f32 0.0, %v2846
        %v2848 = vpop.f32.mrf.mxu0
        %2849 = vdwg.mxu0
        %2850 = vmatpush.bf16.msra.mxu0 %v2752
        %2851 = vmatpush.bf16.msra.mxu0 %v2750
        %2852 = vmatpush.bf16.msra.mxu0 %v2748
        %2853 = vmatpush.bf16.msra.mxu0 %v2746
        %2854 = vmatpush.bf16.msra.mxu0 %v2744
        %2855 = vmatpush.bf16.msra.mxu0 %v2742
        %2856 = vmatpush.bf16.msra.mxu0 %v2740
        %2857 = vmatpush.bf16.msra.mxu0 %v2738
        %2858 = vmatmul.bf16.gmra.mxu0 %v2430
        %v2859 = vpop.f32.mrf.mxu0
        %v2860 = vadd.f32 %v2847, %v2859
        %v2861 = vpop.f32.mrf.mxu0
        %2862 = vdwg.mxu0
        %2863 = vmatpush.bf16.msra.mxu0 %v2768
        %2864 = vmatpush.bf16.msra.mxu0 %v2766
        %2865 = vmatpush.bf16.msra.mxu0 %v2764
        %2866 = vmatpush.bf16.msra.mxu0 %v2762
        %2867 = vmatpush.bf16.msra.mxu0 %v2760
        %2868 = vmatpush.bf16.msra.mxu0 %v2758
        %2869 = vmatpush.bf16.msra.mxu0 %v2756
        %2870 = vmatpush.bf16.msra.mxu0 %v2754
        %2871 = vmatmul.bf16.gmra.mxu0 %v2431
        %v2872 = vpop.f32.mrf.mxu0
        %v2873 = vadd.f32 %v2860, %v2872
        %v2874 = vpop.f32.mrf.mxu0
        %2875 = vdwg.mxu0
        %2876 = vmatpush.bf16.msra.mxu0 %v2784
        %2877 = vmatpush.bf16.msra.mxu0 %v2782
        %2878 = vmatpush.bf16.msra.mxu0 %v2780
        %2879 = vmatpush.bf16.msra.mxu0 %v2778
        %2880 = vmatpush.bf16.msra.mxu0 %v2776
        %2881 = vmatpush.bf16.msra.mxu0 %v2774
        %2882 = vmatpush.bf16.msra.mxu0 %v2772
        %2883 = vmatpush.bf16.msra.mxu0 %v2770
        %2884 = vmatmul.bf16.gmra.mxu0 %v2432
        %v2885 = vpop.f32.mrf.mxu0
        %v2886 = vadd.f32 %v2873, %v2885
        %v2887 = vpop.f32.mrf.mxu0
        %2888 = vdwg.mxu0
        %v2889 = vld [vmem:[%s529] sm:$0x1]
        %v2891 = vperm.slane %v2889, 0
        %2892 = vset.pattern.permute.xlu0 0
        %2893 = vperm.xlu0 %2892, %v2891
        %v2894 = vpop.permute.xlu0 %2893
        %v2896 = vmul.f32 %v2834, %v2894
        %v2897 = vmul.f32 %v2886, %v2894
        %v2898 = vld [vmem:[%s533] sm:$0x3]
        %v2900 = vperm.slane %v2898, 0
        %v2901 = vperm.slane %v2898, 1
        %v2904 = vadd.f32 %v2896, %v2900
        %v2905 = vadd.f32 %v2897, %v2901
        %vm2906 = vcmp.gt.f32.partialorder %v2904, 0.0
        %vm2907 = vcmp.gt.f32.partialorder %v2905, 0.0
        %v2908 = vmul.f32 %v2904, 0.2
        %v2909 = vmul.f32 %v2905, 0.2
        %v2910 = vsel %vm2906, %v2904, %v2908
        %v2911 = vsel %vm2907, %v2905, %v2909
        %v2912 = vpack.c.bf16 %v2910, %v2910
        %v2913 = vpack.c.bf16 %v2911, %v2911
        %v2914 = vld [vmem:[%s538] sm:$0xf]
        %v2915 = vld [vmem:[%s538 + $0x4] sm:$0xf]
        %v2916 = vld [vmem:[%s538 + $0x8] sm:$0xf]
        %v2917 = vld [vmem:[%s538 + $0xc] sm:$0xf]
        %v2918 = vld [vmem:[%s538 + $0x10] sm:$0xf]
        %v2919 = vld [vmem:[%s538 + $0x14] sm:$0xf]
        %v2920 = vld [vmem:[%s538 + $0x18] sm:$0xf]
        %v2921 = vld [vmem:[%s538 + $0x1c] sm:$0xf]
        %v2922 = vld [vmem:[%s538 + $0x20] sm:$0xf]
        %v2923 = vld [vmem:[%s538 + $0x24] sm:$0xf]
        %v2924 = vld [vmem:[%s538 + $0x28] sm:$0xf]
        %v2925 = vld [vmem:[%s538 + $0x2c] sm:$0xf]
        %v2926 = vld [vmem:[%s538 + $0x30] sm:$0xf]
        %v2927 = vld [vmem:[%s538 + $0x34] sm:$0xf]
        %v2928 = vld [vmem:[%s538 + $0x38] sm:$0xf]
        %v2929 = vld [vmem:[%s538 + $0x3c] sm:$0xf]
        %v2930 = vld [vmem:[%s538 + $0x40] sm:$0xf]
        %v2931 = vld [vmem:[%s538 + $0x44] sm:$0xf]
        %v2932 = vld [vmem:[%s538 + $0x48] sm:$0xf]
        %v2933 = vld [vmem:[%s538 + $0x4c] sm:$0xf]
        %v2934 = vld [vmem:[%s538 + $0x50] sm:$0xf]
        %v2935 = vld [vmem:[%s538 + $0x54] sm:$0xf]
        %v2936 = vld [vmem:[%s538 + $0x58] sm:$0xf]
        %v2937 = vld [vmem:[%s538 + $0x5c] sm:$0xf]
        %v2938 = vld [vmem:[%s538 + $0x60] sm:$0xf]
        %v2939 = vld [vmem:[%s538 + $0x64] sm:$0xf]
        %v2940 = vld [vmem:[%s538 + $0x68] sm:$0xf]
        %v2941 = vld [vmem:[%s538 + $0x6c] sm:$0xf]
        %v2942 = vld [vmem:[%s538 + $0x70] sm:$0xf]
        %v2943 = vld [vmem:[%s538 + $0x74] sm:$0xf]
        %v2944 = vld [vmem:[%s538 + $0x78] sm:$0xf]
        %v2945 = vld [vmem:[%s538 + $0x7c] sm:$0xf]
        %v2946 = vld [vmem:[%s541] sm:$0x1]
        %v2948 = vperm.slane %v2946, 0
        %v2982 = vunpack.c.l.b16 %v2914
        %v2983 = vunpack.c.l.b16 %v2915
        %v2984 = vunpack.c.l.b16 %v2916
        %v2985 = vunpack.c.l.b16 %v2917
        %v2986 = vunpack.c.l.b16 %v2918
        %v2987 = vunpack.c.l.b16 %v2919
        %v2988 = vunpack.c.l.b16 %v2920
        %v2989 = vunpack.c.l.b16 %v2921
        %v2990 = vunpack.c.l.b16 %v2922
        %v2991 = vunpack.c.l.b16 %v2923
        %v2992 = vunpack.c.l.b16 %v2924
        %v2993 = vunpack.c.l.b16 %v2925
        %v2994 = vunpack.c.l.b16 %v2926
        %v2995 = vunpack.c.l.b16 %v2927
        %v2996 = vunpack.c.l.b16 %v2928
        %v2997 = vunpack.c.l.b16 %v2929
        %v2998 = vunpack.c.l.b16 %v2930
        %v2999 = vunpack.c.l.b16 %v2931
        %v3000 = vunpack.c.l.b16 %v2932
        %v3001 = vunpack.c.l.b16 %v2933
        %v3002 = vunpack.c.l.b16 %v2934
        %v3003 = vunpack.c.l.b16 %v2935
        %v3004 = vunpack.c.l.b16 %v2936
        %v3005 = vunpack.c.l.b16 %v2937
        %v3006 = vunpack.c.l.b16 %v2938
        %v3007 = vunpack.c.l.b16 %v2939
        %v3008 = vunpack.c.l.b16 %v2940
        %v3009 = vunpack.c.l.b16 %v2941
        %v3010 = vunpack.c.l.b16 %v2942
        %v3011 = vunpack.c.l.b16 %v2943
        %v3012 = vunpack.c.l.b16 %v2944
        %v3013 = vunpack.c.l.b16 %v2945
        %v3014 = vpack.c.b16 %v2983, %v2982
        %v3015 = vpack.c.b16 %v2985, %v2984
        %v3016 = vpack.c.b16 %v2987, %v2986
        %v3017 = vpack.c.b16 %v2989, %v2988
        %v3018 = vpack.c.b16 %v2991, %v2990
        %v3019 = vpack.c.b16 %v2993, %v2992
        %v3020 = vpack.c.b16 %v2995, %v2994
        %v3021 = vpack.c.b16 %v2997, %v2996
        %v3022 = vpack.c.b16 %v2999, %v2998
        %v3023 = vpack.c.b16 %v3001, %v3000
        %v3024 = vpack.c.b16 %v3003, %v3002
        %v3025 = vpack.c.b16 %v3005, %v3004
        %v3026 = vpack.c.b16 %v3007, %v3006
        %v3027 = vpack.c.b16 %v3009, %v3008
        %v3028 = vpack.c.b16 %v3011, %v3010
        %v3029 = vpack.c.b16 %v3013, %v3012
        %3046 = vmatpush.bf16.msra.mxu0 %v3021
        %3047 = vmatpush.bf16.msra.mxu0 %v3020
        %3048 = vmatpush.bf16.msra.mxu0 %v3019
        %3049 = vmatpush.bf16.msra.mxu0 %v3018
        %3050 = vmatpush.bf16.msra.mxu0 %v3017
        %3051 = vmatpush.bf16.msra.mxu0 %v3016
        %3052 = vmatpush.bf16.msra.mxu0 %v3015
        %3053 = vmatpush.bf16.msra.mxu0 %v3014
        %3054 = vmatmul.bf16.gmra.mxu0 %v2912
        %v3055 = vpop.f32.mrf.mxu0
        %v3056 = vadd.f32 %v2948, %v3055
        %v3057 = vpop.f32.mrf.mxu0
        %3058 = vdwg.mxu0
        %3059 = vmatpush.bf16.msra.mxu0 %v3029
        %3060 = vmatpush.bf16.msra.mxu0 %v3028
        %3061 = vmatpush.bf16.msra.mxu0 %v3027
        %3062 = vmatpush.bf16.msra.mxu0 %v3026
        %3063 = vmatpush.bf16.msra.mxu0 %v3025
        %3064 = vmatpush.bf16.msra.mxu0 %v3024
        %3065 = vmatpush.bf16.msra.mxu0 %v3023
        %3066 = vmatpush.bf16.msra.mxu0 %v3022
        %3067 = vmatmul.bf16.gmra.mxu0 %v2913
        %v3068 = vpop.f32.mrf.mxu0
        %v3069 = vadd.f32 %v3056, %v3068
        %v3070 = vpop.f32.mrf.mxu0
        %3071 = vdwg.mxu0
        %vm3072 = vcmp.gt.f32.partialorder %v3069, 0.0
        %v3073 = vmul.f32 %v3069, 0.2
        %v3074 = vsel %vm3072, %v3069, %v3073
        %v3075 = vld [vmem:[%s544] sm:$0x1]
        %v3077 = vperm.slane %v3075, 0
        %v3079 = vmul.f32 %v3074, %v3077
        %vm3080 = vcmask 254976
        %v3081 = vsel %vm3080, %v3079, 0.0
        %3082 = vadd.xlane.f32.xlu0 %v3081
        %v3083 = vpop.xlane.xlu0 %3082
        %vm3084 = vcmask 1024
        %3085 = vst.msk [vmem:[%s548] sm:$0x3] %vm3084, %v3083
        %p3086 = scmp.lt.s32.totalorder %s27, 1
        %s3087 = scalar_select %p3086, %s27, 1
        %s3088 = smul.addr %s3087, 2
        %s3089 = scalar_lea.vmem %s10, %s3088
        // Predicated region
        $region69: #{discriminator_forward.1} parent=59 // pred_check
          %p3090 = pneg %p305
        $region70: #{discriminator_forward.1} parent=59 // pred_check_branch
          %3092 = sbr.rel (%p3090) target = $region72
        $region71: #{discriminator_forward.1} parent=59 // pred_region
          _
        $region72: #{discriminator_forward.1} parent=59 // pred_fallthru
          _
      $region60: #{discriminator_forward.1} parent=5 // pred_fallthru
        _
      %p3093 = scmp.le.s32.totalorder 2, %s22
      // Predicated region
      $region73: #{discriminator_forward.1} parent=5 // pred_check
        %p3094 = pneg %p3093
      $region74: #{discriminator_forward.1} parent=5 // pred_check_branch
        %3096 = sbr.rel (%p3094) target = $region76
      $region75: #{discriminator_forward.1} parent=5 // pred_region
        %s3097 = ssub.s32 %s22, 2
        // Predicated region
        $region77: #{discriminator_forward.1} parent=75 // pred_check
          %p3098 = pneg %p311
        $region78: #{discriminator_forward.1} parent=75 // pred_check_branch
          %3100 = sbr.rel (%p3098) target = $region80
        $region79: #{discriminator_forward.1} parent=75 // pred_region
          %p3101 = scmp.lt.s32.totalorder %s28, 1
          %s3102 = scalar_select %p3101, %s28, 1
          %s3103 = smul.addr %s3102, 2
          %s3104 = scalar_lea.vmem %s10, %s3103
        $region80: #{discriminator_forward.1} parent=75 // pred_fallthru
          _
      $region76: #{discriminator_forward.1} parent=5 // pred_fallthru
        _
    $region6: #{discriminator_forward.1} parent=1 // loop_footer
      %s26 = sadd.s32 1, %s22
    $region7: #{discriminator_forward.1} parent=1 // loop_footer_branch
      %21 = sbr.rel target = $region3
    $region8: #{discriminator_forward.1} parent=1 // loop_exit
      _
    %3105 = vsyncpa [#allocation3], 1
    %s3106 = scalar_lea.sflag [#allocation3], 1
    %3107 = vsyncpa %s3106, 1
    %3108 = vsyncpa [#allocation5], 1
    %s3109 = scalar_lea.sflag [#allocation5], 1
    %3110 = vsyncpa %s3109, 1

</llo_original>
